<compile_context>
chip_gen: v7x
topology: tpu7x:2x2x1
jax: 0.10.0
libtpu: 0.0.40
codegen_flags: <defaults>
</compile_context>

<pallas_src>
import functools

import jax
import jax.numpy as jnp
from jax.experimental import pallas as pl
from jax.experimental.pallas import tpu as pltpu


def _upsample_conv_kernel(x_hbm, w_ref, b_ref, o_ref, xbuf, sem, *,
                          rows_per_image):
    """One (cout-block, batch, row-tile) grid step.

    x_hbm : (N*(H_pad+2), W+2, Cp)  zero-padded NHWC input, left in HBM (ANY)
    w_ref : (16, Cp, Cn)            polyphase taps for this cout block (VMEM)
    b_ref : (1, Cn)                 f32 bias slice for this cout block (VMEM)
    o_ref : (th, 2, 2, W, Cn)       o[i,a,b,j,c] = y[2*(row0+i)+a, 2*j+b, c0+c]
    xbuf  : (2, th+2, W+2, Cp)      manual double buffer for the halo window
    sem   : DMA semaphores, shape (2,)
    """
    th, _, _, W, Cn = o_ref.shape
    Cp = w_ref.shape[1]

    n = pl.program_id(1)            # batch            ("parallel")
    r = pl.program_id(2)            # row tile         ("arbitrary", innermost)
    num_r = pl.num_programs(2)

    def fetch(row_tile, slot):
        start = n * rows_per_image + row_tile * th
        pltpu.make_async_copy(x_hbm.at[pl.ds(start, th + 2)],
                              xbuf.at[slot], sem.at[slot]).start()

    # Prime the pipeline at the start of every (cout, batch) row sweep.  The
    # row axis is "arbitrary", so this carried DMA state is never split across
    # TensorCores; megacore parallelism lives on the outer axes only.
    @pl.when(r == 0)
    def _():
        fetch(0, 0)

    slot = r % 2
    # Wait for the current window (descriptor is only used for its semaphore).
    pltpu.make_async_copy(x_hbm.at[pl.ds(0, th + 2)],
                          xbuf.at[slot], sem.at[slot]).wait()

    # Prefetch the next row window into the other slot while we compute.
    @pl.when(r + 1 < num_r)
    def _():
        fetch(r + 1, 1 - slot)

    # Only 3 distinct column shifts feed the 16 polyphase taps.  Materialize
    # them once per step (3 sublane-shift copies instead of 16) as
    # ((th+2)*W, Cp) slabs; every per-tap LHS below is an aligned row slice.
    flats = [xbuf[slot, :, s:s + W, :].reshape((th + 2) * W, Cp)
             for s in range(3)]

    bias = b_ref[...].astype(jnp.float32)                      # (1, Cn)

    for a in range(2):                       # output row phase
        for b in range(2):                   # output column phase
            acc = None                       # accumulate in registers / MRB
            for dr in range(2):              # 2x2 pre-summed taps
                for dc in range(2):
                    t = a * 8 + b * 4 + dr * 2 + dc
                    lhs = flats[b + dc][(a + dr) * W:(a + dr + th) * W, :]
                    p = jnp.dot(lhs, w_ref[t],
                                preferred_element_type=jnp.float32)
                    acc = p if acc is None else acc + p
            # Single lane-dense (Cn % 128 == 0) store per phase, bias folded.
            o_ref[:, a, b, :, :] = (
                (acc + bias).reshape(th, W, Cn).astype(o_ref.dtype))


def _polyphase_weights(weight_oihw):
    """Fold nearest-2x upsample into the 3x3 conv: 4 phases x 2x2 summed taps."""
    w_hwio = jnp.transpose(weight_oihw, (2, 3, 1, 0))          # (3, 3, Cin, Cout)
    # For output phase a and tap offset dr, which original 3x3 rows contribute:
    groups = {(0, 0): (0,), (0, 1): (1, 2), (1, 0): (0, 1), (1, 1): (2,)}
    taps = []
    for a in range(2):
        for b in range(2):
            for dr in range(2):
                for dc in range(2):
                    w = sum(w_hwio[ky, kx]
                            for ky in groups[(a, dr)]
                            for kx in groups[(b, dc)])
                    taps.append(w)
    return jnp.stack(taps, axis=0)                             # (16, Cin, Cout)


@functools.partial(jax.jit, static_argnames=("tile_rows", "cout_block"))
def upsample_forward(x_nchw, weight_oihw, bias, *, tile_rows=None,
                     cout_block=None):
    """Upsample.forward: nearest-2x upsample + 3x3 'same' conv (NCHW in/out)."""
    N, C, H, W = x_nchw.shape
    dtype = x_nchw.dtype
    isz = jnp.dtype(dtype).itemsize

    # Channel padding to MXU / lane width.
    Cp = max(128, ((C + 127) // 128) * 128)

    # Output-channel blocking keeps the resident (16, Cp, Cn) weight slab
    # bounded (Pallas double-buffers inputs; v7x has 64 MiB VMEM per TC) and
    # adds grid steps so both v7x TensorCores stay fed at real SD channels.
    if cout_block is None:
        divisors = [c for c in range(128, Cp + 1, 128) if Cp % c == 0]
        fitting = [c for c in divisors
                   if 2 * 16 * Cp * c * isz <= 16 * 1024 * 1024]
        cout_block = max(fitting) if fitting else 128
    Cn = cout_block
    assert Cn % 128 == 0 and Cp % Cn == 0, (Cp, Cn)
    J = Cp // Cn

    # Row-tile size from a VMEM budget (bigger tiles amortize the ~0.35us
    # per-step overhead).  Ceil-div grid + bottom zero pad: awkward H never
    # degrades to tiny tiles.
    if tile_rows is None:
        budget = 40 * 1024 * 1024
        w_bytes = 2 * 16 * Cp * Cn * isz
        per_row = (2 * (W + 2) * Cp * isz      # x halo window, double buffered
                   + 2 * 4 * W * Cn * isz      # output block, double buffered
                   + 3 * W * Cp * 4            # the 3 column-shift slabs
                   + 2 * W * Cn * 4)           # in-flight f32 accumulators
        tile_rows = int(max(4, min(H, 256, (budget - w_bytes) // per_row)))
    th = int(min(tile_rows, H))
    R = -(-H // th)                            # ceil(H / th)
    H_pad = R * th

    # NCHW -> NHWC, +1 'same' halo, bottom tiling pad, channel pad.  Neither
    # the 2x upsampled image nor a halo-duplicated copy of the input is ever
    # written to HBM: the kernel DMAs overlapping row windows from this array.
    x = jnp.transpose(x_nchw, (0, 2, 3, 1))
    x_pad = jnp.pad(x, ((0, 0), (1, 1 + H_pad - H), (1, 1), (0, Cp - C)))
    x_flat = x_pad.reshape(N * (H_pad + 2), W + 2, Cp)

    # Polyphase-combined weights (K- and Cout-padded) and f32 bias.
    w_eff = jnp.pad(_polyphase_weights(weight_oihw).astype(dtype),
                    ((0, 0), (0, Cp - C), (0, Cp - C)))        # (16, Cp, Cp)
    b_eff = jnp.pad(bias.astype(jnp.float32), (0, Cp - C)).reshape(1, Cp)

    # VMEM limit computed from the actual buffer sizes (plus slack), capped
    # under the physical per-core capacity.
    est = (2 * 16 * Cp * Cn * isz              # weight double buffer
           + 2 * (th + 2) * (W + 2) * Cp * isz # manual x double buffer
           + 2 * th * 4 * W * Cn * isz         # output double buffer
           + 3 * (th + 2) * W * Cp * 4         # column-shift slabs
           + 4 * th * W * Cn * 4               # accumulators
           + 2 * 1024 * 1024)                  # slack
    try:
        phys = int(pltpu.get_tpu_info().vmem_capacity_bytes)
    except Exception:
        phys = 64 * 1024 * 1024
    vmem_limit = int(min(max(est, 32 * 1024 * 1024),
                         max(est, int(phys * 0.9))))

    kernel = functools.partial(_upsample_conv_kernel,
                               rows_per_image=H_pad + 2)

    out_k = pl.pallas_call(
        kernel,
        out_shape=jax.ShapeDtypeStruct((N * H_pad, 2, 2, W, Cp), dtype),
        grid_spec=pltpu.PrefetchScalarGridSpec(
            num_scalar_prefetch=0,
            grid=(J, N, R),
            in_specs=[
                pl.BlockSpec(memory_space=pl.ANY),                   # x in HBM
                pl.BlockSpec((16, Cp, Cn), lambda j, n, r: (0, 0, j)),
                pl.BlockSpec((1, Cn), lambda j, n, r: (0, j)),
            ],
            out_specs=pl.BlockSpec((th, 2, 2, W, Cn),
                                   lambda j, n, r: (n * R + r, 0, 0, 0, j)),
            scratch_shapes=[
                pltpu.VMEM((2, th + 2, W + 2, Cp), dtype),
                pltpu.SemaphoreType.DMA((2,)),
            ],
        ),
        compiler_params=pltpu.CompilerParams(
            dimension_semantics=("parallel", "parallel", "arbitrary"),
            vmem_limit_bytes=vmem_limit),
    )(x_flat, w_eff, b_eff)

    # Un-pad, interleave the 2x2 phases, and convert back to NCHW in a single
    # XLA transpose (needed anyway for the PyTorch layout).
    out = out_k.reshape(N, H_pad, 2, 2, W, Cp)[:, :H, :, :, :, :C]
    out = jnp.transpose(out, (0, 5, 1, 2, 4, 3)).reshape(N, C, 2 * H, 2 * W)
    return out


def _reference(x_nchw, weight_oihw, bias):
    """Pure-JAX reference (nearest 2x upsample + lax conv) for validation."""
    x_up = jnp.repeat(jnp.repeat(x_nchw, 2, axis=2), 2, axis=3)
    y = jax.lax.conv_general_dilated(
        x_up, weight_oihw, window_strides=(1, 1),
        padding=((1, 1), (1, 1)),
        dimension_numbers=("NCHW", "OIHW", "NCHW"))
    return y + bias[None, :, None, None]


if __name__ == "__main__":
    key = jax.random.PRNGKey(0)
    k1, k2, k3, k4, k5, k6 = jax.random.split(key, 6)

    # --- Primary: small shapes consistent with the module (N=2, C=4, 16x16).
    N, C, H, W = 2, 4, 16, 16
    fan_in = C * 9
    bound = 1.0 / (fan_in ** 0.5)
    x = jax.random.normal(k1, (N, C, H, W), dtype=jnp.float32)
    weight = jax.random.uniform(k2, (C, C, 3, 3), jnp.float32, -bound, bound)
    bias = jax.random.uniform(k3, (C,), jnp.float32, -bound, bound)

    out = jax.block_until_ready(upsample_forward(x, weight, bias))
    ref = jax.block_until_ready(_reference(x, weight, bias))
    assert out.shape == (N, C, 2 * H, 2 * W), out.shape
    assert jnp.allclose(out, ref, atol=1e-4, rtol=1e-4), \
        float(jnp.max(jnp.abs(out - ref)))

    # --- Secondary: exercises the halo DMA pipeline across several row tiles,
    # H padding (H=13, th=5), and multiple output-channel grid blocks (Cp=256).
    N2, C2, H2, W2 = 1, 136, 13, 16
    fan_in2 = C2 * 9
    bound2 = 1.0 / (fan_in2 ** 0.5)
    x2 = jax.random.normal(k4, (N2, C2, H2, W2), dtype=jnp.float32)
    w2 = jax.random.uniform(k5, (C2, C2, 3, 3), jnp.float32, -bound2, bound2)
    b2 = jax.random.uniform(k6, (C2,), jnp.float32, -bound2, bound2)

    out2 = jax.block_until_ready(
        upsample_forward(x2, w2, b2, tile_rows=5, cout_block=128))
    ref2 = jax.block_until_ready(_reference(x2, w2, b2))
    assert out2.shape == (N2, C2, 2 * H2, 2 * W2), out2.shape
    assert jnp.allclose(out2, ref2, atol=1e-4, rtol=1e-4), \
        float(jnp.max(jnp.abs(out2 - ref2)))

    print("KERNEL_OK")
</pallas_src>

<mosaic_0001>
module attributes {stable_mosaic.version = 11 : i64} {
  func.func @_upsample_conv_kernel(%arg0: i32, %arg1: i32, %arg2: i32, %arg3: memref<36x18x128xf32, #tpu.memory_space<any>>, %arg4: memref<16x128x128xf32, #tpu.memory_space<vmem>>, %arg5: memref<1x128xf32, #tpu.memory_space<vmem>>, %arg6: memref<16x2x2x16x128xf32, #tpu.memory_space<vmem>>, %arg7: memref<2x18x18x128xf32, #tpu.memory_space<vmem>>, %arg8: memref<2x!tpu.dma_semaphore, #tpu.memory_space<semaphore_mem>>) attributes {dimension_semantics = [#tpu.dimension_semantics<parallel>, #tpu.dimension_semantics<parallel>, #tpu.dimension_semantics<arbitrary>], iteration_bounds = array<i64: 1, 2, 1>, scalar_prefetch = 0 : i64, scratch_operands = 2 : i64, tpu.core_type = #tpu.core_type<tc>, window_params = [{}, {transform_indices = @transform_1, window_bounds = array<i64: 16, 128, 128>}, {transform_indices = @transform_2, window_bounds = array<i64: 1, 128>}, {transform_indices = @transform_3, window_bounds = array<i64: 16, 2, 2, 16, 128>}]} {
    %c0_i32 = arith.constant 0 : i32
    %0 = arith.cmpi eq, %arg2, %c0_i32 : i32
    %1 = arith.extui %0 : i1 to i32
    %c0_i32_0 = arith.constant 0 : i32
    %2 = arith.cmpi ne, %1, %c0_i32_0 : i32
    scf.if %2 {
      %c18_i32 = arith.constant 18 : i32
      %135 = arith.muli %arg1, %c18_i32 : i32
      %c0_i32_92 = arith.constant 0 : i32
      %136 = arith.addi %135, %c0_i32_92 : i32
      %c0_i32_93 = arith.constant 0 : i32
      %c0_i32_94 = arith.constant 0 : i32
      %c0_i32_95 = arith.constant 0 : i32
      %c0_i32_96 = arith.constant 0 : i32
      %137 = tpu.memref_slice %arg3[%136, %c0_i32_95, %c0_i32_96] : memref<36x18x128xf32, #tpu.memory_space<any>> -> memref<18x18x128xf32, #tpu.memory_space<any>>
      %c0_i32_97 = arith.constant 0 : i32
      %c0_i32_98 = arith.constant 0 : i32
      %c0_i32_99 = arith.constant 0 : i32
      %138 = tpu.memref_slice %arg7[%c0_i32_93, %c0_i32_97, %c0_i32_98, %c0_i32_99] : memref<2x18x18x128xf32, #tpu.memory_space<vmem>> -> memref<1x18x18x128xf32, #tpu.memory_space<vmem>>
      %139 = tpu.memref_squeeze %138 : memref<1x18x18x128xf32, #tpu.memory_space<vmem>> -> memref<18x18x128xf32, #tpu.memory_space<vmem>>
      %140 = tpu.memref_slice %arg8[%c0_i32_94] : memref<2x!tpu.dma_semaphore, #tpu.memory_space<semaphore_mem>> -> memref<1x!tpu.dma_semaphore, #tpu.memory_space<semaphore_mem>>
      %141 = tpu.memref_squeeze %140 : memref<1x!tpu.dma_semaphore, #tpu.memory_space<semaphore_mem>> -> memref<!tpu.dma_semaphore, #tpu.memory_space<semaphore_mem>>
      tpu.enqueue_dma source(%137 : memref<18x18x128xf32, #tpu.memory_space<any>>) target(%139 : memref<18x18x128xf32, #tpu.memory_space<vmem>>) target_semaphore(%141 : memref<!tpu.dma_semaphore, #tpu.memory_space<semaphore_mem>>)
    } else {
    }
    %c2_i32 = arith.constant 2 : i32
    %c0_i32_1 = arith.constant 0 : i32
    %3 = arith.cmpi eq, %c2_i32, %c0_i32_1 : i32
    %c1_i32 = arith.constant 1 : i32
    %4 = arith.select %3, %c1_i32, %c2_i32 : i32
    %5 = arith.remsi %arg2, %4 : i32
    %c0_i32_2 = arith.constant 0 : i32
    %6 = arith.cmpi ne, %5, %c0_i32_2 : i32
    %c0_i32_3 = arith.constant 0 : i32
    %7 = arith.cmpi slt, %5, %c0_i32_3 : i32
    %c0_i32_4 = arith.constant 0 : i32
    %8 = arith.cmpi slt, %4, %c0_i32_4 : i32
    %9 = arith.xori %7, %8 : i1
    %10 = arith.andi %9, %6 : i1
    %11 = arith.addi %5, %4 : i32
    %12 = arith.select %10, %11, %5 : i32
    %c0_i32_5 = arith.constant 0 : i32
    %c0_i32_6 = arith.constant 0 : i32
    %c0_i32_7 = arith.constant 0 : i32
    %13 = tpu.memref_slice %arg3[%c0_i32_5, %c0_i32_6, %c0_i32_7] : memref<36x18x128xf32, #tpu.memory_space<any>> -> memref<18x18x128xf32, #tpu.memory_space<any>>
    %c0_i32_8 = arith.constant 0 : i32
    %c0_i32_9 = arith.constant 0 : i32
    %c0_i32_10 = arith.constant 0 : i32
    %14 = tpu.memref_slice %arg7[%12, %c0_i32_8, %c0_i32_9, %c0_i32_10] : memref<2x18x18x128xf32, #tpu.memory_space<vmem>> -> memref<1x18x18x128xf32, #tpu.memory_space<vmem>>
    %15 = tpu.memref_squeeze %14 : memref<1x18x18x128xf32, #tpu.memory_space<vmem>> -> memref<18x18x128xf32, #tpu.memory_space<vmem>>
    %16 = tpu.memref_slice %arg8[%12] : memref<2x!tpu.dma_semaphore, #tpu.memory_space<semaphore_mem>> -> memref<1x!tpu.dma_semaphore, #tpu.memory_space<semaphore_mem>>
    %17 = tpu.memref_squeeze %16 : memref<1x!tpu.dma_semaphore, #tpu.memory_space<semaphore_mem>> -> memref<!tpu.dma_semaphore, #tpu.memory_space<semaphore_mem>>
    tpu.wait_dma2 semaphore(%17 : memref<!tpu.dma_semaphore, #tpu.memory_space<semaphore_mem>>) src(%13 : memref<18x18x128xf32, #tpu.memory_space<any>>) dst(%15 : memref<18x18x128xf32, #tpu.memory_space<vmem>>)
    %c1_i32_11 = arith.constant 1 : i32
    %18 = arith.addi %arg2, %c1_i32_11 : i32
    %c1_i32_12 = arith.constant 1 : i32
    %19 = arith.cmpi slt, %18, %c1_i32_12 : i32
    %20 = arith.extui %19 : i1 to i32
    %c0_i32_13 = arith.constant 0 : i32
    %21 = arith.cmpi ne, %20, %c0_i32_13 : i32
    scf.if %21 {
      %c1_i32_92 = arith.constant 1 : i32
      %135 = arith.addi %arg2, %c1_i32_92 : i32
      %c1_i32_93 = arith.constant 1 : i32
      %136 = arith.subi %c1_i32_93, %12 : i32
      %c18_i32 = arith.constant 18 : i32
      %137 = arith.muli %arg1, %c18_i32 : i32
      %c16_i32 = arith.constant 16 : i32
      %138 = arith.muli %135, %c16_i32 : i32
      %139 = arith.addi %137, %138 : i32
      %c0_i32_94 = arith.constant 0 : i32
      %c0_i32_95 = arith.constant 0 : i32
      %140 = tpu.memref_slice %arg3[%139, %c0_i32_94, %c0_i32_95] : memref<36x18x128xf32, #tpu.memory_space<any>> -> memref<18x18x128xf32, #tpu.memory_space<any>>
      %c0_i32_96 = arith.constant 0 : i32
      %c0_i32_97 = arith.constant 0 : i32
      %c0_i32_98 = arith.constant 0 : i32
      %141 = tpu.memref_slice %arg7[%136, %c0_i32_96, %c0_i32_97, %c0_i32_98] : memref<2x18x18x128xf32, #tpu.memory_space<vmem>> -> memref<1x18x18x128xf32, #tpu.memory_space<vmem>>
      %142 = tpu.memref_squeeze %141 : memref<1x18x18x128xf32, #tpu.memory_space<vmem>> -> memref<18x18x128xf32, #tpu.memory_space<vmem>>
      %143 = tpu.memref_slice %arg8[%136] : memref<2x!tpu.dma_semaphore, #tpu.memory_space<semaphore_mem>> -> memref<1x!tpu.dma_semaphore, #tpu.memory_space<semaphore_mem>>
      %144 = tpu.memref_squeeze %143 : memref<1x!tpu.dma_semaphore, #tpu.memory_space<semaphore_mem>> -> memref<!tpu.dma_semaphore, #tpu.memory_space<semaphore_mem>>
      tpu.enqueue_dma source(%140 : memref<18x18x128xf32, #tpu.memory_space<any>>) target(%142 : memref<18x18x128xf32, #tpu.memory_space<vmem>>) target_semaphore(%144 : memref<!tpu.dma_semaphore, #tpu.memory_space<semaphore_mem>>)
    } else {
    }
    %22 = arith.index_cast %12 : i32 to index
    %c0 = arith.constant 0 : index
    %c0_14 = arith.constant 0 : index
    %c0_15 = arith.constant 0 : index
    %23 = vector.load %arg7[%22, %c0, %c0_14, %c0_15] : memref<2x18x18x128xf32, #tpu.memory_space<vmem>>, vector<1x18x16x128xf32>
    %24 = vector.shape_cast %23 : vector<1x18x16x128xf32> to vector<18x16x128xf32>
    %25 = vector.shape_cast %24 : vector<18x16x128xf32> to vector<288x128xf32>
    %26 = arith.index_cast %12 : i32 to index
    %c0_16 = arith.constant 0 : index
    %c1 = arith.constant 1 : index
    %c0_17 = arith.constant 0 : index
    %27 = vector.load %arg7[%26, %c0_16, %c1, %c0_17] : memref<2x18x18x128xf32, #tpu.memory_space<vmem>>, vector<1x18x16x128xf32>
    %28 = vector.shape_cast %27 : vector<1x18x16x128xf32> to vector<18x16x128xf32>
    %29 = vector.shape_cast %28 : vector<18x16x128xf32> to vector<288x128xf32>
    %30 = arith.index_cast %12 : i32 to index
    %c0_18 = arith.constant 0 : index
    %c2 = arith.constant 2 : index
    %c0_19 = arith.constant 0 : index
    %31 = vector.load %arg7[%30, %c0_18, %c2, %c0_19] : memref<2x18x18x128xf32, #tpu.memory_space<vmem>>, vector<1x18x16x128xf32>
    %32 = vector.shape_cast %31 : vector<1x18x16x128xf32> to vector<18x16x128xf32>
    %33 = vector.shape_cast %32 : vector<18x16x128xf32> to vector<288x128xf32>
    %c0_20 = arith.constant 0 : index
    %c0_21 = arith.constant 0 : index
    %34 = vector.load %arg5[%c0_20, %c0_21] : memref<1x128xf32, #tpu.memory_space<vmem>>, vector<1x128xf32>
    %35 = vector.extract_strided_slice %25 {offsets = [0, 0], sizes = [256, 128], strides = [1, 1]} : vector<288x128xf32> to vector<256x128xf32>
    %c0_22 = arith.constant 0 : index
    %c0_23 = arith.constant 0 : index
    %c0_24 = arith.constant 0 : index
    %36 = vector.load %arg4[%c0_22, %c0_23, %c0_24] : memref<16x128x128xf32, #tpu.memory_space<vmem>>, vector<1x128x128xf32>
    %37 = vector.shape_cast %36 : vector<1x128x128xf32> to vector<128x128xf32>
    %cst = arith.constant dense<0.000000e+00> : vector<256x128xf32>
    %38 = tpu.matmul %35, %37, %cst {dimension_numbers = #tpu.dot_dimension_numbers<[1], [0], [0], [1], [0, 0, 1, 1], [], []>} : vector<256x128xf32>, vector<128x128xf32>, vector<256x128xf32> -> vector<256x128xf32>
    %39 = vector.extract_strided_slice %29 {offsets = [0, 0], sizes = [256, 128], strides = [1, 1]} : vector<288x128xf32> to vector<256x128xf32>
    %c1_25 = arith.constant 1 : index
    %c0_26 = arith.constant 0 : index
    %c0_27 = arith.constant 0 : index
    %40 = vector.load %arg4[%c1_25, %c0_26, %c0_27] : memref<16x128x128xf32, #tpu.memory_space<vmem>>, vector<1x128x128xf32>
    %41 = vector.shape_cast %40 : vector<1x128x128xf32> to vector<128x128xf32>
    %cst_28 = arith.constant dense<0.000000e+00> : vector<256x128xf32>
    %42 = tpu.matmul %39, %41, %cst_28 {dimension_numbers = #tpu.dot_dimension_numbers<[1], [0], [0], [1], [0, 0, 1, 1], [], []>} : vector<256x128xf32>, vector<128x128xf32>, vector<256x128xf32> -> vector<256x128xf32>
    %43 = arith.addf %38, %42 : vector<256x128xf32>
    %44 = vector.extract_strided_slice %25 {offsets = [16, 0], sizes = [256, 128], strides = [1, 1]} : vector<288x128xf32> to vector<256x128xf32>
    %c2_29 = arith.constant 2 : index
    %c0_30 = arith.constant 0 : index
    %c0_31 = arith.constant 0 : index
    %45 = vector.load %arg4[%c2_29, %c0_30, %c0_31] : memref<16x128x128xf32, #tpu.memory_space<vmem>>, vector<1x128x128xf32>
    %46 = vector.shape_cast %45 : vector<1x128x128xf32> to vector<128x128xf32>
    %cst_32 = arith.constant dense<0.000000e+00> : vector<256x128xf32>
    %47 = tpu.matmul %44, %46, %cst_32 {dimension_numbers = #tpu.dot_dimension_numbers<[1], [0], [0], [1], [0, 0, 1, 1], [], []>} : vector<256x128xf32>, vector<128x128xf32>, vector<256x128xf32> -> vector<256x128xf32>
    %48 = arith.addf %43, %47 : vector<256x128xf32>
    %49 = vector.extract_strided_slice %29 {offsets = [16, 0], sizes = [256, 128], strides = [1, 1]} : vector<288x128xf32> to vector<256x128xf32>
    %c3 = arith.constant 3 : index
    %c0_33 = arith.constant 0 : index
    %c0_34 = arith.constant 0 : index
    %50 = vector.load %arg4[%c3, %c0_33, %c0_34] : memref<16x128x128xf32, #tpu.memory_space<vmem>>, vector<1x128x128xf32>
    %51 = vector.shape_cast %50 : vector<1x128x128xf32> to vector<128x128xf32>
    %cst_35 = arith.constant dense<0.000000e+00> : vector<256x128xf32>
    %52 = tpu.matmul %49, %51, %cst_35 {dimension_numbers = #tpu.dot_dimension_numbers<[1], [0], [0], [1], [0, 0, 1, 1], [], []>} : vector<256x128xf32>, vector<128x128xf32>, vector<256x128xf32> -> vector<256x128xf32>
    %53 = arith.addf %48, %52 : vector<256x128xf32>
    %54 = vector.broadcast %34 : vector<1x128xf32> to vector<256x128xf32>
    %55 = arith.addf %53, %54 : vector<256x128xf32>
    %56 = vector.shape_cast %55 : vector<256x128xf32> to vector<16x16x128xf32>
    %c0_36 = arith.constant 0 : index
    %c0_37 = arith.constant 0 : index
    %c0_38 = arith.constant 0 : index
    %c0_39 = arith.constant 0 : index
    %c0_40 = arith.constant 0 : index
    %57 = vector.load %arg6[%c0_36, %c0_37, %c0_38, %c0_39, %c0_40] : memref<16x2x2x16x128xf32, #tpu.memory_space<vmem>>, vector<16x1x1x16x128xf32>
    %58 = vector.shape_cast %57 : vector<16x1x1x16x128xf32> to vector<16x16x128xf32>
    %59 = vector.shape_cast %56 : vector<16x16x128xf32> to vector<16x1x1x16x128xf32>
    tpu.vector_store %arg6[%c0_36, %c0_37, %c0_38, %c0_39, %c0_40], %59 {strides = array<i32>} : memref<16x2x2x16x128xf32, #tpu.memory_space<vmem>>, vector<16x1x1x16x128xf32>,
    %60 = vector.extract_strided_slice %29 {offsets = [0, 0], sizes = [256, 128], strides = [1, 1]} : vector<288x128xf32> to vector<256x128xf32>
    %c4 = arith.constant 4 : index
    %c0_41 = arith.constant 0 : index
    %c0_42 = arith.constant 0 : index
    %61 = vector.load %arg4[%c4, %c0_41, %c0_42] : memref<16x128x128xf32, #tpu.memory_space<vmem>>, vector<1x128x128xf32>
    %62 = vector.shape_cast %61 : vector<1x128x128xf32> to vector<128x128xf32>
    %cst_43 = arith.constant dense<0.000000e+00> : vector<256x128xf32>
    %63 = tpu.matmul %60, %62, %cst_43 {dimension_numbers = #tpu.dot_dimension_numbers<[1], [0], [0], [1], [0, 0, 1, 1], [], []>} : vector<256x128xf32>, vector<128x128xf32>, vector<256x128xf32> -> vector<256x128xf32>
    %64 = vector.extract_strided_slice %33 {offsets = [0, 0], sizes = [256, 128], strides = [1, 1]} : vector<288x128xf32> to vector<256x128xf32>
    %c5 = arith.constant 5 : index
    %c0_44 = arith.constant 0 : index
    %c0_45 = arith.constant 0 : index
    %65 = vector.load %arg4[%c5, %c0_44, %c0_45] : memref<16x128x128xf32, #tpu.memory_space<vmem>>, vector<1x128x128xf32>
    %66 = vector.shape_cast %65 : vector<1x128x128xf32> to vector<128x128xf32>
    %cst_46 = arith.constant dense<0.000000e+00> : vector<256x128xf32>
    %67 = tpu.matmul %64, %66, %cst_46 {dimension_numbers = #tpu.dot_dimension_numbers<[1], [0], [0], [1], [0, 0, 1, 1], [], []>} : vector<256x128xf32>, vector<128x128xf32>, vector<256x128xf32> -> vector<256x128xf32>
    %68 = arith.addf %63, %67 : vector<256x128xf32>
    %69 = vector.extract_strided_slice %29 {offsets = [16, 0], sizes = [256, 128], strides = [1, 1]} : vector<288x128xf32> to vector<256x128xf32>
    %c6 = arith.constant 6 : index
    %c0_47 = arith.constant 0 : index
    %c0_48 = arith.constant 0 : index
    %70 = vector.load %arg4[%c6, %c0_47, %c0_48] : memref<16x128x128xf32, #tpu.memory_space<vmem>>, vector<1x128x128xf32>
    %71 = vector.shape_cast %70 : vector<1x128x128xf32> to vector<128x128xf32>
    %cst_49 = arith.constant dense<0.000000e+00> : vector<256x128xf32>
    %72 = tpu.matmul %69, %71, %cst_49 {dimension_numbers = #tpu.dot_dimension_numbers<[1], [0], [0], [1], [0, 0, 1, 1], [], []>} : vector<256x128xf32>, vector<128x128xf32>, vector<256x128xf32> -> vector<256x128xf32>
    %73 = arith.addf %68, %72 : vector<256x128xf32>
    %74 = vector.extract_strided_slice %33 {offsets = [16, 0], sizes = [256, 128], strides = [1, 1]} : vector<288x128xf32> to vector<256x128xf32>
    %c7 = arith.constant 7 : index
    %c0_50 = arith.constant 0 : index
    %c0_51 = arith.constant 0 : index
    %75 = vector.load %arg4[%c7, %c0_50, %c0_51] : memref<16x128x128xf32, #tpu.memory_space<vmem>>, vector<1x128x128xf32>
    %76 = vector.shape_cast %75 : vector<1x128x128xf32> to vector<128x128xf32>
    %cst_52 = arith.constant dense<0.000000e+00> : vector<256x128xf32>
    %77 = tpu.matmul %74, %76, %cst_52 {dimension_numbers = #tpu.dot_dimension_numbers<[1], [0], [0], [1], [0, 0, 1, 1], [], []>} : vector<256x128xf32>, vector<128x128xf32>, vector<256x128xf32> -> vector<256x128xf32>
    %78 = arith.addf %73, %77 : vector<256x128xf32>
    %79 = vector.broadcast %34 : vector<1x128xf32> to vector<256x128xf32>
    %80 = arith.addf %78, %79 : vector<256x128xf32>
    %81 = vector.shape_cast %80 : vector<256x128xf32> to vector<16x16x128xf32>
    %c0_53 = arith.constant 0 : index
    %c0_54 = arith.constant 0 : index
    %c1_55 = arith.constant 1 : index
    %c0_56 = arith.constant 0 : index
    %c0_57 = arith.constant 0 : index
    %82 = vector.load %arg6[%c0_53, %c0_54, %c1_55, %c0_56, %c0_57] : memref<16x2x2x16x128xf32, #tpu.memory_space<vmem>>, vector<16x1x1x16x128xf32>
    %83 = vector.shape_cast %82 : vector<16x1x1x16x128xf32> to vector<16x16x128xf32>
    %84 = vector.shape_cast %81 : vector<16x16x128xf32> to vector<16x1x1x16x128xf32>
    tpu.vector_store %arg6[%c0_53, %c0_54, %c1_55, %c0_56, %c0_57], %84 {strides = array<i32>} : memref<16x2x2x16x128xf32, #tpu.memory_space<vmem>>, vector<16x1x1x16x128xf32>,
    %85 = vector.extract_strided_slice %25 {offsets = [16, 0], sizes = [256, 128], strides = [1, 1]} : vector<288x128xf32> to vector<256x128xf32>
    %c8 = arith.constant 8 : index
    %c0_58 = arith.constant 0 : index
    %c0_59 = arith.constant 0 : index
    %86 = vector.load %arg4[%c8, %c0_58, %c0_59] : memref<16x128x128xf32, #tpu.memory_space<vmem>>, vector<1x128x128xf32>
    %87 = vector.shape_cast %86 : vector<1x128x128xf32> to vector<128x128xf32>
    %cst_60 = arith.constant dense<0.000000e+00> : vector<256x128xf32>
    %88 = tpu.matmul %85, %87, %cst_60 {dimension_numbers = #tpu.dot_dimension_numbers<[1], [0], [0], [1], [0, 0, 1, 1], [], []>} : vector<256x128xf32>, vector<128x128xf32>, vector<256x128xf32> -> vector<256x128xf32>
    %89 = vector.extract_strided_slice %29 {offsets = [16, 0], sizes = [256, 128], strides = [1, 1]} : vector<288x128xf32> to vector<256x128xf32>
    %c9 = arith.constant 9 : index
    %c0_61 = arith.constant 0 : index
    %c0_62 = arith.constant 0 : index
    %90 = vector.load %arg4[%c9, %c0_61, %c0_62] : memref<16x128x128xf32, #tpu.memory_space<vmem>>, vector<1x128x128xf32>
    %91 = vector.shape_cast %90 : vector<1x128x128xf32> to vector<128x128xf32>
    %cst_63 = arith.constant dense<0.000000e+00> : vector<256x128xf32>
    %92 = tpu.matmul %89, %91, %cst_63 {dimension_numbers = #tpu.dot_dimension_numbers<[1], [0], [0], [1], [0, 0, 1, 1], [], []>} : vector<256x128xf32>, vector<128x128xf32>, vector<256x128xf32> -> vector<256x128xf32>
    %93 = arith.addf %88, %92 : vector<256x128xf32>
    %94 = vector.extract_strided_slice %25 {offsets = [32, 0], sizes = [256, 128], strides = [1, 1]} : vector<288x128xf32> to vector<256x128xf32>
    %c10 = arith.constant 10 : index
    %c0_64 = arith.constant 0 : index
    %c0_65 = arith.constant 0 : index
    %95 = vector.load %arg4[%c10, %c0_64, %c0_65] : memref<16x128x128xf32, #tpu.memory_space<vmem>>, vector<1x128x128xf32>
    %96 = vector.shape_cast %95 : vector<1x128x128xf32> to vector<128x128xf32>
    %cst_66 = arith.constant dense<0.000000e+00> : vector<256x128xf32>
    %97 = tpu.matmul %94, %96, %cst_66 {dimension_numbers = #tpu.dot_dimension_numbers<[1], [0], [0], [1], [0, 0, 1, 1], [], []>} : vector<256x128xf32>, vector<128x128xf32>, vector<256x128xf32> -> vector<256x128xf32>
    %98 = arith.addf %93, %97 : vector<256x128xf32>
    %99 = vector.extract_strided_slice %29 {offsets = [32, 0], sizes = [256, 128], strides = [1, 1]} : vector<288x128xf32> to vector<256x128xf32>
    %c11 = arith.constant 11 : index
    %c0_67 = arith.constant 0 : index
    %c0_68 = arith.constant 0 : index
    %100 = vector.load %arg4[%c11, %c0_67, %c0_68] : memref<16x128x128xf32, #tpu.memory_space<vmem>>, vector<1x128x128xf32>
    %101 = vector.shape_cast %100 : vector<1x128x128xf32> to vector<128x128xf32>
    %cst_69 = arith.constant dense<0.000000e+00> : vector<256x128xf32>
    %102 = tpu.matmul %99, %101, %cst_69 {dimension_numbers = #tpu.dot_dimension_numbers<[1], [0], [0], [1], [0, 0, 1, 1], [], []>} : vector<256x128xf32>, vector<128x128xf32>, vector<256x128xf32> -> vector<256x128xf32>
    %103 = arith.addf %98, %102 : vector<256x128xf32>
    %104 = vector.broadcast %34 : vector<1x128xf32> to vector<256x128xf32>
    %105 = arith.addf %103, %104 : vector<256x128xf32>
    %106 = vector.shape_cast %105 : vector<256x128xf32> to vector<16x16x128xf32>
    %c0_70 = arith.constant 0 : index
    %c1_71 = arith.constant 1 : index
    %c0_72 = arith.constant 0 : index
    %c0_73 = arith.constant 0 : index
    %c0_74 = arith.constant 0 : index
    %107 = vector.load %arg6[%c0_70, %c1_71, %c0_72, %c0_73, %c0_74] : memref<16x2x2x16x128xf32, #tpu.memory_space<vmem>>, vector<16x1x1x16x128xf32>
    %108 = vector.shape_cast %107 : vector<16x1x1x16x128xf32> to vector<16x16x128xf32>
    %109 = vector.shape_cast %106 : vector<16x16x128xf32> to vector<16x1x1x16x128xf32>
    tpu.vector_store %arg6[%c0_70, %c1_71, %c0_72, %c0_73, %c0_74], %109 {strides = array<i32>} : memref<16x2x2x16x128xf32, #tpu.memory_space<vmem>>, vector<16x1x1x16x128xf32>,
    %110 = vector.extract_strided_slice %29 {offsets = [16, 0], sizes = [256, 128], strides = [1, 1]} : vector<288x128xf32> to vector<256x128xf32>
    %c12 = arith.constant 12 : index
    %c0_75 = arith.constant 0 : index
    %c0_76 = arith.constant 0 : index
    %111 = vector.load %arg4[%c12, %c0_75, %c0_76] : memref<16x128x128xf32, #tpu.memory_space<vmem>>, vector<1x128x128xf32>
    %112 = vector.shape_cast %111 : vector<1x128x128xf32> to vector<128x128xf32>
    %cst_77 = arith.constant dense<0.000000e+00> : vector<256x128xf32>
    %113 = tpu.matmul %110, %112, %cst_77 {dimension_numbers = #tpu.dot_dimension_numbers<[1], [0], [0], [1], [0, 0, 1, 1], [], []>} : vector<256x128xf32>, vector<128x128xf32>, vector<256x128xf32> -> vector<256x128xf32>
    %114 = vector.extract_strided_slice %33 {offsets = [16, 0], sizes = [256, 128], strides = [1, 1]} : vector<288x128xf32> to vector<256x128xf32>
    %c13 = arith.constant 13 : index
    %c0_78 = arith.constant 0 : index
    %c0_79 = arith.constant 0 : index
    %115 = vector.load %arg4[%c13, %c0_78, %c0_79] : memref<16x128x128xf32, #tpu.memory_space<vmem>>, vector<1x128x128xf32>
    %116 = vector.shape_cast %115 : vector<1x128x128xf32> to vector<128x128xf32>
    %cst_80 = arith.constant dense<0.000000e+00> : vector<256x128xf32>
    %117 = tpu.matmul %114, %116, %cst_80 {dimension_numbers = #tpu.dot_dimension_numbers<[1], [0], [0], [1], [0, 0, 1, 1], [], []>} : vector<256x128xf32>, vector<128x128xf32>, vector<256x128xf32> -> vector<256x128xf32>
    %118 = arith.addf %113, %117 : vector<256x128xf32>
    %119 = vector.extract_strided_slice %29 {offsets = [32, 0], sizes = [256, 128], strides = [1, 1]} : vector<288x128xf32> to vector<256x128xf32>
    %c14 = arith.constant 14 : index
    %c0_81 = arith.constant 0 : index
    %c0_82 = arith.constant 0 : index
    %120 = vector.load %arg4[%c14, %c0_81, %c0_82] : memref<16x128x128xf32, #tpu.memory_space<vmem>>, vector<1x128x128xf32>
    %121 = vector.shape_cast %120 : vector<1x128x128xf32> to vector<128x128xf32>
    %cst_83 = arith.constant dense<0.000000e+00> : vector<256x128xf32>
    %122 = tpu.matmul %119, %121, %cst_83 {dimension_numbers = #tpu.dot_dimension_numbers<[1], [0], [0], [1], [0, 0, 1, 1], [], []>} : vector<256x128xf32>, vector<128x128xf32>, vector<256x128xf32> -> vector<256x128xf32>
    %123 = arith.addf %118, %122 : vector<256x128xf32>
    %124 = vector.extract_strided_slice %33 {offsets = [32, 0], sizes = [256, 128], strides = [1, 1]} : vector<288x128xf32> to vector<256x128xf32>
    %c15 = arith.constant 15 : index
    %c0_84 = arith.constant 0 : index
    %c0_85 = arith.constant 0 : index
    %125 = vector.load %arg4[%c15, %c0_84, %c0_85] : memref<16x128x128xf32, #tpu.memory_space<vmem>>, vector<1x128x128xf32>
    %126 = vector.shape_cast %125 : vector<1x128x128xf32> to vector<128x128xf32>
    %cst_86 = arith.constant dense<0.000000e+00> : vector<256x128xf32>
    %127 = tpu.matmul %124, %126, %cst_86 {dimension_numbers = #tpu.dot_dimension_numbers<[1], [0], [0], [1], [0, 0, 1, 1], [], []>} : vector<256x128xf32>, vector<128x128xf32>, vector<256x128xf32> -> vector<256x128xf32>
    %128 = arith.addf %123, %127 : vector<256x128xf32>
    %129 = vector.broadcast %34 : vector<1x128xf32> to vector<256x128xf32>
    %130 = arith.addf %128, %129 : vector<256x128xf32>
    %131 = vector.shape_cast %130 : vector<256x128xf32> to vector<16x16x128xf32>
    %c0_87 = arith.constant 0 : index
    %c1_88 = arith.constant 1 : index
    %c1_89 = arith.constant 1 : index
    %c0_90 = arith.constant 0 : index
    %c0_91 = arith.constant 0 : index
    %132 = vector.load %arg6[%c0_87, %c1_88, %c1_89, %c0_90, %c0_91] : memref<16x2x2x16x128xf32, #tpu.memory_space<vmem>>, vector<16x1x1x16x128xf32>
    %133 = vector.shape_cast %132 : vector<16x1x1x16x128xf32> to vector<16x16x128xf32>
    %134 = vector.shape_cast %131 : vector<16x16x128xf32> to vector<16x1x1x16x128xf32>
    tpu.vector_store %arg6[%c0_87, %c1_88, %c1_89, %c0_90, %c0_91], %134 {strides = array<i32>} : memref<16x2x2x16x128xf32, #tpu.memory_space<vmem>>, vector<16x1x1x16x128xf32>,
    return
  }
  func.func @transform_1(%arg0: i32, %arg1: i32, %arg2: i32) -> (i32, i32, i32) {
    %c0_i32 = arith.constant 0 : i32
    %c0_i32_0 = arith.constant 0 : i32
    %c0_i32_1 = arith.constant 0 : i32
    return %c0_i32, %c0_i32_0, %arg0 : i32, i32, i32
  }
  func.func @transform_2(%arg0: i32, %arg1: i32, %arg2: i32) -> (i32, i32) {
    %c0_i32 = arith.constant 0 : i32
    %c0_i32_0 = arith.constant 0 : i32
    return %c0_i32, %arg0 : i32, i32
  }
  func.func @transform_3(%arg0: i32, %arg1: i32, %arg2: i32) -> (i32, i32, i32, i32, i32) {
    %c1_i32 = arith.constant 1 : i32
    %0 = arith.muli %arg1, %c1_i32 : i32
    %1 = arith.addi %0, %arg2 : i32
    %c0_i32 = arith.constant 0 : i32
    %c0_i32_0 = arith.constant 0 : i32
    %c0_i32_1 = arith.constant 0 : i32
    %c0_i32_2 = arith.constant 0 : i32
    return %1, %c0_i32, %c0_i32_0, %c0_i32_1, %arg0 : i32, i32, i32, i32, i32
  }
}

</mosaic_0001>

<llo_original>
// kernel: upsample_forward.1
$region0: #{upsample_forward.1}
  #allocation0 [shape = 'u32[]', space=smem, size = 0x4, offset = 0x4, fixed_abs, tag = 'smem constant byte address 0x4 - core index']
  #allocation1 [shape = 'u32[144,128]{1,0:T(1,128)}', space=vmem, size = 0x12000, scoped, tag = 'internal scratch']
  #allocation2 [shape = 'f32[2,18,18,128]{3,2,1,0:T(8,128)}', space=vmem, size = 0x6c000, scoped, tag = 'scratch operand']
  #allocation3 [shape = 's32[2]{0}', space=sflag, size = 0x8, scoped, tag = 'scratch operand']
  #allocation4 [shape = 's32[]', space=sflag, size = 0x4, offset = 0, fixed_abs, tag = 'sflag constant byte address 0x0 - dummy sync flag']
  #allocation5 [shape = 's32[]', space=sflag, size = 0x4, offset = 0, fixed_abs, tag = 'sflag constant byte address 0x0 - dummy sync flag']
  %s0 = inlined_call_operand.vmem [shape: f32[36,18,128], index: 0, kind: input, shape index: {}]
  %s1 = inlined_call_operand.vmem [shape: f32[16,128,128], index: 1, kind: input, shape index: {}]
  %s2 = inlined_call_operand.vmem [shape: f32[1,128], index: 2, kind: input, shape index: {}]
  %s3 = inlined_call_operand.vmem [shape: f32[32,2,2,16,128], index: 3, kind: output, shape index: {}]
  %s4 = sld [smem:[#allocation0]]
  $region123: #{upsample_forward.1} parent=0
    _
  %s6 = ssub.s32 1, %s4
  %s7 = scalar_select 0, %s6, %s4
  loop: start=0, step=1, limit=4
  $region2: #{upsample_forward.1} parent=0 // loop_pre_header
    _
  $region3: #{upsample_forward.1} parent=0 // loop_header
    %s9 = sphi 0, %s13
    %p10 = scmp.ge.s32.totalorder %s9, 4
    %s16 = sphi 0, %s35
    %s17 = sphi 0, %s31
    %s18 = sphi 0, %s27
    %s19 = sphi 0, %s16
    %s20 = sphi 0, %s17
    %s21 = sphi 0, %s18
    %s22 = sphi 0, %s19
    %s23 = sphi 0, %s20
    %s24 = sphi 0, %s21
    %s38 = sphi 0, %s40
    %s41 = sphi 0, %s38
    %s42 = sphi 0, %s41
    %s58 = sphi 0, %s42
    %s64 = sphi 0, %s66
    %s67 = sphi 0, %s64
    %s68 = sphi 0, %s67
    %s84 = sphi 0, %s68
    %s94 = sphi 0, %s96
    %s97 = sphi 0, %s94
    %s98 = sphi 0, %s97
    %s114 = sphi 0, %s98
  $region4: #{upsample_forward.1} parent=0 // loop_header_branch
    %12 = sbr.rel (%p10) target = $region8
  $region5: #{upsample_forward.1} parent=0 // loop_body
    %s14 = ssub.s32 %s9, 1
    %s15 = ssub.s32 %s9, 2
    %s25 = sadd.s32 1, %s18
    %p26 = scmp.ge.s32.totalorder %s25, 1
    %s27 = scalar_select %p26, 0, %s25
    %s28 = sadd.s32 1, %s17
    %s29 = scalar_select %p26, %s28, %s17
    %p30 = scmp.ge.s32.totalorder %s29, 2
    %s31 = scalar_select %p30, 0, %s29
    %s32 = sadd.s32 1, %s16
    %s33 = scalar_select %p30, %s32, %s16
    %p34 = scmp.ge.s32.totalorder %s33, 1
    %s35 = scalar_select %p34, 0, %s33
    %s36 = ssub.s32 %s16, %s35
    %p37 = scmp.eq.s32.totalorder %s36, 0
    %s39 = sadd.s32 %s38, 1
    %s40 = scalar_select %p37, %s38, %s39
    %p43 = pneg %p37
    %p44 = scmp.eq.s32.totalorder %s9, 1
    %p45 = por %p43, %p44
    %p46 = scmp.ne.s32.totalorder %s38, %s41
    %p47 = scmp.eq.s32.totalorder %s9, 0
    %p48 = por %p46, %p47
    %p49 = scmp.ne.s32.totalorder %s38, %s41
    %p50 = scmp.eq.s32.totalorder %s14, 1
    %p51 = por %p49, %p50
    %p52 = scmp.ne.s32.totalorder %s41, %s42
    %p53 = scmp.eq.s32.totalorder %s14, 0
    %p54 = por %p52, %p53
    %p55 = scmp.ne.s32.totalorder %s41, %s42
    %p56 = scmp.eq.s32.totalorder %s15, 1
    %p57 = por %p55, %p56
    %p59 = scmp.ne.s32.totalorder %s42, %s58
    %p60 = scmp.eq.s32.totalorder %s15, 0
    %p61 = por %p59, %p60
    %s62 = ssub.s32 %s16, %s35
    %p63 = scmp.eq.s32.totalorder %s62, 0
    %s65 = sadd.s32 %s64, 1
    %s66 = scalar_select %p63, %s64, %s65
    %p69 = pneg %p63
    %p70 = scmp.eq.s32.totalorder %s9, 1
    %p71 = por %p69, %p70
    %p72 = scmp.ne.s32.totalorder %s64, %s67
    %p73 = scmp.eq.s32.totalorder %s9, 0
    %p74 = por %p72, %p73
    %p75 = scmp.ne.s32.totalorder %s64, %s67
    %p76 = scmp.eq.s32.totalorder %s14, 1
    %p77 = por %p75, %p76
    %p78 = scmp.ne.s32.totalorder %s67, %s68
    %p79 = scmp.eq.s32.totalorder %s14, 0
    %p80 = por %p78, %p79
    %p81 = scmp.ne.s32.totalorder %s67, %s68
    %p82 = scmp.eq.s32.totalorder %s15, 1
    %p83 = por %p81, %p82
    %p85 = scmp.ne.s32.totalorder %s68, %s84
    %p86 = scmp.eq.s32.totalorder %s15, 0
    %p87 = por %p85, %p86
    %s88 = sadd.s32 %s17, %s18
    %s89 = sadd.s32 %s31, %s27
    %s90 = ssub.s32 %s88, %s89
    %s91 = ssub.s32 %s16, %s35
    %s92 = sor.u32 %s90, %s91
    %p93 = scmp.eq.s32.totalorder %s92, 0
    %s95 = sadd.s32 %s94, 1
    %s96 = scalar_select %p93, %s94, %s95
    %p99 = pneg %p93
    %p100 = scmp.eq.s32.totalorder %s9, 1
    %p101 = por %p99, %p100
    %p102 = scmp.ne.s32.totalorder %s94, %s97
    %p103 = scmp.eq.s32.totalorder %s9, 0
    %p104 = por %p102, %p103
    %p105 = scmp.ne.s32.totalorder %s94, %s97
    %p106 = scmp.eq.s32.totalorder %s14, 1
    %p107 = por %p105, %p106
    %p108 = scmp.ne.s32.totalorder %s97, %s98
    %p109 = scmp.eq.s32.totalorder %s14, 0
    %p110 = por %p108, %p109
    %p111 = scmp.ne.s32.totalorder %s97, %s98
    %p112 = scmp.eq.s32.totalorder %s15, 1
    %p113 = por %p111, %p112
    %p115 = scmp.ne.s32.totalorder %s98, %s114
    %p116 = scmp.eq.s32.totalorder %s15, 0
    %p117 = por %p115, %p116
    %p118 = scmp.le.s32.totalorder 1, %s9
    %p119 = scmp.lt.s32.totalorder %s9, 3
    %p120 = pnand %p118, %p119
    %p121 = pneg %p120
    // Predicated region
    $region9: #{upsample_forward.1} parent=5 // pred_check
      _
    $region10: #{upsample_forward.1} parent=5 // pred_check_branch
      %123 = sbr.rel (%p120) target = $region12
    $region11: #{upsample_forward.1} parent=5 // pred_region
      %s124 = ssub.s32 %s9, 1
      // Predicated region
      $region13: #{upsample_forward.1} parent=11 // pred_check
        %p125 = pneg %p54
      $region14: #{upsample_forward.1} parent=11 // pred_check_branch
        %127 = sbr.rel (%p125) target = $region16
      $region15: #{upsample_forward.1} parent=11 // pred_region
        %p128 = scmp.lt.s32.totalorder %s19, 0
        %s129 = scalar_select %p128, %s19, 0
        %s130 = smul.addr %s129, 8
        %s131 = scalar_lea.vmem %s1, %s130
      $region16: #{upsample_forward.1} parent=11 // pred_fallthru
        _
      // Predicated region
      $region17: #{upsample_forward.1} parent=11 // pred_check
        %p132 = pneg %p80
      $region18: #{upsample_forward.1} parent=11 // pred_check_branch
        %134 = sbr.rel (%p132) target = $region20
      $region19: #{upsample_forward.1} parent=11 // pred_region
        %p135 = scmp.lt.s32.totalorder %s19, 0
        %s136 = scalar_select %p135, %s19, 0
        %s137 = scalar_lea.vmem %s2, %s136
      $region20: #{upsample_forward.1} parent=11 // pred_fallthru
        _
    $region12: #{upsample_forward.1} parent=5 // pred_fallthru
      _
    %p138 = scmp.lt.s32.totalorder %s9, 2
    // Predicated region
    $region21: #{upsample_forward.1} parent=5 // pred_check
      %p139 = pneg %p138
    $region22: #{upsample_forward.1} parent=5 // pred_check_branch
      %141 = sbr.rel (%p139) target = $region24
    $region23: #{upsample_forward.1} parent=5 // pred_region
      _
    $region24: #{upsample_forward.1} parent=5 // pred_fallthru
      _
    %p142 = scmp.le.s32.totalorder 1, %s9
    %p143 = scmp.lt.s32.totalorder %s9, 3
    %p144 = pnand %p142, %p143
    %p145 = pneg %p144
    // Predicated region
    $region25: #{upsample_forward.1} parent=5 // pred_check
      _
    $region26: #{upsample_forward.1} parent=5 // pred_check_branch
      %147 = sbr.rel (%p144) target = $region28
    $region27: #{upsample_forward.1} parent=5 // pred_region
      %s148 = ssub.s32 %s9, 1
      %p149 = scmp.lt.s32.totalorder %s19, 0
      %s150 = scalar_select %p149, %s19, 0
      %s151 = smul.addr %s150, 8
      %s152 = scalar_lea.vmem %s1, %s151
      %p153 = pneg %p54
      %p154 = pneg %p51
      %p155 = scmp.lt.s32.totalorder %s19, 0
      %s156 = scalar_select %p155, %s19, 0
      %s157 = scalar_lea.vmem %s2, %s156
      %p158 = pneg %p80
      %p159 = pneg %p77
      %p160 = pneg %p110
      %p161 = pneg %p107
      %s162 = sadd.s32 %s20, %s21
      %s163 = smul.u32 16, %s162
      %p164 = scmp.lt.s32.totalorder %s163, 31
      %s165 = scalar_select %p164, %s163, 31
      %p166 = scmp.lt.s32.totalorder %s19, 0
      %s167 = scalar_select %p166, %s19, 0
      %s168 = smul.addr %s165, 8
      %s169 = sadd.s32 %s167, %s168
      %s170 = smul.addr %s169, 8
      %s171 = scalar_lea.vmem %s3, %s170
      %p172 = scmp.lt.s32.totalorder %s19, 0
      %s173 = scalar_select %p172, %s19, 0
      %s174 = smul.addr %s173, 8
      %s175 = scalar_lea.vmem %s1, %s174
      %p176 = scmp.lt.s32.totalorder %s19, 0
      %s177 = scalar_select %p176, %s19, 0
      %s178 = scalar_lea.vmem %s2, %s177
      %s179 = sadd.s32 %s20, %s21
      %s180 = smul.u32 16, %s179
      %p181 = scmp.lt.s32.totalorder %s180, 31
      %s182 = scalar_select %p181, %s180, 31
      %p183 = scmp.lt.s32.totalorder %s19, 0
      %s184 = scalar_select %p183, %s19, 0
      %s185 = smul.addr %s182, 8
      %s186 = sadd.s32 %s184, %s185
      %s187 = smul.addr %s186, 8
      %s188 = scalar_lea.vmem %s3, %s187
      %s189 = sadd.s32 %s20, %s21
      %s190 = smul.u32 16, %s189
      %p191 = scmp.eq.s32.totalorder %s21, 0
      // Predicated region
      $region29: #{upsample_forward.1} parent=27 // pred_check
        %p192 = pneg %p191
      $region30: #{upsample_forward.1} parent=27 // pred_check_branch
        %194 = sbr.rel (%p192) target = $region32
      $region31: #{upsample_forward.1} parent=27 // pred_region
        %s195 = smul.u32 %s20, 18
        %s196 = smul.u32 %s195, 24
        %s197 = scalar_lea.vmem %s0, %s196
        %p199 = scmp.lt.u32.totalorder 18, 8
        %p200 = pneg %p199
        // Predicated region
        $region33: #{upsample_forward.1} parent=31 // pred_check
          _
        $region34: #{upsample_forward.1} parent=31 // pred_check_branch
          %202 = sbr.rel (%p199) target = $region36
        $region35: #{upsample_forward.1} parent=31 // pred_region
          %s251 = sand.u32 18, 7
          %p252 = scmp.eq.s32.totalorder %s251, 0
          %p253 = pneg %p252
          // Predicated region
          $region48: #{upsample_forward.1} parent=35 // pred_check
            _
          $region49: #{upsample_forward.1} parent=35 // pred_check_branch
            %255 = sbr.rel (%p252) target = $region51
          $region50: #{upsample_forward.1} parent=35 // pred_region
            %s256 = sand.u32 18, 7
            %s257 = ssub.s32 18, %s256
            %s258 = scalar_lea.vmem %s197, %s257
            %s259 = ssub.s32 18, %s256
            %s260 = scalar_lea.vmem [#allocation2], %s259
            loop: start=0, step=1, limit=1
            $region52: #{upsample_forward.1} parent=50 // loop_pre_header
              _
            $region53: #{upsample_forward.1} parent=50 // loop_header
              %s262 = sphi 0, %s266
              %p263 = scmp.ge.s32.totalorder %s262, 1
              %s267 = sphi %s197, %s197
              %s268 = sphi [#allocation2], [#allocation2]
            $region54: #{upsample_forward.1} parent=50 // loop_header_branch
              %265 = sbr.rel (%p263) target = $region58
            $region55: #{upsample_forward.1} parent=50 // loop_body
              %v269 = vld [vmem:[%s267] sm:$0xff]
              %270 = vst [vmem:[%s268] sm:$0xff] %v269
              %v271 = vld [vmem:[%s267 + $0x8] sm:$0xff]
              %272 = vst [vmem:[%s268 + $0x8] sm:$0xff] %v271
              %v273 = vld [vmem:[%s267 + $0x18] sm:$0xff]
              %274 = vst [vmem:[%s268 + $0x18] sm:$0xff] %v273
              %v275 = vld [vmem:[%s267 + $0x20] sm:$0xff]
              %276 = vst [vmem:[%s268 + $0x20] sm:$0xff] %v275
              %v277 = vld [vmem:[%s267 + $0x30] sm:$0xff]
              %278 = vst [vmem:[%s268 + $0x30] sm:$0xff] %v277
              %v279 = vld [vmem:[%s267 + $0x38] sm:$0xff]
              %280 = vst [vmem:[%s268 + $0x38] sm:$0xff] %v279
              %v281 = vld [vmem:[%s267 + $0x48] sm:$0xff]
              %282 = vst [vmem:[%s268 + $0x48] sm:$0xff] %v281
              %v283 = vld [vmem:[%s267 + $0x50] sm:$0xff]
              %284 = vst [vmem:[%s268 + $0x50] sm:$0xff] %v283
              %v285 = vld [vmem:[%s267 + $0x60] sm:$0xff]
              %286 = vst [vmem:[%s268 + $0x60] sm:$0xff] %v285
              %v287 = vld [vmem:[%s267 + $0x68] sm:$0xff]
              %288 = vst [vmem:[%s268 + $0x68] sm:$0xff] %v287
              %v289 = vld [vmem:[%s267 + $0x78] sm:$0xff]
              %290 = vst [vmem:[%s268 + $0x78] sm:$0xff] %v289
              %v291 = vld [vmem:[%s267 + $0x80] sm:$0xff]
              %292 = vst [vmem:[%s268 + $0x80] sm:$0xff] %v291
              %v293 = vld [vmem:[%s267 + $0x90] sm:$0xff]
              %294 = vst [vmem:[%s268 + $0x90] sm:$0xff] %v293
              %v295 = vld [vmem:[%s267 + $0x98] sm:$0xff]
              %296 = vst [vmem:[%s268 + $0x98] sm:$0xff] %v295
              %v297 = vld [vmem:[%s267 + $0xa8] sm:$0xff]
              %298 = vst [vmem:[%s268 + $0xa8] sm:$0xff] %v297
              %v299 = vld [vmem:[%s267 + $0xb0] sm:$0xff]
              %300 = vst [vmem:[%s268 + $0xb0] sm:$0xff] %v299
              %v301 = vld [vmem:[%s267 + $0xc0] sm:$0xff]
              %302 = vst [vmem:[%s268 + $0xc0] sm:$0xff] %v301
              %v303 = vld [vmem:[%s267 + $0xc8] sm:$0xff]
              %304 = vst [vmem:[%s268 + $0xc8] sm:$0xff] %v303
              %v305 = vld [vmem:[%s267 + $0xd8] sm:$0xff]
              %306 = vst [vmem:[%s268 + $0xd8] sm:$0xff] %v305
              %v307 = vld [vmem:[%s267 + $0xe0] sm:$0xff]
              %308 = vst [vmem:[%s268 + $0xe0] sm:$0xff] %v307
              %v309 = vld [vmem:[%s267 + $0xf0] sm:$0xff]
              %310 = vst [vmem:[%s268 + $0xf0] sm:$0xff] %v309
              %v311 = vld [vmem:[%s267 + $0xf8] sm:$0xff]
              %312 = vst [vmem:[%s268 + $0xf8] sm:$0xff] %v311
              %v313 = vld [vmem:[%s267 + $0x108] sm:$0xff]
              %314 = vst [vmem:[%s268 + $0x108] sm:$0xff] %v313
              %v315 = vld [vmem:[%s267 + $0x110] sm:$0xff]
              %316 = vst [vmem:[%s268 + $0x110] sm:$0xff] %v315
              %v317 = vld [vmem:[%s267 + $0x120] sm:$0xff]
              %318 = vst [vmem:[%s268 + $0x120] sm:$0xff] %v317
              %v319 = vld [vmem:[%s267 + $0x128] sm:$0xff]
              %320 = vst [vmem:[%s268 + $0x128] sm:$0xff] %v319
              %v321 = vld [vmem:[%s267 + $0x138] sm:$0xff]
              %322 = vst [vmem:[%s268 + $0x138] sm:$0xff] %v321
              %v323 = vld [vmem:[%s267 + $0x140] sm:$0xff]
              %324 = vst [vmem:[%s268 + $0x140] sm:$0xff] %v323
              %v325 = vld [vmem:[%s267 + $0x150] sm:$0xff]
              %326 = vst [vmem:[%s268 + $0x150] sm:$0xff] %v325
              %v327 = vld [vmem:[%s267 + $0x158] sm:$0xff]
              %328 = vst [vmem:[%s268 + $0x158] sm:$0xff] %v327
              %v329 = vld [vmem:[%s267 + $0x168] sm:$0xff]
              %330 = vst [vmem:[%s268 + $0x168] sm:$0xff] %v329
              %v331 = vld [vmem:[%s267 + $0x170] sm:$0xff]
              %332 = vst [vmem:[%s268 + $0x170] sm:$0xff] %v331
              %v333 = vld [vmem:[%s267 + $0x180] sm:$0xff]
              %334 = vst [vmem:[%s268 + $0x180] sm:$0xff] %v333
              %v335 = vld [vmem:[%s267 + $0x188] sm:$0xff]
              %336 = vst [vmem:[%s268 + $0x188] sm:$0xff] %v335
              %v337 = vld [vmem:[%s267 + $0x198] sm:$0xff]
              %338 = vst [vmem:[%s268 + $0x198] sm:$0xff] %v337
              %v339 = vld [vmem:[%s267 + $0x1a0] sm:$0xff]
              %340 = vst [vmem:[%s268 + $0x1a0] sm:$0xff] %v339
            $region56: #{upsample_forward.1} parent=50 // loop_footer
              %s266 = sadd.s32 1, %s262
            $region57: #{upsample_forward.1} parent=50 // loop_footer_branch
              %261 = sbr.rel target = $region53
            $region58: #{upsample_forward.1} parent=50 // loop_exit
              _
            %s341 = sshllo.u32 0, %s256
            loop: start=0, step=1, limit=1
            $region59: #{upsample_forward.1} parent=50 // loop_pre_header
              _
            $region60: #{upsample_forward.1} parent=50 // loop_header
              %s343 = sphi 0, %s347
              %p344 = scmp.ge.s32.totalorder %s343, 1
              %s348 = sphi %s258, %s258
              %s349 = sphi %s260, %s260
            $region61: #{upsample_forward.1} parent=50 // loop_header_branch
              %346 = sbr.rel (%p344) target = $region65
            $region62: #{upsample_forward.1} parent=50 // loop_body
              %v350 = vld [vmem:[%s348] sm:%s341]
              %351 = vst [vmem:[%s349] sm:%s341] %v350
              %v352 = vld [vmem:[%s348 + $0x18] sm:%s341]
              %353 = vst [vmem:[%s349 + $0x18] sm:%s341] %v352
              %v354 = vld [vmem:[%s348 + $0x30] sm:%s341]
              %355 = vst [vmem:[%s349 + $0x30] sm:%s341] %v354
              %v356 = vld [vmem:[%s348 + $0x48] sm:%s341]
              %357 = vst [vmem:[%s349 + $0x48] sm:%s341] %v356
              %v358 = vld [vmem:[%s348 + $0x60] sm:%s341]
              %359 = vst [vmem:[%s349 + $0x60] sm:%s341] %v358
              %v360 = vld [vmem:[%s348 + $0x78] sm:%s341]
              %361 = vst [vmem:[%s349 + $0x78] sm:%s341] %v360
              %v362 = vld [vmem:[%s348 + $0x90] sm:%s341]
              %363 = vst [vmem:[%s349 + $0x90] sm:%s341] %v362
              %v364 = vld [vmem:[%s348 + $0xa8] sm:%s341]
              %365 = vst [vmem:[%s349 + $0xa8] sm:%s341] %v364
              %v366 = vld [vmem:[%s348 + $0xc0] sm:%s341]
              %367 = vst [vmem:[%s349 + $0xc0] sm:%s341] %v366
              %v368 = vld [vmem:[%s348 + $0xd8] sm:%s341]
              %369 = vst [vmem:[%s349 + $0xd8] sm:%s341] %v368
              %v370 = vld [vmem:[%s348 + $0xf0] sm:%s341]
              %371 = vst [vmem:[%s349 + $0xf0] sm:%s341] %v370
              %v372 = vld [vmem:[%s348 + $0x108] sm:%s341]
              %373 = vst [vmem:[%s349 + $0x108] sm:%s341] %v372
              %v374 = vld [vmem:[%s348 + $0x120] sm:%s341]
              %375 = vst [vmem:[%s349 + $0x120] sm:%s341] %v374
              %v376 = vld [vmem:[%s348 + $0x138] sm:%s341]
              %377 = vst [vmem:[%s349 + $0x138] sm:%s341] %v376
              %v378 = vld [vmem:[%s348 + $0x150] sm:%s341]
              %379 = vst [vmem:[%s349 + $0x150] sm:%s341] %v378
              %v380 = vld [vmem:[%s348 + $0x168] sm:%s341]
              %381 = vst [vmem:[%s349 + $0x168] sm:%s341] %v380
              %v382 = vld [vmem:[%s348 + $0x180] sm:%s341]
              %383 = vst [vmem:[%s349 + $0x180] sm:%s341] %v382
              %v384 = vld [vmem:[%s348 + $0x198] sm:%s341]
              %385 = vst [vmem:[%s349 + $0x198] sm:%s341] %v384
            $region63: #{upsample_forward.1} parent=50 // loop_footer
              %s347 = sadd.s32 1, %s343
            $region64: #{upsample_forward.1} parent=50 // loop_footer_branch
              %342 = sbr.rel target = $region60
            $region65: #{upsample_forward.1} parent=50 // loop_exit
              _
          $region51: #{upsample_forward.1} parent=35 // pred_fallthru
            _
        $region36: #{upsample_forward.1} parent=31 // pred_fallthru
          _
        // Predicated region
        $region37: #{upsample_forward.1} parent=31 // pred_check
          %p203 = pneg %p199
        $region38: #{upsample_forward.1} parent=31 // pred_check_branch
          %205 = sbr.rel (%p203) target = $region40
        $region39: #{upsample_forward.1} parent=31 // pred_region
          %s206 = sshllo.u32 0, 18
          loop: start=0, step=1, limit=1
          $region41: #{upsample_forward.1} parent=39 // loop_pre_header
            _
          $region42: #{upsample_forward.1} parent=39 // loop_header
            %s208 = sphi 0, %s212
            %p209 = scmp.ge.s32.totalorder %s208, 1
            %s213 = sphi %s197, %s197
            %s214 = sphi [#allocation2], [#allocation2]
          $region43: #{upsample_forward.1} parent=39 // loop_header_branch
            %211 = sbr.rel (%p209) target = $region47
          $region44: #{upsample_forward.1} parent=39 // loop_body
            %v215 = vld [vmem:[%s213] sm:%s206]
            %216 = vst [vmem:[%s214] sm:%s206] %v215
            %v217 = vld [vmem:[%s213 + $0x18] sm:%s206]
            %218 = vst [vmem:[%s214 + $0x18] sm:%s206] %v217
            %v219 = vld [vmem:[%s213 + $0x30] sm:%s206]
            %220 = vst [vmem:[%s214 + $0x30] sm:%s206] %v219
            %v221 = vld [vmem:[%s213 + $0x48] sm:%s206]
            %222 = vst [vmem:[%s214 + $0x48] sm:%s206] %v221
            %v223 = vld [vmem:[%s213 + $0x60] sm:%s206]
            %224 = vst [vmem:[%s214 + $0x60] sm:%s206] %v223
            %v225 = vld [vmem:[%s213 + $0x78] sm:%s206]
            %226 = vst [vmem:[%s214 + $0x78] sm:%s206] %v225
            %v227 = vld [vmem:[%s213 + $0x90] sm:%s206]
            %228 = vst [vmem:[%s214 + $0x90] sm:%s206] %v227
            %v229 = vld [vmem:[%s213 + $0xa8] sm:%s206]
            %230 = vst [vmem:[%s214 + $0xa8] sm:%s206] %v229
            %v231 = vld [vmem:[%s213 + $0xc0] sm:%s206]
            %232 = vst [vmem:[%s214 + $0xc0] sm:%s206] %v231
            %v233 = vld [vmem:[%s213 + $0xd8] sm:%s206]
            %234 = vst [vmem:[%s214 + $0xd8] sm:%s206] %v233
            %v235 = vld [vmem:[%s213 + $0xf0] sm:%s206]
            %236 = vst [vmem:[%s214 + $0xf0] sm:%s206] %v235
            %v237 = vld [vmem:[%s213 + $0x108] sm:%s206]
            %238 = vst [vmem:[%s214 + $0x108] sm:%s206] %v237
            %v239 = vld [vmem:[%s213 + $0x120] sm:%s206]
            %240 = vst [vmem:[%s214 + $0x120] sm:%s206] %v239
            %v241 = vld [vmem:[%s213 + $0x138] sm:%s206]
            %242 = vst [vmem:[%s214 + $0x138] sm:%s206] %v241
            %v243 = vld [vmem:[%s213 + $0x150] sm:%s206]
            %244 = vst [vmem:[%s214 + $0x150] sm:%s206] %v243
            %v245 = vld [vmem:[%s213 + $0x168] sm:%s206]
            %246 = vst [vmem:[%s214 + $0x168] sm:%s206] %v245
            %v247 = vld [vmem:[%s213 + $0x180] sm:%s206]
            %248 = vst [vmem:[%s214 + $0x180] sm:%s206] %v247
            %v249 = vld [vmem:[%s213 + $0x198] sm:%s206]
            %250 = vst [vmem:[%s214 + $0x198] sm:%s206] %v249
          $region45: #{upsample_forward.1} parent=39 // loop_footer
            %s212 = sadd.s32 1, %s208
          $region46: #{upsample_forward.1} parent=39 // loop_footer_branch
            %207 = sbr.rel target = $region42
          $region47: #{upsample_forward.1} parent=39 // loop_exit
            _
        $region40: #{upsample_forward.1} parent=31 // pred_fallthru
          _
        // Predicated region
        $region66: #{upsample_forward.1} parent=31 // pred_check
          _
        $region67: #{upsample_forward.1} parent=31 // pred_check_branch
          %388 = sbr.rel (0) target = $region69
        $region68: #{upsample_forward.1} parent=31 // pred_region
          %389 = vsyncadd [#allocation3], 5184
        $region69: #{upsample_forward.1} parent=31 // pred_fallthru
          _
      $region32: #{upsample_forward.1} parent=27 // pred_fallthru
        _
      %p390 = scmp.lt.s32.totalorder %s21, 0
      %s391 = ssub.s32 0, %s21
      %s392 = scalar_select %p390, %s391, %s21
      %s393 = sand.u32 %s392, 1
      %s394 = ssub.s32 0, %s393
      %s395 = scalar_select %p390, %s394, %s393
      %p396 = scmp.ne.s32.totalorder %s395, 0
      %p397 = scmp.lt.s32.totalorder %s395, 0
      %p398 = pnand %p397, %p396
      %p399 = pneg %p398
      %s400 = sadd.s32 %s395, 2
      %s401 = scalar_select %p399, %s400, %s395
      %s402 = smul.u32 %s401, 432
      %s403 = scalar_lea.vmem [#allocation2], %s402
      %s404 = scalar_lea.sflag [#allocation3], %s401
      %s405 = smul.u32 18, 18
      %s406 = smul.u32 %s405, 1
      %s407 = sshll.u32 %s406, 4
      %408 = dma.done %s404, %s407
      %s409 = sadd.s32 %s21, 1
      %p410 = scmp.lt.s32.totalorder %s409, 1
      // Predicated region
      $region70: #{upsample_forward.1} parent=27 // pred_check
        %p411 = pneg %p410
      $region71: #{upsample_forward.1} parent=27 // pred_check_branch
        %413 = sbr.rel (%p411) target = $region73
      $region72: #{upsample_forward.1} parent=27 // pred_region
        %s414 = ssub.s32 1, %s401
        %s415 = smul.u32 %s20, 18
        %s416 = smul.u32 %s409, 16
        %s417 = sadd.s32 %s415, %s416
        %s418 = smul.u32 %s417, 24
        %s419 = scalar_lea.vmem %s0, %s418
        %s420 = smul.u32 %s414, 432
        %s421 = scalar_lea.vmem [#allocation2], %s420
        %s422 = scalar_lea.sflag [#allocation3], %s414
        %p424 = scmp.lt.u32.totalorder 18, 8
        %p425 = pneg %p424
        // Predicated region
        $region74: #{upsample_forward.1} parent=72 // pred_check
          _
        $region75: #{upsample_forward.1} parent=72 // pred_check_branch
          %427 = sbr.rel (%p424) target = $region77
        $region76: #{upsample_forward.1} parent=72 // pred_region
          %s476 = sand.u32 18, 7
          %p477 = scmp.eq.s32.totalorder %s476, 0
          %p478 = pneg %p477
          // Predicated region
          $region89: #{upsample_forward.1} parent=76 // pred_check
            _
          $region90: #{upsample_forward.1} parent=76 // pred_check_branch
            %480 = sbr.rel (%p477) target = $region92
          $region91: #{upsample_forward.1} parent=76 // pred_region
            %s481 = sand.u32 18, 7
            %s482 = ssub.s32 18, %s481
            %s483 = scalar_lea.vmem %s419, %s482
            %s484 = ssub.s32 18, %s481
            %s485 = scalar_lea.vmem %s421, %s484 [#allocation2]
            loop: start=0, step=1, limit=1
            $region93: #{upsample_forward.1} parent=91 // loop_pre_header
              _
            $region94: #{upsample_forward.1} parent=91 // loop_header
              %s487 = sphi 0, %s491
              %p488 = scmp.ge.s32.totalorder %s487, 1
              %s492 = sphi %s419, %s419
              %s493 = sphi %s421, %s421
            $region95: #{upsample_forward.1} parent=91 // loop_header_branch
              %490 = sbr.rel (%p488) target = $region99
            $region96: #{upsample_forward.1} parent=91 // loop_body
              %v494 = vld [vmem:[%s492] sm:$0xff]
              %495 = vst [vmem:[%s493] sm:$0xff] %v494
              %v496 = vld [vmem:[%s492 + $0x8] sm:$0xff]
              %497 = vst [vmem:[%s493 + $0x8] sm:$0xff] %v496
              %v498 = vld [vmem:[%s492 + $0x18] sm:$0xff]
              %499 = vst [vmem:[%s493 + $0x18] sm:$0xff] %v498
              %v500 = vld [vmem:[%s492 + $0x20] sm:$0xff]
              %501 = vst [vmem:[%s493 + $0x20] sm:$0xff] %v500
              %v502 = vld [vmem:[%s492 + $0x30] sm:$0xff]
              %503 = vst [vmem:[%s493 + $0x30] sm:$0xff] %v502
              %v504 = vld [vmem:[%s492 + $0x38] sm:$0xff]
              %505 = vst [vmem:[%s493 + $0x38] sm:$0xff] %v504
              %v506 = vld [vmem:[%s492 + $0x48] sm:$0xff]
              %507 = vst [vmem:[%s493 + $0x48] sm:$0xff] %v506
              %v508 = vld [vmem:[%s492 + $0x50] sm:$0xff]
              %509 = vst [vmem:[%s493 + $0x50] sm:$0xff] %v508
              %v510 = vld [vmem:[%s492 + $0x60] sm:$0xff]
              %511 = vst [vmem:[%s493 + $0x60] sm:$0xff] %v510
              %v512 = vld [vmem:[%s492 + $0x68] sm:$0xff]
              %513 = vst [vmem:[%s493 + $0x68] sm:$0xff] %v512
              %v514 = vld [vmem:[%s492 + $0x78] sm:$0xff]
              %515 = vst [vmem:[%s493 + $0x78] sm:$0xff] %v514
              %v516 = vld [vmem:[%s492 + $0x80] sm:$0xff]
              %517 = vst [vmem:[%s493 + $0x80] sm:$0xff] %v516
              %v518 = vld [vmem:[%s492 + $0x90] sm:$0xff]
              %519 = vst [vmem:[%s493 + $0x90] sm:$0xff] %v518
              %v520 = vld [vmem:[%s492 + $0x98] sm:$0xff]
              %521 = vst [vmem:[%s493 + $0x98] sm:$0xff] %v520
              %v522 = vld [vmem:[%s492 + $0xa8] sm:$0xff]
              %523 = vst [vmem:[%s493 + $0xa8] sm:$0xff] %v522
              %v524 = vld [vmem:[%s492 + $0xb0] sm:$0xff]
              %525 = vst [vmem:[%s493 + $0xb0] sm:$0xff] %v524
              %v526 = vld [vmem:[%s492 + $0xc0] sm:$0xff]
              %527 = vst [vmem:[%s493 + $0xc0] sm:$0xff] %v526
              %v528 = vld [vmem:[%s492 + $0xc8] sm:$0xff]
              %529 = vst [vmem:[%s493 + $0xc8] sm:$0xff] %v528
              %v530 = vld [vmem:[%s492 + $0xd8] sm:$0xff]
              %531 = vst [vmem:[%s493 + $0xd8] sm:$0xff] %v530
              %v532 = vld [vmem:[%s492 + $0xe0] sm:$0xff]
              %533 = vst [vmem:[%s493 + $0xe0] sm:$0xff] %v532
              %v534 = vld [vmem:[%s492 + $0xf0] sm:$0xff]
              %535 = vst [vmem:[%s493 + $0xf0] sm:$0xff] %v534
              %v536 = vld [vmem:[%s492 + $0xf8] sm:$0xff]
              %537 = vst [vmem:[%s493 + $0xf8] sm:$0xff] %v536
              %v538 = vld [vmem:[%s492 + $0x108] sm:$0xff]
              %539 = vst [vmem:[%s493 + $0x108] sm:$0xff] %v538
              %v540 = vld [vmem:[%s492 + $0x110] sm:$0xff]
              %541 = vst [vmem:[%s493 + $0x110] sm:$0xff] %v540
              %v542 = vld [vmem:[%s492 + $0x120] sm:$0xff]
              %543 = vst [vmem:[%s493 + $0x120] sm:$0xff] %v542
              %v544 = vld [vmem:[%s492 + $0x128] sm:$0xff]
              %545 = vst [vmem:[%s493 + $0x128] sm:$0xff] %v544
              %v546 = vld [vmem:[%s492 + $0x138] sm:$0xff]
              %547 = vst [vmem:[%s493 + $0x138] sm:$0xff] %v546
              %v548 = vld [vmem:[%s492 + $0x140] sm:$0xff]
              %549 = vst [vmem:[%s493 + $0x140] sm:$0xff] %v548
              %v550 = vld [vmem:[%s492 + $0x150] sm:$0xff]
              %551 = vst [vmem:[%s493 + $0x150] sm:$0xff] %v550
              %v552 = vld [vmem:[%s492 + $0x158] sm:$0xff]
              %553 = vst [vmem:[%s493 + $0x158] sm:$0xff] %v552
              %v554 = vld [vmem:[%s492 + $0x168] sm:$0xff]
              %555 = vst [vmem:[%s493 + $0x168] sm:$0xff] %v554
              %v556 = vld [vmem:[%s492 + $0x170] sm:$0xff]
              %557 = vst [vmem:[%s493 + $0x170] sm:$0xff] %v556
              %v558 = vld [vmem:[%s492 + $0x180] sm:$0xff]
              %559 = vst [vmem:[%s493 + $0x180] sm:$0xff] %v558
              %v560 = vld [vmem:[%s492 + $0x188] sm:$0xff]
              %561 = vst [vmem:[%s493 + $0x188] sm:$0xff] %v560
              %v562 = vld [vmem:[%s492 + $0x198] sm:$0xff]
              %563 = vst [vmem:[%s493 + $0x198] sm:$0xff] %v562
              %v564 = vld [vmem:[%s492 + $0x1a0] sm:$0xff]
              %565 = vst [vmem:[%s493 + $0x1a0] sm:$0xff] %v564
            $region97: #{upsample_forward.1} parent=91 // loop_footer
              %s491 = sadd.s32 1, %s487
            $region98: #{upsample_forward.1} parent=91 // loop_footer_branch
              %486 = sbr.rel target = $region94
            $region99: #{upsample_forward.1} parent=91 // loop_exit
              _
            %s566 = sshllo.u32 0, %s481
            loop: start=0, step=1, limit=1
            $region100: #{upsample_forward.1} parent=91 // loop_pre_header
              _
            $region101: #{upsample_forward.1} parent=91 // loop_header
              %s568 = sphi 0, %s572
              %p569 = scmp.ge.s32.totalorder %s568, 1
              %s573 = sphi %s483, %s483
              %s574 = sphi %s485, %s485
            $region102: #{upsample_forward.1} parent=91 // loop_header_branch
              %571 = sbr.rel (%p569) target = $region106
            $region103: #{upsample_forward.1} parent=91 // loop_body
              %v575 = vld [vmem:[%s573] sm:%s566]
              %576 = vst [vmem:[%s574] sm:%s566] %v575
              %v577 = vld [vmem:[%s573 + $0x18] sm:%s566]
              %578 = vst [vmem:[%s574 + $0x18] sm:%s566] %v577
              %v579 = vld [vmem:[%s573 + $0x30] sm:%s566]
              %580 = vst [vmem:[%s574 + $0x30] sm:%s566] %v579
              %v581 = vld [vmem:[%s573 + $0x48] sm:%s566]
              %582 = vst [vmem:[%s574 + $0x48] sm:%s566] %v581
              %v583 = vld [vmem:[%s573 + $0x60] sm:%s566]
              %584 = vst [vmem:[%s574 + $0x60] sm:%s566] %v583
              %v585 = vld [vmem:[%s573 + $0x78] sm:%s566]
              %586 = vst [vmem:[%s574 + $0x78] sm:%s566] %v585
              %v587 = vld [vmem:[%s573 + $0x90] sm:%s566]
              %588 = vst [vmem:[%s574 + $0x90] sm:%s566] %v587
              %v589 = vld [vmem:[%s573 + $0xa8] sm:%s566]
              %590 = vst [vmem:[%s574 + $0xa8] sm:%s566] %v589
              %v591 = vld [vmem:[%s573 + $0xc0] sm:%s566]
              %592 = vst [vmem:[%s574 + $0xc0] sm:%s566] %v591
              %v593 = vld [vmem:[%s573 + $0xd8] sm:%s566]
              %594 = vst [vmem:[%s574 + $0xd8] sm:%s566] %v593
              %v595 = vld [vmem:[%s573 + $0xf0] sm:%s566]
              %596 = vst [vmem:[%s574 + $0xf0] sm:%s566] %v595
              %v597 = vld [vmem:[%s573 + $0x108] sm:%s566]
              %598 = vst [vmem:[%s574 + $0x108] sm:%s566] %v597
              %v599 = vld [vmem:[%s573 + $0x120] sm:%s566]
              %600 = vst [vmem:[%s574 + $0x120] sm:%s566] %v599
              %v601 = vld [vmem:[%s573 + $0x138] sm:%s566]
              %602 = vst [vmem:[%s574 + $0x138] sm:%s566] %v601
              %v603 = vld [vmem:[%s573 + $0x150] sm:%s566]
              %604 = vst [vmem:[%s574 + $0x150] sm:%s566] %v603
              %v605 = vld [vmem:[%s573 + $0x168] sm:%s566]
              %606 = vst [vmem:[%s574 + $0x168] sm:%s566] %v605
              %v607 = vld [vmem:[%s573 + $0x180] sm:%s566]
              %608 = vst [vmem:[%s574 + $0x180] sm:%s566] %v607
              %v609 = vld [vmem:[%s573 + $0x198] sm:%s566]
              %610 = vst [vmem:[%s574 + $0x198] sm:%s566] %v609
            $region104: #{upsample_forward.1} parent=91 // loop_footer
              %s572 = sadd.s32 1, %s568
            $region105: #{upsample_forward.1} parent=91 // loop_footer_branch
              %567 = sbr.rel target = $region101
            $region106: #{upsample_forward.1} parent=91 // loop_exit
              _
          $region92: #{upsample_forward.1} parent=76 // pred_fallthru
            _
        $region77: #{upsample_forward.1} parent=72 // pred_fallthru
          _
        // Predicated region
        $region78: #{upsample_forward.1} parent=72 // pred_check
          %p428 = pneg %p424
        $region79: #{upsample_forward.1} parent=72 // pred_check_branch
          %430 = sbr.rel (%p428) target = $region81
        $region80: #{upsample_forward.1} parent=72 // pred_region
          %s431 = sshllo.u32 0, 18
          loop: start=0, step=1, limit=1
          $region82: #{upsample_forward.1} parent=80 // loop_pre_header
            _
          $region83: #{upsample_forward.1} parent=80 // loop_header
            %s433 = sphi 0, %s437
            %p434 = scmp.ge.s32.totalorder %s433, 1
            %s438 = sphi %s419, %s419
            %s439 = sphi %s421, %s421
          $region84: #{upsample_forward.1} parent=80 // loop_header_branch
            %436 = sbr.rel (%p434) target = $region88
          $region85: #{upsample_forward.1} parent=80 // loop_body
            %v440 = vld [vmem:[%s438] sm:%s431]
            %441 = vst [vmem:[%s439] sm:%s431] %v440
            %v442 = vld [vmem:[%s438 + $0x18] sm:%s431]
            %443 = vst [vmem:[%s439 + $0x18] sm:%s431] %v442
            %v444 = vld [vmem:[%s438 + $0x30] sm:%s431]
            %445 = vst [vmem:[%s439 + $0x30] sm:%s431] %v444
            %v446 = vld [vmem:[%s438 + $0x48] sm:%s431]
            %447 = vst [vmem:[%s439 + $0x48] sm:%s431] %v446
            %v448 = vld [vmem:[%s438 + $0x60] sm:%s431]
            %449 = vst [vmem:[%s439 + $0x60] sm:%s431] %v448
            %v450 = vld [vmem:[%s438 + $0x78] sm:%s431]
            %451 = vst [vmem:[%s439 + $0x78] sm:%s431] %v450
            %v452 = vld [vmem:[%s438 + $0x90] sm:%s431]
            %453 = vst [vmem:[%s439 + $0x90] sm:%s431] %v452
            %v454 = vld [vmem:[%s438 + $0xa8] sm:%s431]
            %455 = vst [vmem:[%s439 + $0xa8] sm:%s431] %v454
            %v456 = vld [vmem:[%s438 + $0xc0] sm:%s431]
            %457 = vst [vmem:[%s439 + $0xc0] sm:%s431] %v456
            %v458 = vld [vmem:[%s438 + $0xd8] sm:%s431]
            %459 = vst [vmem:[%s439 + $0xd8] sm:%s431] %v458
            %v460 = vld [vmem:[%s438 + $0xf0] sm:%s431]
            %461 = vst [vmem:[%s439 + $0xf0] sm:%s431] %v460
            %v462 = vld [vmem:[%s438 + $0x108] sm:%s431]
            %463 = vst [vmem:[%s439 + $0x108] sm:%s431] %v462
            %v464 = vld [vmem:[%s438 + $0x120] sm:%s431]
            %465 = vst [vmem:[%s439 + $0x120] sm:%s431] %v464
            %v466 = vld [vmem:[%s438 + $0x138] sm:%s431]
            %467 = vst [vmem:[%s439 + $0x138] sm:%s431] %v466
            %v468 = vld [vmem:[%s438 + $0x150] sm:%s431]
            %469 = vst [vmem:[%s439 + $0x150] sm:%s431] %v468
            %v470 = vld [vmem:[%s438 + $0x168] sm:%s431]
            %471 = vst [vmem:[%s439 + $0x168] sm:%s431] %v470
            %v472 = vld [vmem:[%s438 + $0x180] sm:%s431]
            %473 = vst [vmem:[%s439 + $0x180] sm:%s431] %v472
            %v474 = vld [vmem:[%s438 + $0x198] sm:%s431]
            %475 = vst [vmem:[%s439 + $0x198] sm:%s431] %v474
          $region86: #{upsample_forward.1} parent=80 // loop_footer
            %s437 = sadd.s32 1, %s433
          $region87: #{upsample_forward.1} parent=80 // loop_footer_branch
            %432 = sbr.rel target = $region83
          $region88: #{upsample_forward.1} parent=80 // loop_exit
            _
        $region81: #{upsample_forward.1} parent=72 // pred_fallthru
          _
        // Predicated region
        $region107: #{upsample_forward.1} parent=72 // pred_check
          _
        $region108: #{upsample_forward.1} parent=72 // pred_check_branch
          %613 = sbr.rel (0) target = $region110
        $region109: #{upsample_forward.1} parent=72 // pred_region
          %614 = vsyncadd %s422, 5184
        $region110: #{upsample_forward.1} parent=72 // pred_fallthru
          _
      $region73: #{upsample_forward.1} parent=27 // pred_fallthru
        _
      %v615 = vld [vmem:[%s403] sm:$0xff]
      %v616 = vld [vmem:[%s403 + $0x8] sm:$0xff]
      %v617 = vld [vmem:[%s403 + $0x18] sm:$0xff]
      %v618 = vld [vmem:[%s403 + $0x20] sm:$0xff]
      %v619 = vld [vmem:[%s403 + $0x30] sm:$0xff]
      %v620 = vld [vmem:[%s403 + $0x38] sm:$0xff]
      %v621 = vld [vmem:[%s403 + $0x48] sm:$0xff]
      %v622 = vld [vmem:[%s403 + $0x50] sm:$0xff]
      %v623 = vld [vmem:[%s403 + $0x60] sm:$0xff]
      %v624 = vld [vmem:[%s403 + $0x68] sm:$0xff]
      %v625 = vld [vmem:[%s403 + $0x78] sm:$0xff]
      %v626 = vld [vmem:[%s403 + $0x80] sm:$0xff]
      %v627 = vld [vmem:[%s403 + $0x90] sm:$0xff]
      %v628 = vld [vmem:[%s403 + $0x98] sm:$0xff]
      %v629 = vld [vmem:[%s403 + $0xa8] sm:$0xff]
      %v630 = vld [vmem:[%s403 + $0xb0] sm:$0xff]
      %v631 = vld [vmem:[%s403 + $0xc0] sm:$0xff]
      %v632 = vld [vmem:[%s403 + $0xc8] sm:$0xff]
      %v633 = vld [vmem:[%s403 + $0xd8] sm:$0xff]
      %v634 = vld [vmem:[%s403 + $0xe0] sm:$0xff]
      %v635 = vld [vmem:[%s403 + $0xf0] sm:$0xff]
      %v636 = vld [vmem:[%s403 + $0xf8] sm:$0xff]
      %v637 = vld [vmem:[%s403 + $0x108] sm:$0xff]
      %v638 = vld [vmem:[%s403 + $0x110] sm:$0xff]
      %v639 = vld [vmem:[%s403 + $0x120] sm:$0xff]
      %v640 = vld [vmem:[%s403 + $0x128] sm:$0xff]
      %v641 = vld [vmem:[%s403 + $0x138] sm:$0xff]
      %v642 = vld [vmem:[%s403 + $0x140] sm:$0xff]
      %v643 = vld [vmem:[%s403 + $0x150] sm:$0xff]
      %v644 = vld [vmem:[%s403 + $0x158] sm:$0xff]
      %v645 = vld [vmem:[%s403 + $0x168] sm:$0xff]
      %v646 = vld [vmem:[%s403 + $0x170] sm:$0xff]
      %v647 = vld [vmem:[%s403 + $0x180] sm:$0xff]
      %v648 = vld [vmem:[%s403 + $0x188] sm:$0xff]
      %v649 = vld [vmem:[%s403 + $0x198] sm:$0xff]
      %v650 = vld [vmem:[%s403 + $0x1a0] sm:$0xff]
      %v651 = vld [vmem:[%s403 + $0x1] sm:$0xff]
      %v652 = vld [vmem:[%s403 + $0x9] sm:$0xff]
      %v653 = vld [vmem:[%s403 + $0x19] sm:$0xff]
      %v654 = vld [vmem:[%s403 + $0x21] sm:$0xff]
      %v655 = vld [vmem:[%s403 + $0x31] sm:$0xff]
      %v656 = vld [vmem:[%s403 + $0x39] sm:$0xff]
      %v657 = vld [vmem:[%s403 + $0x49] sm:$0xff]
      %v658 = vld [vmem:[%s403 + $0x51] sm:$0xff]
      %v659 = vld [vmem:[%s403 + $0x61] sm:$0xff]
      %v660 = vld [vmem:[%s403 + $0x69] sm:$0xff]
      %v661 = vld [vmem:[%s403 + $0x79] sm:$0xff]
      %v662 = vld [vmem:[%s403 + $0x81] sm:$0xff]
      %v663 = vld [vmem:[%s403 + $0x91] sm:$0xff]
      %v664 = vld [vmem:[%s403 + $0x99] sm:$0xff]
      %v665 = vld [vmem:[%s403 + $0xa9] sm:$0xff]
      %v666 = vld [vmem:[%s403 + $0xb1] sm:$0xff]
      %v667 = vld [vmem:[%s403 + $0xc1] sm:$0xff]
      %v668 = vld [vmem:[%s403 + $0xc9] sm:$0xff]
      %v669 = vld [vmem:[%s403 + $0xd9] sm:$0xff]
      %v670 = vld [vmem:[%s403 + $0xe1] sm:$0xff]
      %v671 = vld [vmem:[%s403 + $0xf1] sm:$0xff]
      %v672 = vld [vmem:[%s403 + $0xf9] sm:$0xff]
      %v673 = vld [vmem:[%s403 + $0x109] sm:$0xff]
      %v674 = vld [vmem:[%s403 + $0x111] sm:$0xff]
      %v675 = vld [vmem:[%s403 + $0x121] sm:$0xff]
      %v676 = vld [vmem:[%s403 + $0x129] sm:$0xff]
      %v677 = vld [vmem:[%s403 + $0x139] sm:$0xff]
      %v678 = vld [vmem:[%s403 + $0x141] sm:$0xff]
      %v679 = vld [vmem:[%s403 + $0x151] sm:$0xff]
      %v680 = vld [vmem:[%s403 + $0x159] sm:$0xff]
      %v681 = vld [vmem:[%s403 + $0x169] sm:$0xff]
      %v682 = vld [vmem:[%s403 + $0x171] sm:$0xff]
      %v683 = vld [vmem:[%s403 + $0x181] sm:$0xff]
      %v684 = vld [vmem:[%s403 + $0x189] sm:$0xff]
      %v685 = vld [vmem:[%s403 + $0x199] sm:$0xff]
      %v686 = vld [vmem:[%s403 + $0x1a1] sm:$0xff]
      %v687 = vld [vmem:[%s403 + $0x2] sm:$0xff]
      %v688 = vld [vmem:[%s403 + $0xa] sm:$0xff]
      %v689 = vld [vmem:[%s403 + $0x1a] sm:$0xff]
      %v690 = vld [vmem:[%s403 + $0x22] sm:$0xff]
      %v691 = vld [vmem:[%s403 + $0x32] sm:$0xff]
      %v692 = vld [vmem:[%s403 + $0x3a] sm:$0xff]
      %v693 = vld [vmem:[%s403 + $0x4a] sm:$0xff]
      %v694 = vld [vmem:[%s403 + $0x52] sm:$0xff]
      %v695 = vld [vmem:[%s403 + $0x62] sm:$0xff]
      %v696 = vld [vmem:[%s403 + $0x6a] sm:$0xff]
      %v697 = vld [vmem:[%s403 + $0x7a] sm:$0xff]
      %v698 = vld [vmem:[%s403 + $0x82] sm:$0xff]
      %v699 = vld [vmem:[%s403 + $0x92] sm:$0xff]
      %v700 = vld [vmem:[%s403 + $0x9a] sm:$0xff]
      %v701 = vld [vmem:[%s403 + $0xaa] sm:$0xff]
      %v702 = vld [vmem:[%s403 + $0xb2] sm:$0xff]
      %v703 = vld [vmem:[%s403 + $0xc2] sm:$0xff]
      %v704 = vld [vmem:[%s403 + $0xca] sm:$0xff]
      %v705 = vld [vmem:[%s403 + $0xda] sm:$0xff]
      %v706 = vld [vmem:[%s403 + $0xe2] sm:$0xff]
      %v707 = vld [vmem:[%s403 + $0xf2] sm:$0xff]
      %v708 = vld [vmem:[%s403 + $0xfa] sm:$0xff]
      %v709 = vld [vmem:[%s403 + $0x10a] sm:$0xff]
      %v710 = vld [vmem:[%s403 + $0x112] sm:$0xff]
      %v711 = vld [vmem:[%s403 + $0x122] sm:$0xff]
      %v712 = vld [vmem:[%s403 + $0x12a] sm:$0xff]
      %v713 = vld [vmem:[%s403 + $0x13a] sm:$0xff]
      %v714 = vld [vmem:[%s403 + $0x142] sm:$0xff]
      %v715 = vld [vmem:[%s403 + $0x152] sm:$0xff]
      %v716 = vld [vmem:[%s403 + $0x15a] sm:$0xff]
      %v717 = vld [vmem:[%s403 + $0x16a] sm:$0xff]
      %v718 = vld [vmem:[%s403 + $0x172] sm:$0xff]
      %v719 = vld [vmem:[%s403 + $0x182] sm:$0xff]
      %v720 = vld [vmem:[%s403 + $0x18a] sm:$0xff]
      %v721 = vld [vmem:[%s403 + $0x19a] sm:$0xff]
      %v722 = vld [vmem:[%s403 + $0x1a2] sm:$0xff]
      %v723 = vld [vmem:[%s178] sm:$0x1]
      %v724 = vld [vmem:[%s175] sm:$0xff]
      %v725 = vld [vmem:[%s175 + $0x8] sm:$0xff]
      %v726 = vld [vmem:[%s175 + $0x10] sm:$0xff]
      %v727 = vld [vmem:[%s175 + $0x18] sm:$0xff]
      %v728 = vld [vmem:[%s175 + $0x20] sm:$0xff]
      %v729 = vld [vmem:[%s175 + $0x28] sm:$0xff]
      %v730 = vld [vmem:[%s175 + $0x30] sm:$0xff]
      %v731 = vld [vmem:[%s175 + $0x38] sm:$0xff]
      %v732 = vld [vmem:[%s175 + $0x40] sm:$0xff]
      %v733 = vld [vmem:[%s175 + $0x48] sm:$0xff]
      %v734 = vld [vmem:[%s175 + $0x50] sm:$0xff]
      %v735 = vld [vmem:[%s175 + $0x58] sm:$0xff]
      %v736 = vld [vmem:[%s175 + $0x60] sm:$0xff]
      %v737 = vld [vmem:[%s175 + $0x68] sm:$0xff]
      %v738 = vld [vmem:[%s175 + $0x70] sm:$0xff]
      %v739 = vld [vmem:[%s175 + $0x78] sm:$0xff]
      %s740 = scalar_lea.vmem %s175, 128
      %v741 = vld [vmem:[%s740] sm:$0xff]
      %v742 = vld [vmem:[%s740 + $0x8] sm:$0xff]
      %v743 = vld [vmem:[%s740 + $0x10] sm:$0xff]
      %v744 = vld [vmem:[%s740 + $0x18] sm:$0xff]
      %v745 = vld [vmem:[%s740 + $0x20] sm:$0xff]
      %v746 = vld [vmem:[%s740 + $0x28] sm:$0xff]
      %v747 = vld [vmem:[%s740 + $0x30] sm:$0xff]
      %v748 = vld [vmem:[%s740 + $0x38] sm:$0xff]
      %v749 = vld [vmem:[%s740 + $0x40] sm:$0xff]
      %v750 = vld [vmem:[%s740 + $0x48] sm:$0xff]
      %v751 = vld [vmem:[%s740 + $0x50] sm:$0xff]
      %v752 = vld [vmem:[%s740 + $0x58] sm:$0xff]
      %v753 = vld [vmem:[%s740 + $0x60] sm:$0xff]
      %v754 = vld [vmem:[%s740 + $0x68] sm:$0xff]
      %v755 = vld [vmem:[%s740 + $0x70] sm:$0xff]
      %v756 = vld [vmem:[%s740 + $0x78] sm:$0xff]
      %757 = vmatprep.subr.mxu0 0.0
      %758 = vmatpush1.msra.mxu0 %v741
      %759 = vmatprep.subr.mxu0 0.0
      %760 = vmatpush1.msra.mxu0 %v742
      %761 = vmatprep.subr.mxu0 0.0
      %762 = vmatpush1.msra.mxu0 %v743
      %763 = vmatprep.subr.mxu0 0.0
      %764 = vmatpush1.msra.mxu0 %v744
      %765 = vmatprep.subr.mxu0 0.0
      %766 = vmatpush1.msra.mxu0 %v745
      %767 = vmatprep.subr.mxu0 0.0
      %768 = vmatpush1.msra.mxu0 %v746
      %769 = vmatprep.subr.mxu0 0.0
      %770 = vmatpush1.msra.mxu0 %v747
      %771 = vmatprep.subr.mxu0 0.0
      %772 = vmatpush1.msra.mxu0 %v748
      %773 = vmatprep.subr.mxu0 0.0
      %774 = vmatpush1.msra.mxu0 %v749
      %775 = vmatprep.subr.mxu0 0.0
      %776 = vmatpush1.msra.mxu0 %v750
      %777 = vmatprep.subr.mxu0 0.0
      %778 = vmatpush1.msra.mxu0 %v751
      %779 = vmatprep.subr.mxu0 0.0
      %780 = vmatpush1.msra.mxu0 %v752
      %781 = vmatprep.subr.mxu0 0.0
      %782 = vmatpush1.msra.mxu0 %v753
      %783 = vmatprep.subr.mxu0 0.0
      %784 = vmatpush1.msra.mxu0 %v754
      %785 = vmatprep.subr.mxu0 0.0
      %786 = vmatpush1.msra.mxu0 %v755
      %787 = vmatprep.subr.mxu0 0.0
      %788 = vmatpush1.msra.mxu0 %v756
      %789 = vmatprep.subr.mxu0 0.0
      %790 = vmatpush1.msra.mxu0 0.0
      %791 = vmatprep.subr.mxu0 0.0
      %792 = vmatpush1.msra.mxu0 0.0
      %793 = vmatprep.subr.mxu0 0.0
      %794 = vmatpush1.msra.mxu0 0.0
      %795 = vmatprep.subr.mxu0 0.0
      %796 = vmatpush1.msra.mxu0 0.0
      %797 = vmatprep.subr.mxu0 0.0
      %798 = vmatpush1.msra.mxu0 0.0
      %799 = vmatprep.subr.mxu0 0.0
      %800 = vmatpush1.msra.mxu0 0.0
      %801 = vmatprep.subr.mxu0 0.0
      %802 = vmatpush1.msra.mxu0 0.0
      %803 = vmatprep.subr.mxu0 0.0
      %804 = vmatpush1.msra.mxu0 0.0
      %805 = vmatprep.subr.mxu0 0.0
      %806 = vmatpush1.msra.mxu0 0.0
      %807 = vmatprep.subr.mxu0 0.0
      %808 = vmatpush1.msra.mxu0 0.0
      %809 = vmatprep.subr.mxu0 0.0
      %810 = vmatpush1.msra.mxu0 0.0
      %811 = vmatprep.subr.mxu0 0.0
      %812 = vmatpush1.msra.mxu0 0.0
      %813 = vmatprep.subr.mxu0 0.0
      %814 = vmatpush1.msra.mxu0 0.0
      %815 = vmatprep.subr.mxu0 0.0
      %816 = vmatpush1.msra.mxu0 0.0
      %817 = vmatprep.subr.mxu0 0.0
      %818 = vmatpush1.msra.mxu0 0.0
      %819 = vmatprep.subr.mxu0 0.0
      %820 = vmatpush1.msra.mxu0 0.0
      %821 = vmatprep.mubr.f32.mxu0 0.0
      %822 = vmatmul.mubr.f32.gmra.mrb[0].mxu0 %v651
      %v823 = vpop.f32.mrb[0].mxu0
      %v824 = vadd.f32 0.0, %v823
      %v825 = vpop.f32.mrb[0].mxu0
      %826 = vmatprep.mubr.f32.mxu0 0.0
      %827 = vmatmul.mubr.f32.gmra.mrb[0].mxu0 %v652
      %v828 = vpop.f32.mrb[0].mxu0
      %v829 = vadd.f32 0.0, %v828
      %v830 = vpop.f32.mrb[0].mxu0
      %831 = vmatprep.mubr.f32.mxu0 0.0
      %832 = vmatmul.mubr.f32.gmra.mrb[0].mxu0 %v653
      %v833 = vpop.f32.mrb[0].mxu0
      %v834 = vadd.f32 0.0, %v833
      %v835 = vpop.f32.mrb[0].mxu0
      %836 = vmatprep.mubr.f32.mxu0 0.0
      %837 = vmatmul.mubr.f32.gmra.mrb[0].mxu0 %v654
      %v838 = vpop.f32.mrb[0].mxu0
      %v839 = vadd.f32 0.0, %v838
      %v840 = vpop.f32.mrb[0].mxu0
      %841 = vmatprep.mubr.f32.mxu0 0.0
      %842 = vmatmul.mubr.f32.gmra.mrb[0].mxu0 %v655
      %v843 = vpop.f32.mrb[0].mxu0
      %v844 = vadd.f32 0.0, %v843
      %v845 = vpop.f32.mrb[0].mxu0
      %846 = vmatprep.mubr.f32.mxu0 0.0
      %847 = vmatmul.mubr.f32.gmra.mrb[0].mxu0 %v656
      %v848 = vpop.f32.mrb[0].mxu0
      %v849 = vadd.f32 0.0, %v848
      %v850 = vpop.f32.mrb[0].mxu0
      %851 = vmatprep.mubr.f32.mxu0 0.0
      %852 = vmatmul.mubr.f32.gmra.mrb[0].mxu0 %v657
      %v853 = vpop.f32.mrb[0].mxu0
      %v854 = vadd.f32 0.0, %v853
      %v855 = vpop.f32.mrb[0].mxu0
      %856 = vmatprep.mubr.f32.mxu0 0.0
      %857 = vmatmul.mubr.f32.gmra.mrb[0].mxu0 %v658
      %v858 = vpop.f32.mrb[0].mxu0
      %v859 = vadd.f32 0.0, %v858
      %v860 = vpop.f32.mrb[0].mxu0
      %861 = vmatprep.mubr.f32.mxu0 0.0
      %862 = vmatmul.mubr.f32.gmra.mrb[0].mxu0 %v659
      %v863 = vpop.f32.mrb[0].mxu0
      %v864 = vadd.f32 0.0, %v863
      %v865 = vpop.f32.mrb[0].mxu0
      %866 = vmatprep.mubr.f32.mxu0 0.0
      %867 = vmatmul.mubr.f32.gmra.mrb[0].mxu0 %v660
      %v868 = vpop.f32.mrb[0].mxu0
      %v869 = vadd.f32 0.0, %v868
      %v870 = vpop.f32.mrb[0].mxu0
      %871 = vmatprep.mubr.f32.mxu0 0.0
      %872 = vmatmul.mubr.f32.gmra.mrb[0].mxu0 %v661
      %v873 = vpop.f32.mrb[0].mxu0
      %v874 = vadd.f32 0.0, %v873
      %v875 = vpop.f32.mrb[0].mxu0
      %876 = vmatprep.mubr.f32.mxu0 0.0
      %877 = vmatmul.mubr.f32.gmra.mrb[0].mxu0 %v662
      %v878 = vpop.f32.mrb[0].mxu0
      %v879 = vadd.f32 0.0, %v878
      %v880 = vpop.f32.mrb[0].mxu0
      %881 = vmatprep.mubr.f32.mxu0 0.0
      %882 = vmatmul.mubr.f32.gmra.mrb[0].mxu0 %v663
      %v883 = vpop.f32.mrb[0].mxu0
      %v884 = vadd.f32 0.0, %v883
      %v885 = vpop.f32.mrb[0].mxu0
      %886 = vmatprep.mubr.f32.mxu0 0.0
      %887 = vmatmul.mubr.f32.gmra.mrb[0].mxu0 %v664
      %v888 = vpop.f32.mrb[0].mxu0
      %v889 = vadd.f32 0.0, %v888
      %v890 = vpop.f32.mrb[0].mxu0
      %891 = vmatprep.mubr.f32.mxu0 0.0
      %892 = vmatmul.mubr.f32.gmra.mrb[0].mxu0 %v665
      %v893 = vpop.f32.mrb[0].mxu0
      %v894 = vadd.f32 0.0, %v893
      %v895 = vpop.f32.mrb[0].mxu0
      %896 = vmatprep.mubr.f32.mxu0 0.0
      %897 = vmatmul.mubr.f32.gmra.mrb[0].mxu0 %v666
      %v898 = vpop.f32.mrb[0].mxu0
      %v899 = vadd.f32 0.0, %v898
      %v900 = vpop.f32.mrb[0].mxu0
      %901 = vmatprep.mubr.f32.mxu0 0.0
      %902 = vmatmul.mubr.f32.gmra.mrb[0].mxu0 %v667
      %v903 = vpop.f32.mrb[0].mxu0
      %v904 = vadd.f32 0.0, %v903
      %v905 = vpop.f32.mrb[0].mxu0
      %906 = vmatprep.mubr.f32.mxu0 0.0
      %907 = vmatmul.mubr.f32.gmra.mrb[0].mxu0 %v668
      %v908 = vpop.f32.mrb[0].mxu0
      %v909 = vadd.f32 0.0, %v908
      %v910 = vpop.f32.mrb[0].mxu0
      %911 = vmatprep.mubr.f32.mxu0 0.0
      %912 = vmatmul.mubr.f32.gmra.mrb[0].mxu0 %v669
      %v913 = vpop.f32.mrb[0].mxu0
      %v914 = vadd.f32 0.0, %v913
      %v915 = vpop.f32.mrb[0].mxu0
      %916 = vmatprep.mubr.f32.mxu0 0.0
      %917 = vmatmul.mubr.f32.gmra.mrb[0].mxu0 %v670
      %v918 = vpop.f32.mrb[0].mxu0
      %v919 = vadd.f32 0.0, %v918
      %v920 = vpop.f32.mrb[0].mxu0
      %921 = vmatprep.mubr.f32.mxu0 0.0
      %922 = vmatmul.mubr.f32.gmra.mrb[0].mxu0 %v671
      %v923 = vpop.f32.mrb[0].mxu0
      %v924 = vadd.f32 0.0, %v923
      %v925 = vpop.f32.mrb[0].mxu0
      %926 = vmatprep.mubr.f32.mxu0 0.0
      %927 = vmatmul.mubr.f32.gmra.mrb[0].mxu0 %v672
      %v928 = vpop.f32.mrb[0].mxu0
      %v929 = vadd.f32 0.0, %v928
      %v930 = vpop.f32.mrb[0].mxu0
      %931 = vmatprep.mubr.f32.mxu0 0.0
      %932 = vmatmul.mubr.f32.gmra.mrb[0].mxu0 %v673
      %v933 = vpop.f32.mrb[0].mxu0
      %v934 = vadd.f32 0.0, %v933
      %v935 = vpop.f32.mrb[0].mxu0
      %936 = vmatprep.mubr.f32.mxu0 0.0
      %937 = vmatmul.mubr.f32.gmra.mrb[0].mxu0 %v674
      %v938 = vpop.f32.mrb[0].mxu0
      %v939 = vadd.f32 0.0, %v938
      %v940 = vpop.f32.mrb[0].mxu0
      %941 = vmatprep.mubr.f32.mxu0 0.0
      %942 = vmatmul.mubr.f32.gmra.mrb[0].mxu0 %v675
      %v943 = vpop.f32.mrb[0].mxu0
      %v944 = vadd.f32 0.0, %v943
      %v945 = vpop.f32.mrb[0].mxu0
      %946 = vmatprep.mubr.f32.mxu0 0.0
      %947 = vmatmul.mubr.f32.gmra.mrb[0].mxu0 %v676
      %v948 = vpop.f32.mrb[0].mxu0
      %v949 = vadd.f32 0.0, %v948
      %v950 = vpop.f32.mrb[0].mxu0
      %951 = vmatprep.mubr.f32.mxu0 0.0
      %952 = vmatmul.mubr.f32.gmra.mrb[0].mxu0 %v677
      %v953 = vpop.f32.mrb[0].mxu0
      %v954 = vadd.f32 0.0, %v953
      %v955 = vpop.f32.mrb[0].mxu0
      %956 = vmatprep.mubr.f32.mxu0 0.0
      %957 = vmatmul.mubr.f32.gmra.mrb[0].mxu0 %v678
      %v958 = vpop.f32.mrb[0].mxu0
      %v959 = vadd.f32 0.0, %v958
      %v960 = vpop.f32.mrb[0].mxu0
      %961 = vmatprep.mubr.f32.mxu0 0.0
      %962 = vmatmul.mubr.f32.gmra.mrb[0].mxu0 %v679
      %v963 = vpop.f32.mrb[0].mxu0
      %v964 = vadd.f32 0.0, %v963
      %v965 = vpop.f32.mrb[0].mxu0
      %966 = vmatprep.mubr.f32.mxu0 0.0
      %967 = vmatmul.mubr.f32.gmra.mrb[0].mxu0 %v680
      %v968 = vpop.f32.mrb[0].mxu0
      %v969 = vadd.f32 0.0, %v968
      %v970 = vpop.f32.mrb[0].mxu0
      %971 = vmatprep.mubr.f32.mxu0 0.0
      %972 = vmatmul.mubr.f32.gmra.mrb[0].mxu0 %v681
      %v973 = vpop.f32.mrb[0].mxu0
      %v974 = vadd.f32 0.0, %v973
      %v975 = vpop.f32.mrb[0].mxu0
      %976 = vmatprep.mubr.f32.mxu0 0.0
      %977 = vmatmul.mubr.f32.gmra.mrb[0].mxu0 %v682
      %v978 = vpop.f32.mrb[0].mxu0
      %v979 = vadd.f32 0.0, %v978
      %v980 = vpop.f32.mrb[0].mxu0
      %981 = vdwg.mxu0
      %982 = vmatprep.subr.mxu0 0.0
      %983 = vmatpush1.msra.mxu0 %v724
      %984 = vmatprep.subr.mxu0 0.0
      %985 = vmatpush1.msra.mxu0 %v725
      %986 = vmatprep.subr.mxu0 0.0
      %987 = vmatpush1.msra.mxu0 %v726
      %988 = vmatprep.subr.mxu0 0.0
      %989 = vmatpush1.msra.mxu0 %v727
      %990 = vmatprep.subr.mxu0 0.0
      %991 = vmatpush1.msra.mxu0 %v728
      %992 = vmatprep.subr.mxu0 0.0
      %993 = vmatpush1.msra.mxu0 %v729
      %994 = vmatprep.subr.mxu0 0.0
      %995 = vmatpush1.msra.mxu0 %v730
      %996 = vmatprep.subr.mxu0 0.0
      %997 = vmatpush1.msra.mxu0 %v731
      %998 = vmatprep.subr.mxu0 0.0
      %999 = vmatpush1.msra.mxu0 %v732
      %1000 = vmatprep.subr.mxu0 0.0
      %1001 = vmatpush1.msra.mxu0 %v733
      %1002 = vmatprep.subr.mxu0 0.0
      %1003 = vmatpush1.msra.mxu0 %v734
      %1004 = vmatprep.subr.mxu0 0.0
      %1005 = vmatpush1.msra.mxu0 %v735
      %1006 = vmatprep.subr.mxu0 0.0
      %1007 = vmatpush1.msra.mxu0 %v736
      %1008 = vmatprep.subr.mxu0 0.0
      %1009 = vmatpush1.msra.mxu0 %v737
      %1010 = vmatprep.subr.mxu0 0.0
      %1011 = vmatpush1.msra.mxu0 %v738
      %1012 = vmatprep.subr.mxu0 0.0
      %1013 = vmatpush1.msra.mxu0 %v739
      %1014 = vmatprep.subr.mxu0 0.0
      %1015 = vmatpush1.msra.mxu0 0.0
      %1016 = vmatprep.subr.mxu0 0.0
      %1017 = vmatpush1.msra.mxu0 0.0
      %1018 = vmatprep.subr.mxu0 0.0
      %1019 = vmatpush1.msra.mxu0 0.0
      %1020 = vmatprep.subr.mxu0 0.0
      %1021 = vmatpush1.msra.mxu0 0.0
      %1022 = vmatprep.subr.mxu0 0.0
      %1023 = vmatpush1.msra.mxu0 0.0
      %1024 = vmatprep.subr.mxu0 0.0
      %1025 = vmatpush1.msra.mxu0 0.0
      %1026 = vmatprep.subr.mxu0 0.0
      %1027 = vmatpush1.msra.mxu0 0.0
      %1028 = vmatprep.subr.mxu0 0.0
      %1029 = vmatpush1.msra.mxu0 0.0
      %1030 = vmatprep.subr.mxu0 0.0
      %1031 = vmatpush1.msra.mxu0 0.0
      %1032 = vmatprep.subr.mxu0 0.0
      %1033 = vmatpush1.msra.mxu0 0.0
      %1034 = vmatprep.subr.mxu0 0.0
      %1035 = vmatpush1.msra.mxu0 0.0
      %1036 = vmatprep.subr.mxu0 0.0
      %1037 = vmatpush1.msra.mxu0 0.0
      %1038 = vmatprep.subr.mxu0 0.0
      %1039 = vmatpush1.msra.mxu0 0.0
      %1040 = vmatprep.subr.mxu0 0.0
      %1041 = vmatpush1.msra.mxu0 0.0
      %1042 = vmatprep.subr.mxu0 0.0
      %1043 = vmatpush1.msra.mxu0 0.0
      %1044 = vmatprep.subr.mxu0 0.0
      %1045 = vmatpush1.msra.mxu0 0.0
      %1046 = vmatprep.mubr.f32.mxu0 0.0
      %1047 = vmatmul.mubr.f32.gmra.mrb[0].mxu0 %v615
      %v1048 = vpop.f32.mrb[0].mxu0
      %v1049 = vadd.f32 %v824, %v1048
      %v1050 = vpop.f32.mrb[0].mxu0
      %1051 = vmatprep.mubr.f32.mxu0 0.0
      %1052 = vmatmul.mubr.f32.gmra.mrb[0].mxu0 %v616
      %v1053 = vpop.f32.mrb[0].mxu0
      %v1054 = vadd.f32 %v829, %v1053
      %v1055 = vpop.f32.mrb[0].mxu0
      %1056 = vmatprep.mubr.f32.mxu0 0.0
      %1057 = vmatmul.mubr.f32.gmra.mrb[0].mxu0 %v617
      %v1058 = vpop.f32.mrb[0].mxu0
      %v1059 = vadd.f32 %v834, %v1058
      %v1060 = vpop.f32.mrb[0].mxu0
      %1061 = vmatprep.mubr.f32.mxu0 0.0
      %1062 = vmatmul.mubr.f32.gmra.mrb[0].mxu0 %v618
      %v1063 = vpop.f32.mrb[0].mxu0
      %v1064 = vadd.f32 %v839, %v1063
      %v1065 = vpop.f32.mrb[0].mxu0
      %1066 = vmatprep.mubr.f32.mxu0 0.0
      %1067 = vmatmul.mubr.f32.gmra.mrb[0].mxu0 %v619
      %v1068 = vpop.f32.mrb[0].mxu0
      %v1069 = vadd.f32 %v844, %v1068
      %v1070 = vpop.f32.mrb[0].mxu0
      %1071 = vmatprep.mubr.f32.mxu0 0.0
      %1072 = vmatmul.mubr.f32.gmra.mrb[0].mxu0 %v620
      %v1073 = vpop.f32.mrb[0].mxu0
      %v1074 = vadd.f32 %v849, %v1073
      %v1075 = vpop.f32.mrb[0].mxu0
      %1076 = vmatprep.mubr.f32.mxu0 0.0
      %1077 = vmatmul.mubr.f32.gmra.mrb[0].mxu0 %v621
      %v1078 = vpop.f32.mrb[0].mxu0
      %v1079 = vadd.f32 %v854, %v1078
      %v1080 = vpop.f32.mrb[0].mxu0
      %1081 = vmatprep.mubr.f32.mxu0 0.0
      %1082 = vmatmul.mubr.f32.gmra.mrb[0].mxu0 %v622
      %v1083 = vpop.f32.mrb[0].mxu0
      %v1084 = vadd.f32 %v859, %v1083
      %v1085 = vpop.f32.mrb[0].mxu0
      %1086 = vmatprep.mubr.f32.mxu0 0.0
      %1087 = vmatmul.mubr.f32.gmra.mrb[0].mxu0 %v623
      %v1088 = vpop.f32.mrb[0].mxu0
      %v1089 = vadd.f32 %v864, %v1088
      %v1090 = vpop.f32.mrb[0].mxu0
      %1091 = vmatprep.mubr.f32.mxu0 0.0
      %1092 = vmatmul.mubr.f32.gmra.mrb[0].mxu0 %v624
      %v1093 = vpop.f32.mrb[0].mxu0
      %v1094 = vadd.f32 %v869, %v1093
      %v1095 = vpop.f32.mrb[0].mxu0
      %1096 = vmatprep.mubr.f32.mxu0 0.0
      %1097 = vmatmul.mubr.f32.gmra.mrb[0].mxu0 %v625
      %v1098 = vpop.f32.mrb[0].mxu0
      %v1099 = vadd.f32 %v874, %v1098
      %v1100 = vpop.f32.mrb[0].mxu0
      %1101 = vmatprep.mubr.f32.mxu0 0.0
      %1102 = vmatmul.mubr.f32.gmra.mrb[0].mxu0 %v626
      %v1103 = vpop.f32.mrb[0].mxu0
      %v1104 = vadd.f32 %v879, %v1103
      %v1105 = vpop.f32.mrb[0].mxu0
      %1106 = vmatprep.mubr.f32.mxu0 0.0
      %1107 = vmatmul.mubr.f32.gmra.mrb[0].mxu0 %v627
      %v1108 = vpop.f32.mrb[0].mxu0
      %v1109 = vadd.f32 %v884, %v1108
      %v1110 = vpop.f32.mrb[0].mxu0
      %1111 = vmatprep.mubr.f32.mxu0 0.0
      %1112 = vmatmul.mubr.f32.gmra.mrb[0].mxu0 %v628
      %v1113 = vpop.f32.mrb[0].mxu0
      %v1114 = vadd.f32 %v889, %v1113
      %v1115 = vpop.f32.mrb[0].mxu0
      %1116 = vmatprep.mubr.f32.mxu0 0.0
      %1117 = vmatmul.mubr.f32.gmra.mrb[0].mxu0 %v629
      %v1118 = vpop.f32.mrb[0].mxu0
      %v1119 = vadd.f32 %v894, %v1118
      %v1120 = vpop.f32.mrb[0].mxu0
      %1121 = vmatprep.mubr.f32.mxu0 0.0
      %1122 = vmatmul.mubr.f32.gmra.mrb[0].mxu0 %v630
      %v1123 = vpop.f32.mrb[0].mxu0
      %v1124 = vadd.f32 %v899, %v1123
      %v1125 = vpop.f32.mrb[0].mxu0
      %1126 = vmatprep.mubr.f32.mxu0 0.0
      %1127 = vmatmul.mubr.f32.gmra.mrb[0].mxu0 %v631
      %v1128 = vpop.f32.mrb[0].mxu0
      %v1129 = vadd.f32 %v904, %v1128
      %v1130 = vpop.f32.mrb[0].mxu0
      %1131 = vmatprep.mubr.f32.mxu0 0.0
      %1132 = vmatmul.mubr.f32.gmra.mrb[0].mxu0 %v632
      %v1133 = vpop.f32.mrb[0].mxu0
      %v1134 = vadd.f32 %v909, %v1133
      %v1135 = vpop.f32.mrb[0].mxu0
      %1136 = vmatprep.mubr.f32.mxu0 0.0
      %1137 = vmatmul.mubr.f32.gmra.mrb[0].mxu0 %v633
      %v1138 = vpop.f32.mrb[0].mxu0
      %v1139 = vadd.f32 %v914, %v1138
      %v1140 = vpop.f32.mrb[0].mxu0
      %1141 = vmatprep.mubr.f32.mxu0 0.0
      %1142 = vmatmul.mubr.f32.gmra.mrb[0].mxu0 %v634
      %v1143 = vpop.f32.mrb[0].mxu0
      %v1144 = vadd.f32 %v919, %v1143
      %v1145 = vpop.f32.mrb[0].mxu0
      %1146 = vmatprep.mubr.f32.mxu0 0.0
      %1147 = vmatmul.mubr.f32.gmra.mrb[0].mxu0 %v635
      %v1148 = vpop.f32.mrb[0].mxu0
      %v1149 = vadd.f32 %v924, %v1148
      %v1150 = vpop.f32.mrb[0].mxu0
      %1151 = vmatprep.mubr.f32.mxu0 0.0
      %1152 = vmatmul.mubr.f32.gmra.mrb[0].mxu0 %v636
      %v1153 = vpop.f32.mrb[0].mxu0
      %v1154 = vadd.f32 %v929, %v1153
      %v1155 = vpop.f32.mrb[0].mxu0
      %1156 = vmatprep.mubr.f32.mxu0 0.0
      %1157 = vmatmul.mubr.f32.gmra.mrb[0].mxu0 %v637
      %v1158 = vpop.f32.mrb[0].mxu0
      %v1159 = vadd.f32 %v934, %v1158
      %v1160 = vpop.f32.mrb[0].mxu0
      %1161 = vmatprep.mubr.f32.mxu0 0.0
      %1162 = vmatmul.mubr.f32.gmra.mrb[0].mxu0 %v638
      %v1163 = vpop.f32.mrb[0].mxu0
      %v1164 = vadd.f32 %v939, %v1163
      %v1165 = vpop.f32.mrb[0].mxu0
      %1166 = vmatprep.mubr.f32.mxu0 0.0
      %1167 = vmatmul.mubr.f32.gmra.mrb[0].mxu0 %v639
      %v1168 = vpop.f32.mrb[0].mxu0
      %v1169 = vadd.f32 %v944, %v1168
      %v1170 = vpop.f32.mrb[0].mxu0
      %1171 = vmatprep.mubr.f32.mxu0 0.0
      %1172 = vmatmul.mubr.f32.gmra.mrb[0].mxu0 %v640
      %v1173 = vpop.f32.mrb[0].mxu0
      %v1174 = vadd.f32 %v949, %v1173
      %v1175 = vpop.f32.mrb[0].mxu0
      %1176 = vmatprep.mubr.f32.mxu0 0.0
      %1177 = vmatmul.mubr.f32.gmra.mrb[0].mxu0 %v641
      %v1178 = vpop.f32.mrb[0].mxu0
      %v1179 = vadd.f32 %v954, %v1178
      %v1180 = vpop.f32.mrb[0].mxu0
      %1181 = vmatprep.mubr.f32.mxu0 0.0
      %1182 = vmatmul.mubr.f32.gmra.mrb[0].mxu0 %v642
      %v1183 = vpop.f32.mrb[0].mxu0
      %v1184 = vadd.f32 %v959, %v1183
      %v1185 = vpop.f32.mrb[0].mxu0
      %1186 = vmatprep.mubr.f32.mxu0 0.0
      %1187 = vmatmul.mubr.f32.gmra.mrb[0].mxu0 %v643
      %v1188 = vpop.f32.mrb[0].mxu0
      %v1189 = vadd.f32 %v964, %v1188
      %v1190 = vpop.f32.mrb[0].mxu0
      %1191 = vmatprep.mubr.f32.mxu0 0.0
      %1192 = vmatmul.mubr.f32.gmra.mrb[0].mxu0 %v644
      %v1193 = vpop.f32.mrb[0].mxu0
      %v1194 = vadd.f32 %v969, %v1193
      %v1195 = vpop.f32.mrb[0].mxu0
      %1196 = vmatprep.mubr.f32.mxu0 0.0
      %1197 = vmatmul.mubr.f32.gmra.mrb[0].mxu0 %v645
      %v1198 = vpop.f32.mrb[0].mxu0
      %v1199 = vadd.f32 %v974, %v1198
      %v1200 = vpop.f32.mrb[0].mxu0
      %1201 = vmatprep.mubr.f32.mxu0 0.0
      %1202 = vmatmul.mubr.f32.gmra.mrb[0].mxu0 %v646
      %v1203 = vpop.f32.mrb[0].mxu0
      %v1204 = vadd.f32 %v979, %v1203
      %v1205 = vpop.f32.mrb[0].mxu0
      %1206 = vdwg.mxu0
      %s1207 = scalar_lea.vmem %s175, 256
      %v1208 = vld [vmem:[%s1207] sm:$0xff]
      %v1209 = vld [vmem:[%s1207 + $0x8] sm:$0xff]
      %v1210 = vld [vmem:[%s1207 + $0x10] sm:$0xff]
      %v1211 = vld [vmem:[%s1207 + $0x18] sm:$0xff]
      %v1212 = vld [vmem:[%s1207 + $0x20] sm:$0xff]
      %v1213 = vld [vmem:[%s1207 + $0x28] sm:$0xff]
      %v1214 = vld [vmem:[%s1207 + $0x30] sm:$0xff]
      %v1215 = vld [vmem:[%s1207 + $0x38] sm:$0xff]
      %v1216 = vld [vmem:[%s1207 + $0x40] sm:$0xff]
      %v1217 = vld [vmem:[%s1207 + $0x48] sm:$0xff]
      %v1218 = vld [vmem:[%s1207 + $0x50] sm:$0xff]
      %v1219 = vld [vmem:[%s1207 + $0x58] sm:$0xff]
      %v1220 = vld [vmem:[%s1207 + $0x60] sm:$0xff]
      %v1221 = vld [vmem:[%s1207 + $0x68] sm:$0xff]
      %v1222 = vld [vmem:[%s1207 + $0x70] sm:$0xff]
      %v1223 = vld [vmem:[%s1207 + $0x78] sm:$0xff]
      %1224 = vmatprep.subr.mxu0 0.0
      %1225 = vmatpush1.msra.mxu0 %v1208
      %1226 = vmatprep.subr.mxu0 0.0
      %1227 = vmatpush1.msra.mxu0 %v1209
      %1228 = vmatprep.subr.mxu0 0.0
      %1229 = vmatpush1.msra.mxu0 %v1210
      %1230 = vmatprep.subr.mxu0 0.0
      %1231 = vmatpush1.msra.mxu0 %v1211
      %1232 = vmatprep.subr.mxu0 0.0
      %1233 = vmatpush1.msra.mxu0 %v1212
      %1234 = vmatprep.subr.mxu0 0.0
      %1235 = vmatpush1.msra.mxu0 %v1213
      %1236 = vmatprep.subr.mxu0 0.0
      %1237 = vmatpush1.msra.mxu0 %v1214
      %1238 = vmatprep.subr.mxu0 0.0
      %1239 = vmatpush1.msra.mxu0 %v1215
      %1240 = vmatprep.subr.mxu0 0.0
      %1241 = vmatpush1.msra.mxu0 %v1216
      %1242 = vmatprep.subr.mxu0 0.0
      %1243 = vmatpush1.msra.mxu0 %v1217
      %1244 = vmatprep.subr.mxu0 0.0
      %1245 = vmatpush1.msra.mxu0 %v1218
      %1246 = vmatprep.subr.mxu0 0.0
      %1247 = vmatpush1.msra.mxu0 %v1219
      %1248 = vmatprep.subr.mxu0 0.0
      %1249 = vmatpush1.msra.mxu0 %v1220
      %1250 = vmatprep.subr.mxu0 0.0
      %1251 = vmatpush1.msra.mxu0 %v1221
      %1252 = vmatprep.subr.mxu0 0.0
      %1253 = vmatpush1.msra.mxu0 %v1222
      %1254 = vmatprep.subr.mxu0 0.0
      %1255 = vmatpush1.msra.mxu0 %v1223
      %1256 = vmatprep.subr.mxu0 0.0
      %1257 = vmatpush1.msra.mxu0 0.0
      %1258 = vmatprep.subr.mxu0 0.0
      %1259 = vmatpush1.msra.mxu0 0.0
      %1260 = vmatprep.subr.mxu0 0.0
      %1261 = vmatpush1.msra.mxu0 0.0
      %1262 = vmatprep.subr.mxu0 0.0
      %1263 = vmatpush1.msra.mxu0 0.0
      %1264 = vmatprep.subr.mxu0 0.0
      %1265 = vmatpush1.msra.mxu0 0.0
      %1266 = vmatprep.subr.mxu0 0.0
      %1267 = vmatpush1.msra.mxu0 0.0
      %1268 = vmatprep.subr.mxu0 0.0
      %1269 = vmatpush1.msra.mxu0 0.0
      %1270 = vmatprep.subr.mxu0 0.0
      %1271 = vmatpush1.msra.mxu0 0.0
      %1272 = vmatprep.subr.mxu0 0.0
      %1273 = vmatpush1.msra.mxu0 0.0
      %1274 = vmatprep.subr.mxu0 0.0
      %1275 = vmatpush1.msra.mxu0 0.0
      %1276 = vmatprep.subr.mxu0 0.0
      %1277 = vmatpush1.msra.mxu0 0.0
      %1278 = vmatprep.subr.mxu0 0.0
      %1279 = vmatpush1.msra.mxu0 0.0
      %1280 = vmatprep.subr.mxu0 0.0
      %1281 = vmatpush1.msra.mxu0 0.0
      %1282 = vmatprep.subr.mxu0 0.0
      %1283 = vmatpush1.msra.mxu0 0.0
      %1284 = vmatprep.subr.mxu0 0.0
      %1285 = vmatpush1.msra.mxu0 0.0
      %1286 = vmatprep.subr.mxu0 0.0
      %1287 = vmatpush1.msra.mxu0 0.0
      %1288 = vmatprep.mubr.f32.mxu0 0.0
      %1289 = vmatmul.mubr.f32.gmra.mrb[0].mxu0 %v617
      %v1290 = vpop.f32.mrb[0].mxu0
      %v1291 = vadd.f32 0.0, %v1290
      %v1292 = vpop.f32.mrb[0].mxu0
      %1293 = vmatprep.mubr.f32.mxu0 0.0
      %1294 = vmatmul.mubr.f32.gmra.mrb[0].mxu0 %v618
      %v1295 = vpop.f32.mrb[0].mxu0
      %v1296 = vadd.f32 0.0, %v1295
      %v1297 = vpop.f32.mrb[0].mxu0
      %1298 = vmatprep.mubr.f32.mxu0 0.0
      %1299 = vmatmul.mubr.f32.gmra.mrb[0].mxu0 %v619
      %v1300 = vpop.f32.mrb[0].mxu0
      %v1301 = vadd.f32 0.0, %v1300
      %v1302 = vpop.f32.mrb[0].mxu0
      %1303 = vmatprep.mubr.f32.mxu0 0.0
      %1304 = vmatmul.mubr.f32.gmra.mrb[0].mxu0 %v620
      %v1305 = vpop.f32.mrb[0].mxu0
      %v1306 = vadd.f32 0.0, %v1305
      %v1307 = vpop.f32.mrb[0].mxu0
      %1308 = vmatprep.mubr.f32.mxu0 0.0
      %1309 = vmatmul.mubr.f32.gmra.mrb[0].mxu0 %v621
      %v1310 = vpop.f32.mrb[0].mxu0
      %v1311 = vadd.f32 0.0, %v1310
      %v1312 = vpop.f32.mrb[0].mxu0
      %1313 = vmatprep.mubr.f32.mxu0 0.0
      %1314 = vmatmul.mubr.f32.gmra.mrb[0].mxu0 %v622
      %v1315 = vpop.f32.mrb[0].mxu0
      %v1316 = vadd.f32 0.0, %v1315
      %v1317 = vpop.f32.mrb[0].mxu0
      %1318 = vmatprep.mubr.f32.mxu0 0.0
      %1319 = vmatmul.mubr.f32.gmra.mrb[0].mxu0 %v623
      %v1320 = vpop.f32.mrb[0].mxu0
      %v1321 = vadd.f32 0.0, %v1320
      %v1322 = vpop.f32.mrb[0].mxu0
      %1323 = vmatprep.mubr.f32.mxu0 0.0
      %1324 = vmatmul.mubr.f32.gmra.mrb[0].mxu0 %v624
      %v1325 = vpop.f32.mrb[0].mxu0
      %v1326 = vadd.f32 0.0, %v1325
      %v1327 = vpop.f32.mrb[0].mxu0
      %1328 = vmatprep.mubr.f32.mxu0 0.0
      %1329 = vmatmul.mubr.f32.gmra.mrb[0].mxu0 %v625
      %v1330 = vpop.f32.mrb[0].mxu0
      %v1331 = vadd.f32 0.0, %v1330
      %v1332 = vpop.f32.mrb[0].mxu0
      %1333 = vmatprep.mubr.f32.mxu0 0.0
      %1334 = vmatmul.mubr.f32.gmra.mrb[0].mxu0 %v626
      %v1335 = vpop.f32.mrb[0].mxu0
      %v1336 = vadd.f32 0.0, %v1335
      %v1337 = vpop.f32.mrb[0].mxu0
      %1338 = vmatprep.mubr.f32.mxu0 0.0
      %1339 = vmatmul.mubr.f32.gmra.mrb[0].mxu0 %v627
      %v1340 = vpop.f32.mrb[0].mxu0
      %v1341 = vadd.f32 0.0, %v1340
      %v1342 = vpop.f32.mrb[0].mxu0
      %1343 = vmatprep.mubr.f32.mxu0 0.0
      %1344 = vmatmul.mubr.f32.gmra.mrb[0].mxu0 %v628
      %v1345 = vpop.f32.mrb[0].mxu0
      %v1346 = vadd.f32 0.0, %v1345
      %v1347 = vpop.f32.mrb[0].mxu0
      %1348 = vmatprep.mubr.f32.mxu0 0.0
      %1349 = vmatmul.mubr.f32.gmra.mrb[0].mxu0 %v629
      %v1350 = vpop.f32.mrb[0].mxu0
      %v1351 = vadd.f32 0.0, %v1350
      %v1352 = vpop.f32.mrb[0].mxu0
      %1353 = vmatprep.mubr.f32.mxu0 0.0
      %1354 = vmatmul.mubr.f32.gmra.mrb[0].mxu0 %v630
      %v1355 = vpop.f32.mrb[0].mxu0
      %v1356 = vadd.f32 0.0, %v1355
      %v1357 = vpop.f32.mrb[0].mxu0
      %1358 = vmatprep.mubr.f32.mxu0 0.0
      %1359 = vmatmul.mubr.f32.gmra.mrb[0].mxu0 %v631
      %v1360 = vpop.f32.mrb[0].mxu0
      %v1361 = vadd.f32 0.0, %v1360
      %v1362 = vpop.f32.mrb[0].mxu0
      %1363 = vmatprep.mubr.f32.mxu0 0.0
      %1364 = vmatmul.mubr.f32.gmra.mrb[0].mxu0 %v632
      %v1365 = vpop.f32.mrb[0].mxu0
      %v1366 = vadd.f32 0.0, %v1365
      %v1367 = vpop.f32.mrb[0].mxu0
      %1368 = vmatprep.mubr.f32.mxu0 0.0
      %1369 = vmatmul.mubr.f32.gmra.mrb[0].mxu0 %v633
      %v1370 = vpop.f32.mrb[0].mxu0
      %v1371 = vadd.f32 0.0, %v1370
      %v1372 = vpop.f32.mrb[0].mxu0
      %1373 = vmatprep.mubr.f32.mxu0 0.0
      %1374 = vmatmul.mubr.f32.gmra.mrb[0].mxu0 %v634
      %v1375 = vpop.f32.mrb[0].mxu0
      %v1376 = vadd.f32 0.0, %v1375
      %v1377 = vpop.f32.mrb[0].mxu0
      %1378 = vmatprep.mubr.f32.mxu0 0.0
      %1379 = vmatmul.mubr.f32.gmra.mrb[0].mxu0 %v635
      %v1380 = vpop.f32.mrb[0].mxu0
      %v1381 = vadd.f32 0.0, %v1380
      %v1382 = vpop.f32.mrb[0].mxu0
      %1383 = vmatprep.mubr.f32.mxu0 0.0
      %1384 = vmatmul.mubr.f32.gmra.mrb[0].mxu0 %v636
      %v1385 = vpop.f32.mrb[0].mxu0
      %v1386 = vadd.f32 0.0, %v1385
      %v1387 = vpop.f32.mrb[0].mxu0
      %1388 = vmatprep.mubr.f32.mxu0 0.0
      %1389 = vmatmul.mubr.f32.gmra.mrb[0].mxu0 %v637
      %v1390 = vpop.f32.mrb[0].mxu0
      %v1391 = vadd.f32 0.0, %v1390
      %v1392 = vpop.f32.mrb[0].mxu0
      %1393 = vmatprep.mubr.f32.mxu0 0.0
      %1394 = vmatmul.mubr.f32.gmra.mrb[0].mxu0 %v638
      %v1395 = vpop.f32.mrb[0].mxu0
      %v1396 = vadd.f32 0.0, %v1395
      %v1397 = vpop.f32.mrb[0].mxu0
      %1398 = vmatprep.mubr.f32.mxu0 0.0
      %1399 = vmatmul.mubr.f32.gmra.mrb[0].mxu0 %v639
      %v1400 = vpop.f32.mrb[0].mxu0
      %v1401 = vadd.f32 0.0, %v1400
      %v1402 = vpop.f32.mrb[0].mxu0
      %1403 = vmatprep.mubr.f32.mxu0 0.0
      %1404 = vmatmul.mubr.f32.gmra.mrb[0].mxu0 %v640
      %v1405 = vpop.f32.mrb[0].mxu0
      %v1406 = vadd.f32 0.0, %v1405
      %v1407 = vpop.f32.mrb[0].mxu0
      %1408 = vmatprep.mubr.f32.mxu0 0.0
      %1409 = vmatmul.mubr.f32.gmra.mrb[0].mxu0 %v641
      %v1410 = vpop.f32.mrb[0].mxu0
      %v1411 = vadd.f32 0.0, %v1410
      %v1412 = vpop.f32.mrb[0].mxu0
      %1413 = vmatprep.mubr.f32.mxu0 0.0
      %1414 = vmatmul.mubr.f32.gmra.mrb[0].mxu0 %v642
      %v1415 = vpop.f32.mrb[0].mxu0
      %v1416 = vadd.f32 0.0, %v1415
      %v1417 = vpop.f32.mrb[0].mxu0
      %1418 = vmatprep.mubr.f32.mxu0 0.0
      %1419 = vmatmul.mubr.f32.gmra.mrb[0].mxu0 %v643
      %v1420 = vpop.f32.mrb[0].mxu0
      %v1421 = vadd.f32 0.0, %v1420
      %v1422 = vpop.f32.mrb[0].mxu0
      %1423 = vmatprep.mubr.f32.mxu0 0.0
      %1424 = vmatmul.mubr.f32.gmra.mrb[0].mxu0 %v644
      %v1425 = vpop.f32.mrb[0].mxu0
      %v1426 = vadd.f32 0.0, %v1425
      %v1427 = vpop.f32.mrb[0].mxu0
      %1428 = vmatprep.mubr.f32.mxu0 0.0
      %1429 = vmatmul.mubr.f32.gmra.mrb[0].mxu0 %v645
      %v1430 = vpop.f32.mrb[0].mxu0
      %v1431 = vadd.f32 0.0, %v1430
      %v1432 = vpop.f32.mrb[0].mxu0
      %1433 = vmatprep.mubr.f32.mxu0 0.0
      %1434 = vmatmul.mubr.f32.gmra.mrb[0].mxu0 %v646
      %v1435 = vpop.f32.mrb[0].mxu0
      %v1436 = vadd.f32 0.0, %v1435
      %v1437 = vpop.f32.mrb[0].mxu0
      %1438 = vmatprep.mubr.f32.mxu0 0.0
      %1439 = vmatmul.mubr.f32.gmra.mrb[0].mxu0 %v647
      %v1440 = vpop.f32.mrb[0].mxu0
      %v1441 = vadd.f32 0.0, %v1440
      %v1442 = vpop.f32.mrb[0].mxu0
      %1443 = vmatprep.mubr.f32.mxu0 0.0
      %1444 = vmatmul.mubr.f32.gmra.mrb[0].mxu0 %v648
      %v1445 = vpop.f32.mrb[0].mxu0
      %v1446 = vadd.f32 0.0, %v1445
      %v1447 = vpop.f32.mrb[0].mxu0
      %1448 = vdwg.mxu0
      %v1449 = vadd.f32 %v1049, %v1291
      %v1450 = vadd.f32 %v1054, %v1296
      %v1451 = vadd.f32 %v1059, %v1301
      %v1452 = vadd.f32 %v1064, %v1306
      %v1453 = vadd.f32 %v1069, %v1311
      %v1454 = vadd.f32 %v1074, %v1316
      %v1455 = vadd.f32 %v1079, %v1321
      %v1456 = vadd.f32 %v1084, %v1326
      %v1457 = vadd.f32 %v1089, %v1331
      %v1458 = vadd.f32 %v1094, %v1336
      %v1459 = vadd.f32 %v1099, %v1341
      %v1460 = vadd.f32 %v1104, %v1346
      %v1461 = vadd.f32 %v1109, %v1351
      %v1462 = vadd.f32 %v1114, %v1356
      %v1463 = vadd.f32 %v1119, %v1361
      %v1464 = vadd.f32 %v1124, %v1366
      %v1465 = vadd.f32 %v1129, %v1371
      %v1466 = vadd.f32 %v1134, %v1376
      %v1467 = vadd.f32 %v1139, %v1381
      %v1468 = vadd.f32 %v1144, %v1386
      %v1469 = vadd.f32 %v1149, %v1391
      %v1470 = vadd.f32 %v1154, %v1396
      %v1471 = vadd.f32 %v1159, %v1401
      %v1472 = vadd.f32 %v1164, %v1406
      %v1473 = vadd.f32 %v1169, %v1411
      %v1474 = vadd.f32 %v1174, %v1416
      %v1475 = vadd.f32 %v1179, %v1421
      %v1476 = vadd.f32 %v1184, %v1426
      %v1477 = vadd.f32 %v1189, %v1431
      %v1478 = vadd.f32 %v1194, %v1436
      %v1479 = vadd.f32 %v1199, %v1441
      %v1480 = vadd.f32 %v1204, %v1446
      %s1481 = scalar_lea.vmem %s175, 384
      %v1482 = vld [vmem:[%s1481] sm:$0xff]
      %v1483 = vld [vmem:[%s1481 + $0x8] sm:$0xff]
      %v1484 = vld [vmem:[%s1481 + $0x10] sm:$0xff]
      %v1485 = vld [vmem:[%s1481 + $0x18] sm:$0xff]
      %v1486 = vld [vmem:[%s1481 + $0x20] sm:$0xff]
      %v1487 = vld [vmem:[%s1481 + $0x28] sm:$0xff]
      %v1488 = vld [vmem:[%s1481 + $0x30] sm:$0xff]
      %v1489 = vld [vmem:[%s1481 + $0x38] sm:$0xff]
      %v1490 = vld [vmem:[%s1481 + $0x40] sm:$0xff]
      %v1491 = vld [vmem:[%s1481 + $0x48] sm:$0xff]
      %v1492 = vld [vmem:[%s1481 + $0x50] sm:$0xff]
      %v1493 = vld [vmem:[%s1481 + $0x58] sm:$0xff]
      %v1494 = vld [vmem:[%s1481 + $0x60] sm:$0xff]
      %v1495 = vld [vmem:[%s1481 + $0x68] sm:$0xff]
      %v1496 = vld [vmem:[%s1481 + $0x70] sm:$0xff]
      %v1497 = vld [vmem:[%s1481 + $0x78] sm:$0xff]
      %1498 = vmatprep.subr.mxu0 0.0
      %1499 = vmatpush1.msra.mxu0 %v1482
      %1500 = vmatprep.subr.mxu0 0.0
      %1501 = vmatpush1.msra.mxu0 %v1483
      %1502 = vmatprep.subr.mxu0 0.0
      %1503 = vmatpush1.msra.mxu0 %v1484
      %1504 = vmatprep.subr.mxu0 0.0
      %1505 = vmatpush1.msra.mxu0 %v1485
      %1506 = vmatprep.subr.mxu0 0.0
      %1507 = vmatpush1.msra.mxu0 %v1486
      %1508 = vmatprep.subr.mxu0 0.0
      %1509 = vmatpush1.msra.mxu0 %v1487
      %1510 = vmatprep.subr.mxu0 0.0
      %1511 = vmatpush1.msra.mxu0 %v1488
      %1512 = vmatprep.subr.mxu0 0.0
      %1513 = vmatpush1.msra.mxu0 %v1489
      %1514 = vmatprep.subr.mxu0 0.0
      %1515 = vmatpush1.msra.mxu0 %v1490
      %1516 = vmatprep.subr.mxu0 0.0
      %1517 = vmatpush1.msra.mxu0 %v1491
      %1518 = vmatprep.subr.mxu0 0.0
      %1519 = vmatpush1.msra.mxu0 %v1492
      %1520 = vmatprep.subr.mxu0 0.0
      %1521 = vmatpush1.msra.mxu0 %v1493
      %1522 = vmatprep.subr.mxu0 0.0
      %1523 = vmatpush1.msra.mxu0 %v1494
      %1524 = vmatprep.subr.mxu0 0.0
      %1525 = vmatpush1.msra.mxu0 %v1495
      %1526 = vmatprep.subr.mxu0 0.0
      %1527 = vmatpush1.msra.mxu0 %v1496
      %1528 = vmatprep.subr.mxu0 0.0
      %1529 = vmatpush1.msra.mxu0 %v1497
      %1530 = vmatprep.subr.mxu0 0.0
      %1531 = vmatpush1.msra.mxu0 0.0
      %1532 = vmatprep.subr.mxu0 0.0
      %1533 = vmatpush1.msra.mxu0 0.0
      %1534 = vmatprep.subr.mxu0 0.0
      %1535 = vmatpush1.msra.mxu0 0.0
      %1536 = vmatprep.subr.mxu0 0.0
      %1537 = vmatpush1.msra.mxu0 0.0
      %1538 = vmatprep.subr.mxu0 0.0
      %1539 = vmatpush1.msra.mxu0 0.0
      %1540 = vmatprep.subr.mxu0 0.0
      %1541 = vmatpush1.msra.mxu0 0.0
      %1542 = vmatprep.subr.mxu0 0.0
      %1543 = vmatpush1.msra.mxu0 0.0
      %1544 = vmatprep.subr.mxu0 0.0
      %1545 = vmatpush1.msra.mxu0 0.0
      %1546 = vmatprep.subr.mxu0 0.0
      %1547 = vmatpush1.msra.mxu0 0.0
      %1548 = vmatprep.subr.mxu0 0.0
      %1549 = vmatpush1.msra.mxu0 0.0
      %1550 = vmatprep.subr.mxu0 0.0
      %1551 = vmatpush1.msra.mxu0 0.0
      %1552 = vmatprep.subr.mxu0 0.0
      %1553 = vmatpush1.msra.mxu0 0.0
      %1554 = vmatprep.subr.mxu0 0.0
      %1555 = vmatpush1.msra.mxu0 0.0
      %1556 = vmatprep.subr.mxu0 0.0
      %1557 = vmatpush1.msra.mxu0 0.0
      %1558 = vmatprep.subr.mxu0 0.0
      %1559 = vmatpush1.msra.mxu0 0.0
      %1560 = vmatprep.subr.mxu0 0.0
      %1561 = vmatpush1.msra.mxu0 0.0
      %1562 = vmatprep.mubr.f32.mxu0 0.0
      %1563 = vmatmul.mubr.f32.gmra.mrb[0].mxu0 %v653
      %v1564 = vpop.f32.mrb[0].mxu0
      %v1565 = vadd.f32 0.0, %v1564
      %v1566 = vpop.f32.mrb[0].mxu0
      %1567 = vmatprep.mubr.f32.mxu0 0.0
      %1568 = vmatmul.mubr.f32.gmra.mrb[0].mxu0 %v654
      %v1569 = vpop.f32.mrb[0].mxu0
      %v1570 = vadd.f32 0.0, %v1569
      %v1571 = vpop.f32.mrb[0].mxu0
      %1572 = vmatprep.mubr.f32.mxu0 0.0
      %1573 = vmatmul.mubr.f32.gmra.mrb[0].mxu0 %v655
      %v1574 = vpop.f32.mrb[0].mxu0
      %v1575 = vadd.f32 0.0, %v1574
      %v1576 = vpop.f32.mrb[0].mxu0
      %1577 = vmatprep.mubr.f32.mxu0 0.0
      %1578 = vmatmul.mubr.f32.gmra.mrb[0].mxu0 %v656
      %v1579 = vpop.f32.mrb[0].mxu0
      %v1580 = vadd.f32 0.0, %v1579
      %v1581 = vpop.f32.mrb[0].mxu0
      %1582 = vmatprep.mubr.f32.mxu0 0.0
      %1583 = vmatmul.mubr.f32.gmra.mrb[0].mxu0 %v657
      %v1584 = vpop.f32.mrb[0].mxu0
      %v1585 = vadd.f32 0.0, %v1584
      %v1586 = vpop.f32.mrb[0].mxu0
      %1587 = vmatprep.mubr.f32.mxu0 0.0
      %1588 = vmatmul.mubr.f32.gmra.mrb[0].mxu0 %v658
      %v1589 = vpop.f32.mrb[0].mxu0
      %v1590 = vadd.f32 0.0, %v1589
      %v1591 = vpop.f32.mrb[0].mxu0
      %1592 = vmatprep.mubr.f32.mxu0 0.0
      %1593 = vmatmul.mubr.f32.gmra.mrb[0].mxu0 %v659
      %v1594 = vpop.f32.mrb[0].mxu0
      %v1595 = vadd.f32 0.0, %v1594
      %v1596 = vpop.f32.mrb[0].mxu0
      %1597 = vmatprep.mubr.f32.mxu0 0.0
      %1598 = vmatmul.mubr.f32.gmra.mrb[0].mxu0 %v660
      %v1599 = vpop.f32.mrb[0].mxu0
      %v1600 = vadd.f32 0.0, %v1599
      %v1601 = vpop.f32.mrb[0].mxu0
      %1602 = vmatprep.mubr.f32.mxu0 0.0
      %1603 = vmatmul.mubr.f32.gmra.mrb[0].mxu0 %v661
      %v1604 = vpop.f32.mrb[0].mxu0
      %v1605 = vadd.f32 0.0, %v1604
      %v1606 = vpop.f32.mrb[0].mxu0
      %1607 = vmatprep.mubr.f32.mxu0 0.0
      %1608 = vmatmul.mubr.f32.gmra.mrb[0].mxu0 %v662
      %v1609 = vpop.f32.mrb[0].mxu0
      %v1610 = vadd.f32 0.0, %v1609
      %v1611 = vpop.f32.mrb[0].mxu0
      %1612 = vmatprep.mubr.f32.mxu0 0.0
      %1613 = vmatmul.mubr.f32.gmra.mrb[0].mxu0 %v663
      %v1614 = vpop.f32.mrb[0].mxu0
      %v1615 = vadd.f32 0.0, %v1614
      %v1616 = vpop.f32.mrb[0].mxu0
      %1617 = vmatprep.mubr.f32.mxu0 0.0
      %1618 = vmatmul.mubr.f32.gmra.mrb[0].mxu0 %v664
      %v1619 = vpop.f32.mrb[0].mxu0
      %v1620 = vadd.f32 0.0, %v1619
      %v1621 = vpop.f32.mrb[0].mxu0
      %1622 = vmatprep.mubr.f32.mxu0 0.0
      %1623 = vmatmul.mubr.f32.gmra.mrb[0].mxu0 %v665
      %v1624 = vpop.f32.mrb[0].mxu0
      %v1625 = vadd.f32 0.0, %v1624
      %v1626 = vpop.f32.mrb[0].mxu0
      %1627 = vmatprep.mubr.f32.mxu0 0.0
      %1628 = vmatmul.mubr.f32.gmra.mrb[0].mxu0 %v666
      %v1629 = vpop.f32.mrb[0].mxu0
      %v1630 = vadd.f32 0.0, %v1629
      %v1631 = vpop.f32.mrb[0].mxu0
      %1632 = vmatprep.mubr.f32.mxu0 0.0
      %1633 = vmatmul.mubr.f32.gmra.mrb[0].mxu0 %v667
      %v1634 = vpop.f32.mrb[0].mxu0
      %v1635 = vadd.f32 0.0, %v1634
      %v1636 = vpop.f32.mrb[0].mxu0
      %1637 = vmatprep.mubr.f32.mxu0 0.0
      %1638 = vmatmul.mubr.f32.gmra.mrb[0].mxu0 %v668
      %v1639 = vpop.f32.mrb[0].mxu0
      %v1640 = vadd.f32 0.0, %v1639
      %v1641 = vpop.f32.mrb[0].mxu0
      %1642 = vmatprep.mubr.f32.mxu0 0.0
      %1643 = vmatmul.mubr.f32.gmra.mrb[0].mxu0 %v669
      %v1644 = vpop.f32.mrb[0].mxu0
      %v1645 = vadd.f32 0.0, %v1644
      %v1646 = vpop.f32.mrb[0].mxu0
      %1647 = vmatprep.mubr.f32.mxu0 0.0
      %1648 = vmatmul.mubr.f32.gmra.mrb[0].mxu0 %v670
      %v1649 = vpop.f32.mrb[0].mxu0
      %v1650 = vadd.f32 0.0, %v1649
      %v1651 = vpop.f32.mrb[0].mxu0
      %1652 = vmatprep.mubr.f32.mxu0 0.0
      %1653 = vmatmul.mubr.f32.gmra.mrb[0].mxu0 %v671
      %v1654 = vpop.f32.mrb[0].mxu0
      %v1655 = vadd.f32 0.0, %v1654
      %v1656 = vpop.f32.mrb[0].mxu0
      %1657 = vmatprep.mubr.f32.mxu0 0.0
      %1658 = vmatmul.mubr.f32.gmra.mrb[0].mxu0 %v672
      %v1659 = vpop.f32.mrb[0].mxu0
      %v1660 = vadd.f32 0.0, %v1659
      %v1661 = vpop.f32.mrb[0].mxu0
      %1662 = vmatprep.mubr.f32.mxu0 0.0
      %1663 = vmatmul.mubr.f32.gmra.mrb[0].mxu0 %v673
      %v1664 = vpop.f32.mrb[0].mxu0
      %v1665 = vadd.f32 0.0, %v1664
      %v1666 = vpop.f32.mrb[0].mxu0
      %1667 = vmatprep.mubr.f32.mxu0 0.0
      %1668 = vmatmul.mubr.f32.gmra.mrb[0].mxu0 %v674
      %v1669 = vpop.f32.mrb[0].mxu0
      %v1670 = vadd.f32 0.0, %v1669
      %v1671 = vpop.f32.mrb[0].mxu0
      %1672 = vmatprep.mubr.f32.mxu0 0.0
      %1673 = vmatmul.mubr.f32.gmra.mrb[0].mxu0 %v675
      %v1674 = vpop.f32.mrb[0].mxu0
      %v1675 = vadd.f32 0.0, %v1674
      %v1676 = vpop.f32.mrb[0].mxu0
      %1677 = vmatprep.mubr.f32.mxu0 0.0
      %1678 = vmatmul.mubr.f32.gmra.mrb[0].mxu0 %v676
      %v1679 = vpop.f32.mrb[0].mxu0
      %v1680 = vadd.f32 0.0, %v1679
      %v1681 = vpop.f32.mrb[0].mxu0
      %1682 = vmatprep.mubr.f32.mxu0 0.0
      %1683 = vmatmul.mubr.f32.gmra.mrb[0].mxu0 %v677
      %v1684 = vpop.f32.mrb[0].mxu0
      %v1685 = vadd.f32 0.0, %v1684
      %v1686 = vpop.f32.mrb[0].mxu0
      %1687 = vmatprep.mubr.f32.mxu0 0.0
      %1688 = vmatmul.mubr.f32.gmra.mrb[0].mxu0 %v678
      %v1689 = vpop.f32.mrb[0].mxu0
      %v1690 = vadd.f32 0.0, %v1689
      %v1691 = vpop.f32.mrb[0].mxu0
      %1692 = vmatprep.mubr.f32.mxu0 0.0
      %1693 = vmatmul.mubr.f32.gmra.mrb[0].mxu0 %v679
      %v1694 = vpop.f32.mrb[0].mxu0
      %v1695 = vadd.f32 0.0, %v1694
      %v1696 = vpop.f32.mrb[0].mxu0
      %1697 = vmatprep.mubr.f32.mxu0 0.0
      %1698 = vmatmul.mubr.f32.gmra.mrb[0].mxu0 %v680
      %v1699 = vpop.f32.mrb[0].mxu0
      %v1700 = vadd.f32 0.0, %v1699
      %v1701 = vpop.f32.mrb[0].mxu0
      %1702 = vmatprep.mubr.f32.mxu0 0.0
      %1703 = vmatmul.mubr.f32.gmra.mrb[0].mxu0 %v681
      %v1704 = vpop.f32.mrb[0].mxu0
      %v1705 = vadd.f32 0.0, %v1704
      %v1706 = vpop.f32.mrb[0].mxu0
      %1707 = vmatprep.mubr.f32.mxu0 0.0
      %1708 = vmatmul.mubr.f32.gmra.mrb[0].mxu0 %v682
      %v1709 = vpop.f32.mrb[0].mxu0
      %v1710 = vadd.f32 0.0, %v1709
      %v1711 = vpop.f32.mrb[0].mxu0
      %1712 = vmatprep.mubr.f32.mxu0 0.0
      %1713 = vmatmul.mubr.f32.gmra.mrb[0].mxu0 %v683
      %v1714 = vpop.f32.mrb[0].mxu0
      %v1715 = vadd.f32 0.0, %v1714
      %v1716 = vpop.f32.mrb[0].mxu0
      %1717 = vmatprep.mubr.f32.mxu0 0.0
      %1718 = vmatmul.mubr.f32.gmra.mrb[0].mxu0 %v684
      %v1719 = vpop.f32.mrb[0].mxu0
      %v1720 = vadd.f32 0.0, %v1719
      %v1721 = vpop.f32.mrb[0].mxu0
      %1722 = vdwg.mxu0
      %v1723 = vadd.f32 %v1449, %v1565
      %v1724 = vadd.f32 %v1450, %v1570
      %v1725 = vadd.f32 %v1451, %v1575
      %v1726 = vadd.f32 %v1452, %v1580
      %v1727 = vadd.f32 %v1453, %v1585
      %v1728 = vadd.f32 %v1454, %v1590
      %v1729 = vadd.f32 %v1455, %v1595
      %v1730 = vadd.f32 %v1456, %v1600
      %v1731 = vadd.f32 %v1457, %v1605
      %v1732 = vadd.f32 %v1458, %v1610
      %v1733 = vadd.f32 %v1459, %v1615
      %v1734 = vadd.f32 %v1460, %v1620
      %v1735 = vadd.f32 %v1461, %v1625
      %v1736 = vadd.f32 %v1462, %v1630
      %v1737 = vadd.f32 %v1463, %v1635
      %v1738 = vadd.f32 %v1464, %v1640
      %v1739 = vadd.f32 %v1465, %v1645
      %v1740 = vadd.f32 %v1466, %v1650
      %v1741 = vadd.f32 %v1467, %v1655
      %v1742 = vadd.f32 %v1468, %v1660
      %v1743 = vadd.f32 %v1469, %v1665
      %v1744 = vadd.f32 %v1470, %v1670
      %v1745 = vadd.f32 %v1471, %v1675
      %v1746 = vadd.f32 %v1472, %v1680
      %v1747 = vadd.f32 %v1473, %v1685
      %v1748 = vadd.f32 %v1474, %v1690
      %v1749 = vadd.f32 %v1475, %v1695
      %v1750 = vadd.f32 %v1476, %v1700
      %v1751 = vadd.f32 %v1477, %v1705
      %v1752 = vadd.f32 %v1478, %v1710
      %v1753 = vadd.f32 %v1479, %v1715
      %v1754 = vadd.f32 %v1480, %v1720
      %v1756 = vlaneseq
      %v1757 = vshrl.u32 %v1756, 7
      %v1758 = vsub.s32 0, %v1757
      %v1759 = vrot.slane %v723, %v1758
      %v1761 = vadd.f32 %v1723, %v1759
      %v1762 = vadd.f32 %v1724, %v1759
      %v1763 = vadd.f32 %v1725, %v1759
      %v1764 = vadd.f32 %v1726, %v1759
      %v1765 = vadd.f32 %v1727, %v1759
      %v1766 = vadd.f32 %v1728, %v1759
      %v1767 = vadd.f32 %v1729, %v1759
      %v1768 = vadd.f32 %v1730, %v1759
      %v1769 = vadd.f32 %v1731, %v1759
      %v1770 = vadd.f32 %v1732, %v1759
      %v1771 = vadd.f32 %v1733, %v1759
      %v1772 = vadd.f32 %v1734, %v1759
      %v1773 = vadd.f32 %v1735, %v1759
      %v1774 = vadd.f32 %v1736, %v1759
      %v1775 = vadd.f32 %v1737, %v1759
      %v1776 = vadd.f32 %v1738, %v1759
      %v1777 = vadd.f32 %v1739, %v1759
      %v1778 = vadd.f32 %v1740, %v1759
      %v1779 = vadd.f32 %v1741, %v1759
      %v1780 = vadd.f32 %v1742, %v1759
      %v1781 = vadd.f32 %v1743, %v1759
      %v1782 = vadd.f32 %v1744, %v1759
      %v1783 = vadd.f32 %v1745, %v1759
      %v1784 = vadd.f32 %v1746, %v1759
      %v1785 = vadd.f32 %v1747, %v1759
      %v1786 = vadd.f32 %v1748, %v1759
      %v1787 = vadd.f32 %v1749, %v1759
      %v1788 = vadd.f32 %v1750, %v1759
      %v1789 = vadd.f32 %v1751, %v1759
      %v1790 = vadd.f32 %v1752, %v1759
      %v1791 = vadd.f32 %v1753, %v1759
      %v1792 = vadd.f32 %v1754, %v1759
      %1793 = vst [vmem:[%s188] sm:$0xff] %v1761
      %1794 = vst [vmem:[%s188 + $0x8] sm:$0xff] %v1762
      %1795 = vst [vmem:[%s188 + $0x40] sm:$0xff] %v1763
      %1796 = vst [vmem:[%s188 + $0x48] sm:$0xff] %v1764
      %1797 = vst [vmem:[%s188 + $0x80] sm:$0xff] %v1765
      %1798 = vst [vmem:[%s188 + $0x88] sm:$0xff] %v1766
      %1799 = vst [vmem:[%s188 + $0xc0] sm:$0xff] %v1767
      %1800 = vst [vmem:[%s188 + $0xc8] sm:$0xff] %v1768
      %1801 = vst [vmem:[%s188 + $0x100] sm:$0xff] %v1769
      %1802 = vst [vmem:[%s188 + $0x108] sm:$0xff] %v1770
      %1803 = vst [vmem:[%s188 + $0x140] sm:$0xff] %v1771
      %1804 = vst [vmem:[%s188 + $0x148] sm:$0xff] %v1772
      %1805 = vst [vmem:[%s188 + $0x180] sm:$0xff] %v1773
      %1806 = vst [vmem:[%s188 + $0x188] sm:$0xff] %v1774
      %1807 = vst [vmem:[%s188 + $0x1c0] sm:$0xff] %v1775
      %1808 = vst [vmem:[%s188 + $0x1c8] sm:$0xff] %v1776
      %1809 = vst [vmem:[%s188 + $0x200] sm:$0xff] %v1777
      %1810 = vst [vmem:[%s188 + $0x208] sm:$0xff] %v1778
      %1811 = vst [vmem:[%s188 + $0x240] sm:$0xff] %v1779
      %1812 = vst [vmem:[%s188 + $0x248] sm:$0xff] %v1780
      %1813 = vst [vmem:[%s188 + $0x280] sm:$0xff] %v1781
      %1814 = vst [vmem:[%s188 + $0x288] sm:$0xff] %v1782
      %1815 = vst [vmem:[%s188 + $0x2c0] sm:$0xff] %v1783
      %1816 = vst [vmem:[%s188 + $0x2c8] sm:$0xff] %v1784
      %1817 = vst [vmem:[%s188 + $0x300] sm:$0xff] %v1785
      %1818 = vst [vmem:[%s188 + $0x308] sm:$0xff] %v1786
      %1819 = vst [vmem:[%s188 + $0x340] sm:$0xff] %v1787
      %1820 = vst [vmem:[%s188 + $0x348] sm:$0xff] %v1788
      %1821 = vst [vmem:[%s188 + $0x380] sm:$0xff] %v1789
      %1822 = vst [vmem:[%s188 + $0x388] sm:$0xff] %v1790
      %1823 = vst [vmem:[%s188 + $0x3c0] sm:$0xff] %v1791
      %1824 = vst [vmem:[%s188 + $0x3c8] sm:$0xff] %v1792
      %s1825 = scalar_lea.vmem %s175, 512
      %v1826 = vld [vmem:[%s1825] sm:$0xff]
      %v1827 = vld [vmem:[%s1825 + $0x8] sm:$0xff]
      %v1828 = vld [vmem:[%s1825 + $0x10] sm:$0xff]
      %v1829 = vld [vmem:[%s1825 + $0x18] sm:$0xff]
      %v1830 = vld [vmem:[%s1825 + $0x20] sm:$0xff]
      %v1831 = vld [vmem:[%s1825 + $0x28] sm:$0xff]
      %v1832 = vld [vmem:[%s1825 + $0x30] sm:$0xff]
      %v1833 = vld [vmem:[%s1825 + $0x38] sm:$0xff]
      %v1834 = vld [vmem:[%s1825 + $0x40] sm:$0xff]
      %v1835 = vld [vmem:[%s1825 + $0x48] sm:$0xff]
      %v1836 = vld [vmem:[%s1825 + $0x50] sm:$0xff]
      %v1837 = vld [vmem:[%s1825 + $0x58] sm:$0xff]
      %v1838 = vld [vmem:[%s1825 + $0x60] sm:$0xff]
      %v1839 = vld [vmem:[%s1825 + $0x68] sm:$0xff]
      %v1840 = vld [vmem:[%s1825 + $0x70] sm:$0xff]
      %v1841 = vld [vmem:[%s1825 + $0x78] sm:$0xff]
      %s1842 = scalar_lea.vmem %s175, 640
      %v1843 = vld [vmem:[%s1842] sm:$0xff]
      %v1844 = vld [vmem:[%s1842 + $0x8] sm:$0xff]
      %v1845 = vld [vmem:[%s1842 + $0x10] sm:$0xff]
      %v1846 = vld [vmem:[%s1842 + $0x18] sm:$0xff]
      %v1847 = vld [vmem:[%s1842 + $0x20] sm:$0xff]
      %v1848 = vld [vmem:[%s1842 + $0x28] sm:$0xff]
      %v1849 = vld [vmem:[%s1842 + $0x30] sm:$0xff]
      %v1850 = vld [vmem:[%s1842 + $0x38] sm:$0xff]
      %v1851 = vld [vmem:[%s1842 + $0x40] sm:$0xff]
      %v1852 = vld [vmem:[%s1842 + $0x48] sm:$0xff]
      %v1853 = vld [vmem:[%s1842 + $0x50] sm:$0xff]
      %v1854 = vld [vmem:[%s1842 + $0x58] sm:$0xff]
      %v1855 = vld [vmem:[%s1842 + $0x60] sm:$0xff]
      %v1856 = vld [vmem:[%s1842 + $0x68] sm:$0xff]
      %v1857 = vld [vmem:[%s1842 + $0x70] sm:$0xff]
      %v1858 = vld [vmem:[%s1842 + $0x78] sm:$0xff]
      %1859 = vmatprep.subr.mxu0 0.0
      %1860 = vmatpush1.msra.mxu0 %v1843
      %1861 = vmatprep.subr.mxu0 0.0
      %1862 = vmatpush1.msra.mxu0 %v1844
      %1863 = vmatprep.subr.mxu0 0.0
      %1864 = vmatpush1.msra.mxu0 %v1845
      %1865 = vmatprep.subr.mxu0 0.0
      %1866 = vmatpush1.msra.mxu0 %v1846
      %1867 = vmatprep.subr.mxu0 0.0
      %1868 = vmatpush1.msra.mxu0 %v1847
      %1869 = vmatprep.subr.mxu0 0.0
      %1870 = vmatpush1.msra.mxu0 %v1848
      %1871 = vmatprep.subr.mxu0 0.0
      %1872 = vmatpush1.msra.mxu0 %v1849
      %1873 = vmatprep.subr.mxu0 0.0
      %1874 = vmatpush1.msra.mxu0 %v1850
      %1875 = vmatprep.subr.mxu0 0.0
      %1876 = vmatpush1.msra.mxu0 %v1851
      %1877 = vmatprep.subr.mxu0 0.0
      %1878 = vmatpush1.msra.mxu0 %v1852
      %1879 = vmatprep.subr.mxu0 0.0
      %1880 = vmatpush1.msra.mxu0 %v1853
      %1881 = vmatprep.subr.mxu0 0.0
      %1882 = vmatpush1.msra.mxu0 %v1854
      %1883 = vmatprep.subr.mxu0 0.0
      %1884 = vmatpush1.msra.mxu0 %v1855
      %1885 = vmatprep.subr.mxu0 0.0
      %1886 = vmatpush1.msra.mxu0 %v1856
      %1887 = vmatprep.subr.mxu0 0.0
      %1888 = vmatpush1.msra.mxu0 %v1857
      %1889 = vmatprep.subr.mxu0 0.0
      %1890 = vmatpush1.msra.mxu0 %v1858
      %1891 = vmatprep.subr.mxu0 0.0
      %1892 = vmatpush1.msra.mxu0 0.0
      %1893 = vmatprep.subr.mxu0 0.0
      %1894 = vmatpush1.msra.mxu0 0.0
      %1895 = vmatprep.subr.mxu0 0.0
      %1896 = vmatpush1.msra.mxu0 0.0
      %1897 = vmatprep.subr.mxu0 0.0
      %1898 = vmatpush1.msra.mxu0 0.0
      %1899 = vmatprep.subr.mxu0 0.0
      %1900 = vmatpush1.msra.mxu0 0.0
      %1901 = vmatprep.subr.mxu0 0.0
      %1902 = vmatpush1.msra.mxu0 0.0
      %1903 = vmatprep.subr.mxu0 0.0
      %1904 = vmatpush1.msra.mxu0 0.0
      %1905 = vmatprep.subr.mxu0 0.0
      %1906 = vmatpush1.msra.mxu0 0.0
      %1907 = vmatprep.subr.mxu0 0.0
      %1908 = vmatpush1.msra.mxu0 0.0
      %1909 = vmatprep.subr.mxu0 0.0
      %1910 = vmatpush1.msra.mxu0 0.0
      %1911 = vmatprep.subr.mxu0 0.0
      %1912 = vmatpush1.msra.mxu0 0.0
      %1913 = vmatprep.subr.mxu0 0.0
      %1914 = vmatpush1.msra.mxu0 0.0
      %1915 = vmatprep.subr.mxu0 0.0
      %1916 = vmatpush1.msra.mxu0 0.0
      %1917 = vmatprep.subr.mxu0 0.0
      %1918 = vmatpush1.msra.mxu0 0.0
      %1919 = vmatprep.subr.mxu0 0.0
      %1920 = vmatpush1.msra.mxu0 0.0
      %1921 = vmatprep.subr.mxu0 0.0
      %1922 = vmatpush1.msra.mxu0 0.0
      %1923 = vmatprep.mubr.f32.mxu0 0.0
      %1924 = vmatmul.mubr.f32.gmra.mrb[0].mxu0 %v687
      %v1925 = vpop.f32.mrb[0].mxu0
      %v1926 = vadd.f32 0.0, %v1925
      %v1927 = vpop.f32.mrb[0].mxu0
      %1928 = vmatprep.mubr.f32.mxu0 0.0
      %1929 = vmatmul.mubr.f32.gmra.mrb[0].mxu0 %v688
      %v1930 = vpop.f32.mrb[0].mxu0
      %v1931 = vadd.f32 0.0, %v1930
      %v1932 = vpop.f32.mrb[0].mxu0
      %1933 = vmatprep.mubr.f32.mxu0 0.0
      %1934 = vmatmul.mubr.f32.gmra.mrb[0].mxu0 %v689
      %v1935 = vpop.f32.mrb[0].mxu0
      %v1936 = vadd.f32 0.0, %v1935
      %v1937 = vpop.f32.mrb[0].mxu0
      %1938 = vmatprep.mubr.f32.mxu0 0.0
      %1939 = vmatmul.mubr.f32.gmra.mrb[0].mxu0 %v690
      %v1940 = vpop.f32.mrb[0].mxu0
      %v1941 = vadd.f32 0.0, %v1940
      %v1942 = vpop.f32.mrb[0].mxu0
      %1943 = vmatprep.mubr.f32.mxu0 0.0
      %1944 = vmatmul.mubr.f32.gmra.mrb[0].mxu0 %v691
      %v1945 = vpop.f32.mrb[0].mxu0
      %v1946 = vadd.f32 0.0, %v1945
      %v1947 = vpop.f32.mrb[0].mxu0
      %1948 = vmatprep.mubr.f32.mxu0 0.0
      %1949 = vmatmul.mubr.f32.gmra.mrb[0].mxu0 %v692
      %v1950 = vpop.f32.mrb[0].mxu0
      %v1951 = vadd.f32 0.0, %v1950
      %v1952 = vpop.f32.mrb[0].mxu0
      %1953 = vmatprep.mubr.f32.mxu0 0.0
      %1954 = vmatmul.mubr.f32.gmra.mrb[0].mxu0 %v693
      %v1955 = vpop.f32.mrb[0].mxu0
      %v1956 = vadd.f32 0.0, %v1955
      %v1957 = vpop.f32.mrb[0].mxu0
      %1958 = vmatprep.mubr.f32.mxu0 0.0
      %1959 = vmatmul.mubr.f32.gmra.mrb[0].mxu0 %v694
      %v1960 = vpop.f32.mrb[0].mxu0
      %v1961 = vadd.f32 0.0, %v1960
      %v1962 = vpop.f32.mrb[0].mxu0
      %1963 = vmatprep.mubr.f32.mxu0 0.0
      %1964 = vmatmul.mubr.f32.gmra.mrb[0].mxu0 %v695
      %v1965 = vpop.f32.mrb[0].mxu0
      %v1966 = vadd.f32 0.0, %v1965
      %v1967 = vpop.f32.mrb[0].mxu0
      %1968 = vmatprep.mubr.f32.mxu0 0.0
      %1969 = vmatmul.mubr.f32.gmra.mrb[0].mxu0 %v696
      %v1970 = vpop.f32.mrb[0].mxu0
      %v1971 = vadd.f32 0.0, %v1970
      %v1972 = vpop.f32.mrb[0].mxu0
      %1973 = vmatprep.mubr.f32.mxu0 0.0
      %1974 = vmatmul.mubr.f32.gmra.mrb[0].mxu0 %v697
      %v1975 = vpop.f32.mrb[0].mxu0
      %v1976 = vadd.f32 0.0, %v1975
      %v1977 = vpop.f32.mrb[0].mxu0
      %1978 = vmatprep.mubr.f32.mxu0 0.0
      %1979 = vmatmul.mubr.f32.gmra.mrb[0].mxu0 %v698
      %v1980 = vpop.f32.mrb[0].mxu0
      %v1981 = vadd.f32 0.0, %v1980
      %v1982 = vpop.f32.mrb[0].mxu0
      %1983 = vmatprep.mubr.f32.mxu0 0.0
      %1984 = vmatmul.mubr.f32.gmra.mrb[0].mxu0 %v699
      %v1985 = vpop.f32.mrb[0].mxu0
      %v1986 = vadd.f32 0.0, %v1985
      %v1987 = vpop.f32.mrb[0].mxu0
      %1988 = vmatprep.mubr.f32.mxu0 0.0
      %1989 = vmatmul.mubr.f32.gmra.mrb[0].mxu0 %v700
      %v1990 = vpop.f32.mrb[0].mxu0
      %v1991 = vadd.f32 0.0, %v1990
      %v1992 = vpop.f32.mrb[0].mxu0
      %1993 = vmatprep.mubr.f32.mxu0 0.0
      %1994 = vmatmul.mubr.f32.gmra.mrb[0].mxu0 %v701
      %v1995 = vpop.f32.mrb[0].mxu0
      %v1996 = vadd.f32 0.0, %v1995
      %v1997 = vpop.f32.mrb[0].mxu0
      %1998 = vmatprep.mubr.f32.mxu0 0.0
      %1999 = vmatmul.mubr.f32.gmra.mrb[0].mxu0 %v702
      %v2000 = vpop.f32.mrb[0].mxu0
      %v2001 = vadd.f32 0.0, %v2000
      %v2002 = vpop.f32.mrb[0].mxu0
      %2003 = vmatprep.mubr.f32.mxu0 0.0
      %2004 = vmatmul.mubr.f32.gmra.mrb[0].mxu0 %v703
      %v2005 = vpop.f32.mrb[0].mxu0
      %v2006 = vadd.f32 0.0, %v2005
      %v2007 = vpop.f32.mrb[0].mxu0
      %2008 = vmatprep.mubr.f32.mxu0 0.0
      %2009 = vmatmul.mubr.f32.gmra.mrb[0].mxu0 %v704
      %v2010 = vpop.f32.mrb[0].mxu0
      %v2011 = vadd.f32 0.0, %v2010
      %v2012 = vpop.f32.mrb[0].mxu0
      %2013 = vmatprep.mubr.f32.mxu0 0.0
      %2014 = vmatmul.mubr.f32.gmra.mrb[0].mxu0 %v705
      %v2015 = vpop.f32.mrb[0].mxu0
      %v2016 = vadd.f32 0.0, %v2015
      %v2017 = vpop.f32.mrb[0].mxu0
      %2018 = vmatprep.mubr.f32.mxu0 0.0
      %2019 = vmatmul.mubr.f32.gmra.mrb[0].mxu0 %v706
      %v2020 = vpop.f32.mrb[0].mxu0
      %v2021 = vadd.f32 0.0, %v2020
      %v2022 = vpop.f32.mrb[0].mxu0
      %2023 = vmatprep.mubr.f32.mxu0 0.0
      %2024 = vmatmul.mubr.f32.gmra.mrb[0].mxu0 %v707
      %v2025 = vpop.f32.mrb[0].mxu0
      %v2026 = vadd.f32 0.0, %v2025
      %v2027 = vpop.f32.mrb[0].mxu0
      %2028 = vmatprep.mubr.f32.mxu0 0.0
      %2029 = vmatmul.mubr.f32.gmra.mrb[0].mxu0 %v708
      %v2030 = vpop.f32.mrb[0].mxu0
      %v2031 = vadd.f32 0.0, %v2030
      %v2032 = vpop.f32.mrb[0].mxu0
      %2033 = vmatprep.mubr.f32.mxu0 0.0
      %2034 = vmatmul.mubr.f32.gmra.mrb[0].mxu0 %v709
      %v2035 = vpop.f32.mrb[0].mxu0
      %v2036 = vadd.f32 0.0, %v2035
      %v2037 = vpop.f32.mrb[0].mxu0
      %2038 = vmatprep.mubr.f32.mxu0 0.0
      %2039 = vmatmul.mubr.f32.gmra.mrb[0].mxu0 %v710
      %v2040 = vpop.f32.mrb[0].mxu0
      %v2041 = vadd.f32 0.0, %v2040
      %v2042 = vpop.f32.mrb[0].mxu0
      %2043 = vmatprep.mubr.f32.mxu0 0.0
      %2044 = vmatmul.mubr.f32.gmra.mrb[0].mxu0 %v711
      %v2045 = vpop.f32.mrb[0].mxu0
      %v2046 = vadd.f32 0.0, %v2045
      %v2047 = vpop.f32.mrb[0].mxu0
      %2048 = vmatprep.mubr.f32.mxu0 0.0
      %2049 = vmatmul.mubr.f32.gmra.mrb[0].mxu0 %v712
      %v2050 = vpop.f32.mrb[0].mxu0
      %v2051 = vadd.f32 0.0, %v2050
      %v2052 = vpop.f32.mrb[0].mxu0
      %2053 = vmatprep.mubr.f32.mxu0 0.0
      %2054 = vmatmul.mubr.f32.gmra.mrb[0].mxu0 %v713
      %v2055 = vpop.f32.mrb[0].mxu0
      %v2056 = vadd.f32 0.0, %v2055
      %v2057 = vpop.f32.mrb[0].mxu0
      %2058 = vmatprep.mubr.f32.mxu0 0.0
      %2059 = vmatmul.mubr.f32.gmra.mrb[0].mxu0 %v714
      %v2060 = vpop.f32.mrb[0].mxu0
      %v2061 = vadd.f32 0.0, %v2060
      %v2062 = vpop.f32.mrb[0].mxu0
      %2063 = vmatprep.mubr.f32.mxu0 0.0
      %2064 = vmatmul.mubr.f32.gmra.mrb[0].mxu0 %v715
      %v2065 = vpop.f32.mrb[0].mxu0
      %v2066 = vadd.f32 0.0, %v2065
      %v2067 = vpop.f32.mrb[0].mxu0
      %2068 = vmatprep.mubr.f32.mxu0 0.0
      %2069 = vmatmul.mubr.f32.gmra.mrb[0].mxu0 %v716
      %v2070 = vpop.f32.mrb[0].mxu0
      %v2071 = vadd.f32 0.0, %v2070
      %v2072 = vpop.f32.mrb[0].mxu0
      %2073 = vmatprep.mubr.f32.mxu0 0.0
      %2074 = vmatmul.mubr.f32.gmra.mrb[0].mxu0 %v717
      %v2075 = vpop.f32.mrb[0].mxu0
      %v2076 = vadd.f32 0.0, %v2075
      %v2077 = vpop.f32.mrb[0].mxu0
      %2078 = vmatprep.mubr.f32.mxu0 0.0
      %2079 = vmatmul.mubr.f32.gmra.mrb[0].mxu0 %v718
      %v2080 = vpop.f32.mrb[0].mxu0
      %v2081 = vadd.f32 0.0, %v2080
      %v2082 = vpop.f32.mrb[0].mxu0
      %2083 = vdwg.mxu0
      %2084 = vmatprep.subr.mxu0 0.0
      %2085 = vmatpush1.msra.mxu0 %v1826
      %2086 = vmatprep.subr.mxu0 0.0
      %2087 = vmatpush1.msra.mxu0 %v1827
      %2088 = vmatprep.subr.mxu0 0.0
      %2089 = vmatpush1.msra.mxu0 %v1828
      %2090 = vmatprep.subr.mxu0 0.0
      %2091 = vmatpush1.msra.mxu0 %v1829
      %2092 = vmatprep.subr.mxu0 0.0
      %2093 = vmatpush1.msra.mxu0 %v1830
      %2094 = vmatprep.subr.mxu0 0.0
      %2095 = vmatpush1.msra.mxu0 %v1831
      %2096 = vmatprep.subr.mxu0 0.0
      %2097 = vmatpush1.msra.mxu0 %v1832
      %2098 = vmatprep.subr.mxu0 0.0
      %2099 = vmatpush1.msra.mxu0 %v1833
      %2100 = vmatprep.subr.mxu0 0.0
      %2101 = vmatpush1.msra.mxu0 %v1834
      %2102 = vmatprep.subr.mxu0 0.0
      %2103 = vmatpush1.msra.mxu0 %v1835
      %2104 = vmatprep.subr.mxu0 0.0
      %2105 = vmatpush1.msra.mxu0 %v1836
      %2106 = vmatprep.subr.mxu0 0.0
      %2107 = vmatpush1.msra.mxu0 %v1837
      %2108 = vmatprep.subr.mxu0 0.0
      %2109 = vmatpush1.msra.mxu0 %v1838
      %2110 = vmatprep.subr.mxu0 0.0
      %2111 = vmatpush1.msra.mxu0 %v1839
      %2112 = vmatprep.subr.mxu0 0.0
      %2113 = vmatpush1.msra.mxu0 %v1840
      %2114 = vmatprep.subr.mxu0 0.0
      %2115 = vmatpush1.msra.mxu0 %v1841
      %2116 = vmatprep.subr.mxu0 0.0
      %2117 = vmatpush1.msra.mxu0 0.0
      %2118 = vmatprep.subr.mxu0 0.0
      %2119 = vmatpush1.msra.mxu0 0.0
      %2120 = vmatprep.subr.mxu0 0.0
      %2121 = vmatpush1.msra.mxu0 0.0
      %2122 = vmatprep.subr.mxu0 0.0
      %2123 = vmatpush1.msra.mxu0 0.0
      %2124 = vmatprep.subr.mxu0 0.0
      %2125 = vmatpush1.msra.mxu0 0.0
      %2126 = vmatprep.subr.mxu0 0.0
      %2127 = vmatpush1.msra.mxu0 0.0
      %2128 = vmatprep.subr.mxu0 0.0
      %2129 = vmatpush1.msra.mxu0 0.0
      %2130 = vmatprep.subr.mxu0 0.0
      %2131 = vmatpush1.msra.mxu0 0.0
      %2132 = vmatprep.subr.mxu0 0.0
      %2133 = vmatpush1.msra.mxu0 0.0
      %2134 = vmatprep.subr.mxu0 0.0
      %2135 = vmatpush1.msra.mxu0 0.0
      %2136 = vmatprep.subr.mxu0 0.0
      %2137 = vmatpush1.msra.mxu0 0.0
      %2138 = vmatprep.subr.mxu0 0.0
      %2139 = vmatpush1.msra.mxu0 0.0
      %2140 = vmatprep.subr.mxu0 0.0
      %2141 = vmatpush1.msra.mxu0 0.0
      %2142 = vmatprep.subr.mxu0 0.0
      %2143 = vmatpush1.msra.mxu0 0.0
      %2144 = vmatprep.subr.mxu0 0.0
      %2145 = vmatpush1.msra.mxu0 0.0
      %2146 = vmatprep.subr.mxu0 0.0
      %2147 = vmatpush1.msra.mxu0 0.0
      %2148 = vmatprep.mubr.f32.mxu0 0.0
      %2149 = vmatmul.mubr.f32.gmra.mrb[0].mxu0 %v651
      %v2150 = vpop.f32.mrb[0].mxu0
      %v2151 = vadd.f32 %v1926, %v2150
      %v2152 = vpop.f32.mrb[0].mxu0
      %2153 = vmatprep.mubr.f32.mxu0 0.0
      %2154 = vmatmul.mubr.f32.gmra.mrb[0].mxu0 %v652
      %v2155 = vpop.f32.mrb[0].mxu0
      %v2156 = vadd.f32 %v1931, %v2155
      %v2157 = vpop.f32.mrb[0].mxu0
      %2158 = vmatprep.mubr.f32.mxu0 0.0
      %2159 = vmatmul.mubr.f32.gmra.mrb[0].mxu0 %v653
      %v2160 = vpop.f32.mrb[0].mxu0
      %v2161 = vadd.f32 %v1936, %v2160
      %v2162 = vpop.f32.mrb[0].mxu0
      %2163 = vmatprep.mubr.f32.mxu0 0.0
      %2164 = vmatmul.mubr.f32.gmra.mrb[0].mxu0 %v654
      %v2165 = vpop.f32.mrb[0].mxu0
      %v2166 = vadd.f32 %v1941, %v2165
      %v2167 = vpop.f32.mrb[0].mxu0
      %2168 = vmatprep.mubr.f32.mxu0 0.0
      %2169 = vmatmul.mubr.f32.gmra.mrb[0].mxu0 %v655
      %v2170 = vpop.f32.mrb[0].mxu0
      %v2171 = vadd.f32 %v1946, %v2170
      %v2172 = vpop.f32.mrb[0].mxu0
      %2173 = vmatprep.mubr.f32.mxu0 0.0
      %2174 = vmatmul.mubr.f32.gmra.mrb[0].mxu0 %v656
      %v2175 = vpop.f32.mrb[0].mxu0
      %v2176 = vadd.f32 %v1951, %v2175
      %v2177 = vpop.f32.mrb[0].mxu0
      %2178 = vmatprep.mubr.f32.mxu0 0.0
      %2179 = vmatmul.mubr.f32.gmra.mrb[0].mxu0 %v657
      %v2180 = vpop.f32.mrb[0].mxu0
      %v2181 = vadd.f32 %v1956, %v2180
      %v2182 = vpop.f32.mrb[0].mxu0
      %2183 = vmatprep.mubr.f32.mxu0 0.0
      %2184 = vmatmul.mubr.f32.gmra.mrb[0].mxu0 %v658
      %v2185 = vpop.f32.mrb[0].mxu0
      %v2186 = vadd.f32 %v1961, %v2185
      %v2187 = vpop.f32.mrb[0].mxu0
      %2188 = vmatprep.mubr.f32.mxu0 0.0
      %2189 = vmatmul.mubr.f32.gmra.mrb[0].mxu0 %v659
      %v2190 = vpop.f32.mrb[0].mxu0
      %v2191 = vadd.f32 %v1966, %v2190
      %v2192 = vpop.f32.mrb[0].mxu0
      %2193 = vmatprep.mubr.f32.mxu0 0.0
      %2194 = vmatmul.mubr.f32.gmra.mrb[0].mxu0 %v660
      %v2195 = vpop.f32.mrb[0].mxu0
      %v2196 = vadd.f32 %v1971, %v2195
      %v2197 = vpop.f32.mrb[0].mxu0
      %2198 = vmatprep.mubr.f32.mxu0 0.0
      %2199 = vmatmul.mubr.f32.gmra.mrb[0].mxu0 %v661
      %v2200 = vpop.f32.mrb[0].mxu0
      %v2201 = vadd.f32 %v1976, %v2200
      %v2202 = vpop.f32.mrb[0].mxu0
      %2203 = vmatprep.mubr.f32.mxu0 0.0
      %2204 = vmatmul.mubr.f32.gmra.mrb[0].mxu0 %v662
      %v2205 = vpop.f32.mrb[0].mxu0
      %v2206 = vadd.f32 %v1981, %v2205
      %v2207 = vpop.f32.mrb[0].mxu0
      %2208 = vmatprep.mubr.f32.mxu0 0.0
      %2209 = vmatmul.mubr.f32.gmra.mrb[0].mxu0 %v663
      %v2210 = vpop.f32.mrb[0].mxu0
      %v2211 = vadd.f32 %v1986, %v2210
      %v2212 = vpop.f32.mrb[0].mxu0
      %2213 = vmatprep.mubr.f32.mxu0 0.0
      %2214 = vmatmul.mubr.f32.gmra.mrb[0].mxu0 %v664
      %v2215 = vpop.f32.mrb[0].mxu0
      %v2216 = vadd.f32 %v1991, %v2215
      %v2217 = vpop.f32.mrb[0].mxu0
      %2218 = vmatprep.mubr.f32.mxu0 0.0
      %2219 = vmatmul.mubr.f32.gmra.mrb[0].mxu0 %v665
      %v2220 = vpop.f32.mrb[0].mxu0
      %v2221 = vadd.f32 %v1996, %v2220
      %v2222 = vpop.f32.mrb[0].mxu0
      %2223 = vmatprep.mubr.f32.mxu0 0.0
      %2224 = vmatmul.mubr.f32.gmra.mrb[0].mxu0 %v666
      %v2225 = vpop.f32.mrb[0].mxu0
      %v2226 = vadd.f32 %v2001, %v2225
      %v2227 = vpop.f32.mrb[0].mxu0
      %2228 = vmatprep.mubr.f32.mxu0 0.0
      %2229 = vmatmul.mubr.f32.gmra.mrb[0].mxu0 %v667
      %v2230 = vpop.f32.mrb[0].mxu0
      %v2231 = vadd.f32 %v2006, %v2230
      %v2232 = vpop.f32.mrb[0].mxu0
      %2233 = vmatprep.mubr.f32.mxu0 0.0
      %2234 = vmatmul.mubr.f32.gmra.mrb[0].mxu0 %v668
      %v2235 = vpop.f32.mrb[0].mxu0
      %v2236 = vadd.f32 %v2011, %v2235
      %v2237 = vpop.f32.mrb[0].mxu0
      %2238 = vmatprep.mubr.f32.mxu0 0.0
      %2239 = vmatmul.mubr.f32.gmra.mrb[0].mxu0 %v669
      %v2240 = vpop.f32.mrb[0].mxu0
      %v2241 = vadd.f32 %v2016, %v2240
      %v2242 = vpop.f32.mrb[0].mxu0
      %2243 = vmatprep.mubr.f32.mxu0 0.0
      %2244 = vmatmul.mubr.f32.gmra.mrb[0].mxu0 %v670
      %v2245 = vpop.f32.mrb[0].mxu0
      %v2246 = vadd.f32 %v2021, %v2245
      %v2247 = vpop.f32.mrb[0].mxu0
      %2248 = vmatprep.mubr.f32.mxu0 0.0
      %2249 = vmatmul.mubr.f32.gmra.mrb[0].mxu0 %v671
      %v2250 = vpop.f32.mrb[0].mxu0
      %v2251 = vadd.f32 %v2026, %v2250
      %v2252 = vpop.f32.mrb[0].mxu0
      %2253 = vmatprep.mubr.f32.mxu0 0.0
      %2254 = vmatmul.mubr.f32.gmra.mrb[0].mxu0 %v672
      %v2255 = vpop.f32.mrb[0].mxu0
      %v2256 = vadd.f32 %v2031, %v2255
      %v2257 = vpop.f32.mrb[0].mxu0
      %2258 = vmatprep.mubr.f32.mxu0 0.0
      %2259 = vmatmul.mubr.f32.gmra.mrb[0].mxu0 %v673
      %v2260 = vpop.f32.mrb[0].mxu0
      %v2261 = vadd.f32 %v2036, %v2260
      %v2262 = vpop.f32.mrb[0].mxu0
      %2263 = vmatprep.mubr.f32.mxu0 0.0
      %2264 = vmatmul.mubr.f32.gmra.mrb[0].mxu0 %v674
      %v2265 = vpop.f32.mrb[0].mxu0
      %v2266 = vadd.f32 %v2041, %v2265
      %v2267 = vpop.f32.mrb[0].mxu0
      %2268 = vmatprep.mubr.f32.mxu0 0.0
      %2269 = vmatmul.mubr.f32.gmra.mrb[0].mxu0 %v675
      %v2270 = vpop.f32.mrb[0].mxu0
      %v2271 = vadd.f32 %v2046, %v2270
      %v2272 = vpop.f32.mrb[0].mxu0
      %2273 = vmatprep.mubr.f32.mxu0 0.0
      %2274 = vmatmul.mubr.f32.gmra.mrb[0].mxu0 %v676
      %v2275 = vpop.f32.mrb[0].mxu0
      %v2276 = vadd.f32 %v2051, %v2275
      %v2277 = vpop.f32.mrb[0].mxu0
      %2278 = vmatprep.mubr.f32.mxu0 0.0
      %2279 = vmatmul.mubr.f32.gmra.mrb[0].mxu0 %v677
      %v2280 = vpop.f32.mrb[0].mxu0
      %v2281 = vadd.f32 %v2056, %v2280
      %v2282 = vpop.f32.mrb[0].mxu0
      %2283 = vmatprep.mubr.f32.mxu0 0.0
      %2284 = vmatmul.mubr.f32.gmra.mrb[0].mxu0 %v678
      %v2285 = vpop.f32.mrb[0].mxu0
      %v2286 = vadd.f32 %v2061, %v2285
      %v2287 = vpop.f32.mrb[0].mxu0
      %2288 = vmatprep.mubr.f32.mxu0 0.0
      %2289 = vmatmul.mubr.f32.gmra.mrb[0].mxu0 %v679
      %v2290 = vpop.f32.mrb[0].mxu0
      %v2291 = vadd.f32 %v2066, %v2290
      %v2292 = vpop.f32.mrb[0].mxu0
      %2293 = vmatprep.mubr.f32.mxu0 0.0
      %2294 = vmatmul.mubr.f32.gmra.mrb[0].mxu0 %v680
      %v2295 = vpop.f32.mrb[0].mxu0
      %v2296 = vadd.f32 %v2071, %v2295
      %v2297 = vpop.f32.mrb[0].mxu0
      %2298 = vmatprep.mubr.f32.mxu0 0.0
      %2299 = vmatmul.mubr.f32.gmra.mrb[0].mxu0 %v681
      %v2300 = vpop.f32.mrb[0].mxu0
      %v2301 = vadd.f32 %v2076, %v2300
      %v2302 = vpop.f32.mrb[0].mxu0
      %2303 = vmatprep.mubr.f32.mxu0 0.0
      %2304 = vmatmul.mubr.f32.gmra.mrb[0].mxu0 %v682
      %v2305 = vpop.f32.mrb[0].mxu0
      %v2306 = vadd.f32 %v2081, %v2305
      %v2307 = vpop.f32.mrb[0].mxu0
      %2308 = vdwg.mxu0
      %s2309 = scalar_lea.vmem %s175, 768
      %v2310 = vld [vmem:[%s2309] sm:$0xff]
      %v2311 = vld [vmem:[%s2309 + $0x8] sm:$0xff]
      %v2312 = vld [vmem:[%s2309 + $0x10] sm:$0xff]
      %v2313 = vld [vmem:[%s2309 + $0x18] sm:$0xff]
      %v2314 = vld [vmem:[%s2309 + $0x20] sm:$0xff]
      %v2315 = vld [vmem:[%s2309 + $0x28] sm:$0xff]
      %v2316 = vld [vmem:[%s2309 + $0x30] sm:$0xff]
      %v2317 = vld [vmem:[%s2309 + $0x38] sm:$0xff]
      %v2318 = vld [vmem:[%s2309 + $0x40] sm:$0xff]
      %v2319 = vld [vmem:[%s2309 + $0x48] sm:$0xff]
      %v2320 = vld [vmem:[%s2309 + $0x50] sm:$0xff]
      %v2321 = vld [vmem:[%s2309 + $0x58] sm:$0xff]
      %v2322 = vld [vmem:[%s2309 + $0x60] sm:$0xff]
      %v2323 = vld [vmem:[%s2309 + $0x68] sm:$0xff]
      %v2324 = vld [vmem:[%s2309 + $0x70] sm:$0xff]
      %v2325 = vld [vmem:[%s2309 + $0x78] sm:$0xff]
      %2326 = vmatprep.subr.mxu0 0.0
      %2327 = vmatpush1.msra.mxu0 %v2310
      %2328 = vmatprep.subr.mxu0 0.0
      %2329 = vmatpush1.msra.mxu0 %v2311
      %2330 = vmatprep.subr.mxu0 0.0
      %2331 = vmatpush1.msra.mxu0 %v2312
      %2332 = vmatprep.subr.mxu0 0.0
      %2333 = vmatpush1.msra.mxu0 %v2313
      %2334 = vmatprep.subr.mxu0 0.0
      %2335 = vmatpush1.msra.mxu0 %v2314
      %2336 = vmatprep.subr.mxu0 0.0
      %2337 = vmatpush1.msra.mxu0 %v2315
      %2338 = vmatprep.subr.mxu0 0.0
      %2339 = vmatpush1.msra.mxu0 %v2316
      %2340 = vmatprep.subr.mxu0 0.0
      %2341 = vmatpush1.msra.mxu0 %v2317
      %2342 = vmatprep.subr.mxu0 0.0
      %2343 = vmatpush1.msra.mxu0 %v2318
      %2344 = vmatprep.subr.mxu0 0.0
      %2345 = vmatpush1.msra.mxu0 %v2319
      %2346 = vmatprep.subr.mxu0 0.0
      %2347 = vmatpush1.msra.mxu0 %v2320
      %2348 = vmatprep.subr.mxu0 0.0
      %2349 = vmatpush1.msra.mxu0 %v2321
      %2350 = vmatprep.subr.mxu0 0.0
      %2351 = vmatpush1.msra.mxu0 %v2322
      %2352 = vmatprep.subr.mxu0 0.0
      %2353 = vmatpush1.msra.mxu0 %v2323
      %2354 = vmatprep.subr.mxu0 0.0
      %2355 = vmatpush1.msra.mxu0 %v2324
      %2356 = vmatprep.subr.mxu0 0.0
      %2357 = vmatpush1.msra.mxu0 %v2325
      %2358 = vmatprep.subr.mxu0 0.0
      %2359 = vmatpush1.msra.mxu0 0.0
      %2360 = vmatprep.subr.mxu0 0.0
      %2361 = vmatpush1.msra.mxu0 0.0
      %2362 = vmatprep.subr.mxu0 0.0
      %2363 = vmatpush1.msra.mxu0 0.0
      %2364 = vmatprep.subr.mxu0 0.0
      %2365 = vmatpush1.msra.mxu0 0.0
      %2366 = vmatprep.subr.mxu0 0.0
      %2367 = vmatpush1.msra.mxu0 0.0
      %2368 = vmatprep.subr.mxu0 0.0
      %2369 = vmatpush1.msra.mxu0 0.0
      %2370 = vmatprep.subr.mxu0 0.0
      %2371 = vmatpush1.msra.mxu0 0.0
      %2372 = vmatprep.subr.mxu0 0.0
      %2373 = vmatpush1.msra.mxu0 0.0
      %2374 = vmatprep.subr.mxu0 0.0
      %2375 = vmatpush1.msra.mxu0 0.0
      %2376 = vmatprep.subr.mxu0 0.0
      %2377 = vmatpush1.msra.mxu0 0.0
      %2378 = vmatprep.subr.mxu0 0.0
      %2379 = vmatpush1.msra.mxu0 0.0
      %2380 = vmatprep.subr.mxu0 0.0
      %2381 = vmatpush1.msra.mxu0 0.0
      %2382 = vmatprep.subr.mxu0 0.0
      %2383 = vmatpush1.msra.mxu0 0.0
      %2384 = vmatprep.subr.mxu0 0.0
      %2385 = vmatpush1.msra.mxu0 0.0
      %2386 = vmatprep.subr.mxu0 0.0
      %2387 = vmatpush1.msra.mxu0 0.0
      %2388 = vmatprep.subr.mxu0 0.0
      %2389 = vmatpush1.msra.mxu0 0.0
      %2390 = vmatprep.mubr.f32.mxu0 0.0
      %2391 = vmatmul.mubr.f32.gmra.mrb[0].mxu0 %v653
      %v2392 = vpop.f32.mrb[0].mxu0
      %v2393 = vadd.f32 0.0, %v2392
      %v2394 = vpop.f32.mrb[0].mxu0
      %2395 = vmatprep.mubr.f32.mxu0 0.0
      %2396 = vmatmul.mubr.f32.gmra.mrb[0].mxu0 %v654
      %v2397 = vpop.f32.mrb[0].mxu0
      %v2398 = vadd.f32 0.0, %v2397
      %v2399 = vpop.f32.mrb[0].mxu0
      %2400 = vmatprep.mubr.f32.mxu0 0.0
      %2401 = vmatmul.mubr.f32.gmra.mrb[0].mxu0 %v655
      %v2402 = vpop.f32.mrb[0].mxu0
      %v2403 = vadd.f32 0.0, %v2402
      %v2404 = vpop.f32.mrb[0].mxu0
      %2405 = vmatprep.mubr.f32.mxu0 0.0
      %2406 = vmatmul.mubr.f32.gmra.mrb[0].mxu0 %v656
      %v2407 = vpop.f32.mrb[0].mxu0
      %v2408 = vadd.f32 0.0, %v2407
      %v2409 = vpop.f32.mrb[0].mxu0
      %2410 = vmatprep.mubr.f32.mxu0 0.0
      %2411 = vmatmul.mubr.f32.gmra.mrb[0].mxu0 %v657
      %v2412 = vpop.f32.mrb[0].mxu0
      %v2413 = vadd.f32 0.0, %v2412
      %v2414 = vpop.f32.mrb[0].mxu0
      %2415 = vmatprep.mubr.f32.mxu0 0.0
      %2416 = vmatmul.mubr.f32.gmra.mrb[0].mxu0 %v658
      %v2417 = vpop.f32.mrb[0].mxu0
      %v2418 = vadd.f32 0.0, %v2417
      %v2419 = vpop.f32.mrb[0].mxu0
      %2420 = vmatprep.mubr.f32.mxu0 0.0
      %2421 = vmatmul.mubr.f32.gmra.mrb[0].mxu0 %v659
      %v2422 = vpop.f32.mrb[0].mxu0
      %v2423 = vadd.f32 0.0, %v2422
      %v2424 = vpop.f32.mrb[0].mxu0
      %2425 = vmatprep.mubr.f32.mxu0 0.0
      %2426 = vmatmul.mubr.f32.gmra.mrb[0].mxu0 %v660
      %v2427 = vpop.f32.mrb[0].mxu0
      %v2428 = vadd.f32 0.0, %v2427
      %v2429 = vpop.f32.mrb[0].mxu0
      %2430 = vmatprep.mubr.f32.mxu0 0.0
      %2431 = vmatmul.mubr.f32.gmra.mrb[0].mxu0 %v661
      %v2432 = vpop.f32.mrb[0].mxu0
      %v2433 = vadd.f32 0.0, %v2432
      %v2434 = vpop.f32.mrb[0].mxu0
      %2435 = vmatprep.mubr.f32.mxu0 0.0
      %2436 = vmatmul.mubr.f32.gmra.mrb[0].mxu0 %v662
      %v2437 = vpop.f32.mrb[0].mxu0
      %v2438 = vadd.f32 0.0, %v2437
      %v2439 = vpop.f32.mrb[0].mxu0
      %2440 = vmatprep.mubr.f32.mxu0 0.0
      %2441 = vmatmul.mubr.f32.gmra.mrb[0].mxu0 %v663
      %v2442 = vpop.f32.mrb[0].mxu0
      %v2443 = vadd.f32 0.0, %v2442
      %v2444 = vpop.f32.mrb[0].mxu0
      %2445 = vmatprep.mubr.f32.mxu0 0.0
      %2446 = vmatmul.mubr.f32.gmra.mrb[0].mxu0 %v664
      %v2447 = vpop.f32.mrb[0].mxu0
      %v2448 = vadd.f32 0.0, %v2447
      %v2449 = vpop.f32.mrb[0].mxu0
      %2450 = vmatprep.mubr.f32.mxu0 0.0
      %2451 = vmatmul.mubr.f32.gmra.mrb[0].mxu0 %v665
      %v2452 = vpop.f32.mrb[0].mxu0
      %v2453 = vadd.f32 0.0, %v2452
      %v2454 = vpop.f32.mrb[0].mxu0
      %2455 = vmatprep.mubr.f32.mxu0 0.0
      %2456 = vmatmul.mubr.f32.gmra.mrb[0].mxu0 %v666
      %v2457 = vpop.f32.mrb[0].mxu0
      %v2458 = vadd.f32 0.0, %v2457
      %v2459 = vpop.f32.mrb[0].mxu0
      %2460 = vmatprep.mubr.f32.mxu0 0.0
      %2461 = vmatmul.mubr.f32.gmra.mrb[0].mxu0 %v667
      %v2462 = vpop.f32.mrb[0].mxu0
      %v2463 = vadd.f32 0.0, %v2462
      %v2464 = vpop.f32.mrb[0].mxu0
      %2465 = vmatprep.mubr.f32.mxu0 0.0
      %2466 = vmatmul.mubr.f32.gmra.mrb[0].mxu0 %v668
      %v2467 = vpop.f32.mrb[0].mxu0
      %v2468 = vadd.f32 0.0, %v2467
      %v2469 = vpop.f32.mrb[0].mxu0
      %2470 = vmatprep.mubr.f32.mxu0 0.0
      %2471 = vmatmul.mubr.f32.gmra.mrb[0].mxu0 %v669
      %v2472 = vpop.f32.mrb[0].mxu0
      %v2473 = vadd.f32 0.0, %v2472
      %v2474 = vpop.f32.mrb[0].mxu0
      %2475 = vmatprep.mubr.f32.mxu0 0.0
      %2476 = vmatmul.mubr.f32.gmra.mrb[0].mxu0 %v670
      %v2477 = vpop.f32.mrb[0].mxu0
      %v2478 = vadd.f32 0.0, %v2477
      %v2479 = vpop.f32.mrb[0].mxu0
      %2480 = vmatprep.mubr.f32.mxu0 0.0
      %2481 = vmatmul.mubr.f32.gmra.mrb[0].mxu0 %v671
      %v2482 = vpop.f32.mrb[0].mxu0
      %v2483 = vadd.f32 0.0, %v2482
      %v2484 = vpop.f32.mrb[0].mxu0
      %2485 = vmatprep.mubr.f32.mxu0 0.0
      %2486 = vmatmul.mubr.f32.gmra.mrb[0].mxu0 %v672
      %v2487 = vpop.f32.mrb[0].mxu0
      %v2488 = vadd.f32 0.0, %v2487
      %v2489 = vpop.f32.mrb[0].mxu0
      %2490 = vmatprep.mubr.f32.mxu0 0.0
      %2491 = vmatmul.mubr.f32.gmra.mrb[0].mxu0 %v673
      %v2492 = vpop.f32.mrb[0].mxu0
      %v2493 = vadd.f32 0.0, %v2492
      %v2494 = vpop.f32.mrb[0].mxu0
      %2495 = vmatprep.mubr.f32.mxu0 0.0
      %2496 = vmatmul.mubr.f32.gmra.mrb[0].mxu0 %v674
      %v2497 = vpop.f32.mrb[0].mxu0
      %v2498 = vadd.f32 0.0, %v2497
      %v2499 = vpop.f32.mrb[0].mxu0
      %2500 = vmatprep.mubr.f32.mxu0 0.0
      %2501 = vmatmul.mubr.f32.gmra.mrb[0].mxu0 %v675
      %v2502 = vpop.f32.mrb[0].mxu0
      %v2503 = vadd.f32 0.0, %v2502
      %v2504 = vpop.f32.mrb[0].mxu0
      %2505 = vmatprep.mubr.f32.mxu0 0.0
      %2506 = vmatmul.mubr.f32.gmra.mrb[0].mxu0 %v676
      %v2507 = vpop.f32.mrb[0].mxu0
      %v2508 = vadd.f32 0.0, %v2507
      %v2509 = vpop.f32.mrb[0].mxu0
      %2510 = vmatprep.mubr.f32.mxu0 0.0
      %2511 = vmatmul.mubr.f32.gmra.mrb[0].mxu0 %v677
      %v2512 = vpop.f32.mrb[0].mxu0
      %v2513 = vadd.f32 0.0, %v2512
      %v2514 = vpop.f32.mrb[0].mxu0
      %2515 = vmatprep.mubr.f32.mxu0 0.0
      %2516 = vmatmul.mubr.f32.gmra.mrb[0].mxu0 %v678
      %v2517 = vpop.f32.mrb[0].mxu0
      %v2518 = vadd.f32 0.0, %v2517
      %v2519 = vpop.f32.mrb[0].mxu0
      %2520 = vmatprep.mubr.f32.mxu0 0.0
      %2521 = vmatmul.mubr.f32.gmra.mrb[0].mxu0 %v679
      %v2522 = vpop.f32.mrb[0].mxu0
      %v2523 = vadd.f32 0.0, %v2522
      %v2524 = vpop.f32.mrb[0].mxu0
      %2525 = vmatprep.mubr.f32.mxu0 0.0
      %2526 = vmatmul.mubr.f32.gmra.mrb[0].mxu0 %v680
      %v2527 = vpop.f32.mrb[0].mxu0
      %v2528 = vadd.f32 0.0, %v2527
      %v2529 = vpop.f32.mrb[0].mxu0
      %2530 = vmatprep.mubr.f32.mxu0 0.0
      %2531 = vmatmul.mubr.f32.gmra.mrb[0].mxu0 %v681
      %v2532 = vpop.f32.mrb[0].mxu0
      %v2533 = vadd.f32 0.0, %v2532
      %v2534 = vpop.f32.mrb[0].mxu0
      %2535 = vmatprep.mubr.f32.mxu0 0.0
      %2536 = vmatmul.mubr.f32.gmra.mrb[0].mxu0 %v682
      %v2537 = vpop.f32.mrb[0].mxu0
      %v2538 = vadd.f32 0.0, %v2537
      %v2539 = vpop.f32.mrb[0].mxu0
      %2540 = vmatprep.mubr.f32.mxu0 0.0
      %2541 = vmatmul.mubr.f32.gmra.mrb[0].mxu0 %v683
      %v2542 = vpop.f32.mrb[0].mxu0
      %v2543 = vadd.f32 0.0, %v2542
      %v2544 = vpop.f32.mrb[0].mxu0
      %2545 = vmatprep.mubr.f32.mxu0 0.0
      %2546 = vmatmul.mubr.f32.gmra.mrb[0].mxu0 %v684
      %v2547 = vpop.f32.mrb[0].mxu0
      %v2548 = vadd.f32 0.0, %v2547
      %v2549 = vpop.f32.mrb[0].mxu0
      %2550 = vdwg.mxu0
      %v2551 = vadd.f32 %v2151, %v2393
      %v2552 = vadd.f32 %v2156, %v2398
      %v2553 = vadd.f32 %v2161, %v2403
      %v2554 = vadd.f32 %v2166, %v2408
      %v2555 = vadd.f32 %v2171, %v2413
      %v2556 = vadd.f32 %v2176, %v2418
      %v2557 = vadd.f32 %v2181, %v2423
      %v2558 = vadd.f32 %v2186, %v2428
      %v2559 = vadd.f32 %v2191, %v2433
      %v2560 = vadd.f32 %v2196, %v2438
      %v2561 = vadd.f32 %v2201, %v2443
      %v2562 = vadd.f32 %v2206, %v2448
      %v2563 = vadd.f32 %v2211, %v2453
      %v2564 = vadd.f32 %v2216, %v2458
      %v2565 = vadd.f32 %v2221, %v2463
      %v2566 = vadd.f32 %v2226, %v2468
      %v2567 = vadd.f32 %v2231, %v2473
      %v2568 = vadd.f32 %v2236, %v2478
      %v2569 = vadd.f32 %v2241, %v2483
      %v2570 = vadd.f32 %v2246, %v2488
      %v2571 = vadd.f32 %v2251, %v2493
      %v2572 = vadd.f32 %v2256, %v2498
      %v2573 = vadd.f32 %v2261, %v2503
      %v2574 = vadd.f32 %v2266, %v2508
      %v2575 = vadd.f32 %v2271, %v2513
      %v2576 = vadd.f32 %v2276, %v2518
      %v2577 = vadd.f32 %v2281, %v2523
      %v2578 = vadd.f32 %v2286, %v2528
      %v2579 = vadd.f32 %v2291, %v2533
      %v2580 = vadd.f32 %v2296, %v2538
      %v2581 = vadd.f32 %v2301, %v2543
      %v2582 = vadd.f32 %v2306, %v2548
      %s2583 = scalar_lea.vmem %s175, 896
      %v2584 = vld [vmem:[%s2583] sm:$0xff]
      %v2585 = vld [vmem:[%s2583 + $0x8] sm:$0xff]
      %v2586 = vld [vmem:[%s2583 + $0x10] sm:$0xff]
      %v2587 = vld [vmem:[%s2583 + $0x18] sm:$0xff]
      %v2588 = vld [vmem:[%s2583 + $0x20] sm:$0xff]
      %v2589 = vld [vmem:[%s2583 + $0x28] sm:$0xff]
      %v2590 = vld [vmem:[%s2583 + $0x30] sm:$0xff]
      %v2591 = vld [vmem:[%s2583 + $0x38] sm:$0xff]
      %v2592 = vld [vmem:[%s2583 + $0x40] sm:$0xff]
      %v2593 = vld [vmem:[%s2583 + $0x48] sm:$0xff]
      %v2594 = vld [vmem:[%s2583 + $0x50] sm:$0xff]
      %v2595 = vld [vmem:[%s2583 + $0x58] sm:$0xff]
      %v2596 = vld [vmem:[%s2583 + $0x60] sm:$0xff]
      %v2597 = vld [vmem:[%s2583 + $0x68] sm:$0xff]
      %v2598 = vld [vmem:[%s2583 + $0x70] sm:$0xff]
      %v2599 = vld [vmem:[%s2583 + $0x78] sm:$0xff]
      %2600 = vmatprep.subr.mxu0 0.0
      %2601 = vmatpush1.msra.mxu0 %v2584
      %2602 = vmatprep.subr.mxu0 0.0
      %2603 = vmatpush1.msra.mxu0 %v2585
      %2604 = vmatprep.subr.mxu0 0.0
      %2605 = vmatpush1.msra.mxu0 %v2586
      %2606 = vmatprep.subr.mxu0 0.0
      %2607 = vmatpush1.msra.mxu0 %v2587
      %2608 = vmatprep.subr.mxu0 0.0
      %2609 = vmatpush1.msra.mxu0 %v2588
      %2610 = vmatprep.subr.mxu0 0.0
      %2611 = vmatpush1.msra.mxu0 %v2589
      %2612 = vmatprep.subr.mxu0 0.0
      %2613 = vmatpush1.msra.mxu0 %v2590
      %2614 = vmatprep.subr.mxu0 0.0
      %2615 = vmatpush1.msra.mxu0 %v2591
      %2616 = vmatprep.subr.mxu0 0.0
      %2617 = vmatpush1.msra.mxu0 %v2592
      %2618 = vmatprep.subr.mxu0 0.0
      %2619 = vmatpush1.msra.mxu0 %v2593
      %2620 = vmatprep.subr.mxu0 0.0
      %2621 = vmatpush1.msra.mxu0 %v2594
      %2622 = vmatprep.subr.mxu0 0.0
      %2623 = vmatpush1.msra.mxu0 %v2595
      %2624 = vmatprep.subr.mxu0 0.0
      %2625 = vmatpush1.msra.mxu0 %v2596
      %2626 = vmatprep.subr.mxu0 0.0
      %2627 = vmatpush1.msra.mxu0 %v2597
      %2628 = vmatprep.subr.mxu0 0.0
      %2629 = vmatpush1.msra.mxu0 %v2598
      %2630 = vmatprep.subr.mxu0 0.0
      %2631 = vmatpush1.msra.mxu0 %v2599
      %2632 = vmatprep.subr.mxu0 0.0
      %2633 = vmatpush1.msra.mxu0 0.0
      %2634 = vmatprep.subr.mxu0 0.0
      %2635 = vmatpush1.msra.mxu0 0.0
      %2636 = vmatprep.subr.mxu0 0.0
      %2637 = vmatpush1.msra.mxu0 0.0
      %2638 = vmatprep.subr.mxu0 0.0
      %2639 = vmatpush1.msra.mxu0 0.0
      %2640 = vmatprep.subr.mxu0 0.0
      %2641 = vmatpush1.msra.mxu0 0.0
      %2642 = vmatprep.subr.mxu0 0.0
      %2643 = vmatpush1.msra.mxu0 0.0
      %2644 = vmatprep.subr.mxu0 0.0
      %2645 = vmatpush1.msra.mxu0 0.0
      %2646 = vmatprep.subr.mxu0 0.0
      %2647 = vmatpush1.msra.mxu0 0.0
      %2648 = vmatprep.subr.mxu0 0.0
      %2649 = vmatpush1.msra.mxu0 0.0
      %2650 = vmatprep.subr.mxu0 0.0
      %2651 = vmatpush1.msra.mxu0 0.0
      %2652 = vmatprep.subr.mxu0 0.0
      %2653 = vmatpush1.msra.mxu0 0.0
      %2654 = vmatprep.subr.mxu0 0.0
      %2655 = vmatpush1.msra.mxu0 0.0
      %2656 = vmatprep.subr.mxu0 0.0
      %2657 = vmatpush1.msra.mxu0 0.0
      %2658 = vmatprep.subr.mxu0 0.0
      %2659 = vmatpush1.msra.mxu0 0.0
      %2660 = vmatprep.subr.mxu0 0.0
      %2661 = vmatpush1.msra.mxu0 0.0
      %2662 = vmatprep.subr.mxu0 0.0
      %2663 = vmatpush1.msra.mxu0 0.0
      %2664 = vmatprep.mubr.f32.mxu0 0.0
      %2665 = vmatmul.mubr.f32.gmra.mrb[0].mxu0 %v689
      %v2666 = vpop.f32.mrb[0].mxu0
      %v2667 = vadd.f32 0.0, %v2666
      %v2668 = vpop.f32.mrb[0].mxu0
      %2669 = vmatprep.mubr.f32.mxu0 0.0
      %2670 = vmatmul.mubr.f32.gmra.mrb[0].mxu0 %v690
      %v2671 = vpop.f32.mrb[0].mxu0
      %v2672 = vadd.f32 0.0, %v2671
      %v2673 = vpop.f32.mrb[0].mxu0
      %2674 = vmatprep.mubr.f32.mxu0 0.0
      %2675 = vmatmul.mubr.f32.gmra.mrb[0].mxu0 %v691
      %v2676 = vpop.f32.mrb[0].mxu0
      %v2677 = vadd.f32 0.0, %v2676
      %v2678 = vpop.f32.mrb[0].mxu0
      %2679 = vmatprep.mubr.f32.mxu0 0.0
      %2680 = vmatmul.mubr.f32.gmra.mrb[0].mxu0 %v692
      %v2681 = vpop.f32.mrb[0].mxu0
      %v2682 = vadd.f32 0.0, %v2681
      %v2683 = vpop.f32.mrb[0].mxu0
      %2684 = vmatprep.mubr.f32.mxu0 0.0
      %2685 = vmatmul.mubr.f32.gmra.mrb[0].mxu0 %v693
      %v2686 = vpop.f32.mrb[0].mxu0
      %v2687 = vadd.f32 0.0, %v2686
      %v2688 = vpop.f32.mrb[0].mxu0
      %2689 = vmatprep.mubr.f32.mxu0 0.0
      %2690 = vmatmul.mubr.f32.gmra.mrb[0].mxu0 %v694
      %v2691 = vpop.f32.mrb[0].mxu0
      %v2692 = vadd.f32 0.0, %v2691
      %v2693 = vpop.f32.mrb[0].mxu0
      %2694 = vmatprep.mubr.f32.mxu0 0.0
      %2695 = vmatmul.mubr.f32.gmra.mrb[0].mxu0 %v695
      %v2696 = vpop.f32.mrb[0].mxu0
      %v2697 = vadd.f32 0.0, %v2696
      %v2698 = vpop.f32.mrb[0].mxu0
      %2699 = vmatprep.mubr.f32.mxu0 0.0
      %2700 = vmatmul.mubr.f32.gmra.mrb[0].mxu0 %v696
      %v2701 = vpop.f32.mrb[0].mxu0
      %v2702 = vadd.f32 0.0, %v2701
      %v2703 = vpop.f32.mrb[0].mxu0
      %2704 = vmatprep.mubr.f32.mxu0 0.0
      %2705 = vmatmul.mubr.f32.gmra.mrb[0].mxu0 %v697
      %v2706 = vpop.f32.mrb[0].mxu0
      %v2707 = vadd.f32 0.0, %v2706
      %v2708 = vpop.f32.mrb[0].mxu0
      %2709 = vmatprep.mubr.f32.mxu0 0.0
      %2710 = vmatmul.mubr.f32.gmra.mrb[0].mxu0 %v698
      %v2711 = vpop.f32.mrb[0].mxu0
      %v2712 = vadd.f32 0.0, %v2711
      %v2713 = vpop.f32.mrb[0].mxu0
      %2714 = vmatprep.mubr.f32.mxu0 0.0
      %2715 = vmatmul.mubr.f32.gmra.mrb[0].mxu0 %v699
      %v2716 = vpop.f32.mrb[0].mxu0
      %v2717 = vadd.f32 0.0, %v2716
      %v2718 = vpop.f32.mrb[0].mxu0
      %2719 = vmatprep.mubr.f32.mxu0 0.0
      %2720 = vmatmul.mubr.f32.gmra.mrb[0].mxu0 %v700
      %v2721 = vpop.f32.mrb[0].mxu0
      %v2722 = vadd.f32 0.0, %v2721
      %v2723 = vpop.f32.mrb[0].mxu0
      %2724 = vmatprep.mubr.f32.mxu0 0.0
      %2725 = vmatmul.mubr.f32.gmra.mrb[0].mxu0 %v701
      %v2726 = vpop.f32.mrb[0].mxu0
      %v2727 = vadd.f32 0.0, %v2726
      %v2728 = vpop.f32.mrb[0].mxu0
      %2729 = vmatprep.mubr.f32.mxu0 0.0
      %2730 = vmatmul.mubr.f32.gmra.mrb[0].mxu0 %v702
      %v2731 = vpop.f32.mrb[0].mxu0
      %v2732 = vadd.f32 0.0, %v2731
      %v2733 = vpop.f32.mrb[0].mxu0
      %2734 = vmatprep.mubr.f32.mxu0 0.0
      %2735 = vmatmul.mubr.f32.gmra.mrb[0].mxu0 %v703
      %v2736 = vpop.f32.mrb[0].mxu0
      %v2737 = vadd.f32 0.0, %v2736
      %v2738 = vpop.f32.mrb[0].mxu0
      %2739 = vmatprep.mubr.f32.mxu0 0.0
      %2740 = vmatmul.mubr.f32.gmra.mrb[0].mxu0 %v704
      %v2741 = vpop.f32.mrb[0].mxu0
      %v2742 = vadd.f32 0.0, %v2741
      %v2743 = vpop.f32.mrb[0].mxu0
      %2744 = vmatprep.mubr.f32.mxu0 0.0
      %2745 = vmatmul.mubr.f32.gmra.mrb[0].mxu0 %v705
      %v2746 = vpop.f32.mrb[0].mxu0
      %v2747 = vadd.f32 0.0, %v2746
      %v2748 = vpop.f32.mrb[0].mxu0
      %2749 = vmatprep.mubr.f32.mxu0 0.0
      %2750 = vmatmul.mubr.f32.gmra.mrb[0].mxu0 %v706
      %v2751 = vpop.f32.mrb[0].mxu0
      %v2752 = vadd.f32 0.0, %v2751
      %v2753 = vpop.f32.mrb[0].mxu0
      %2754 = vmatprep.mubr.f32.mxu0 0.0
      %2755 = vmatmul.mubr.f32.gmra.mrb[0].mxu0 %v707
      %v2756 = vpop.f32.mrb[0].mxu0
      %v2757 = vadd.f32 0.0, %v2756
      %v2758 = vpop.f32.mrb[0].mxu0
      %2759 = vmatprep.mubr.f32.mxu0 0.0
      %2760 = vmatmul.mubr.f32.gmra.mrb[0].mxu0 %v708
      %v2761 = vpop.f32.mrb[0].mxu0
      %v2762 = vadd.f32 0.0, %v2761
      %v2763 = vpop.f32.mrb[0].mxu0
      %2764 = vmatprep.mubr.f32.mxu0 0.0
      %2765 = vmatmul.mubr.f32.gmra.mrb[0].mxu0 %v709
      %v2766 = vpop.f32.mrb[0].mxu0
      %v2767 = vadd.f32 0.0, %v2766
      %v2768 = vpop.f32.mrb[0].mxu0
      %2769 = vmatprep.mubr.f32.mxu0 0.0
      %2770 = vmatmul.mubr.f32.gmra.mrb[0].mxu0 %v710
      %v2771 = vpop.f32.mrb[0].mxu0
      %v2772 = vadd.f32 0.0, %v2771
      %v2773 = vpop.f32.mrb[0].mxu0
      %2774 = vmatprep.mubr.f32.mxu0 0.0
      %2775 = vmatmul.mubr.f32.gmra.mrb[0].mxu0 %v711
      %v2776 = vpop.f32.mrb[0].mxu0
      %v2777 = vadd.f32 0.0, %v2776
      %v2778 = vpop.f32.mrb[0].mxu0
      %2779 = vmatprep.mubr.f32.mxu0 0.0
      %2780 = vmatmul.mubr.f32.gmra.mrb[0].mxu0 %v712
      %v2781 = vpop.f32.mrb[0].mxu0
      %v2782 = vadd.f32 0.0, %v2781
      %v2783 = vpop.f32.mrb[0].mxu0
      %2784 = vmatprep.mubr.f32.mxu0 0.0
      %2785 = vmatmul.mubr.f32.gmra.mrb[0].mxu0 %v713
      %v2786 = vpop.f32.mrb[0].mxu0
      %v2787 = vadd.f32 0.0, %v2786
      %v2788 = vpop.f32.mrb[0].mxu0
      %2789 = vmatprep.mubr.f32.mxu0 0.0
      %2790 = vmatmul.mubr.f32.gmra.mrb[0].mxu0 %v714
      %v2791 = vpop.f32.mrb[0].mxu0
      %v2792 = vadd.f32 0.0, %v2791
      %v2793 = vpop.f32.mrb[0].mxu0
      %2794 = vmatprep.mubr.f32.mxu0 0.0
      %2795 = vmatmul.mubr.f32.gmra.mrb[0].mxu0 %v715
      %v2796 = vpop.f32.mrb[0].mxu0
      %v2797 = vadd.f32 0.0, %v2796
      %v2798 = vpop.f32.mrb[0].mxu0
      %2799 = vmatprep.mubr.f32.mxu0 0.0
      %2800 = vmatmul.mubr.f32.gmra.mrb[0].mxu0 %v716
      %v2801 = vpop.f32.mrb[0].mxu0
      %v2802 = vadd.f32 0.0, %v2801
      %v2803 = vpop.f32.mrb[0].mxu0
      %2804 = vmatprep.mubr.f32.mxu0 0.0
      %2805 = vmatmul.mubr.f32.gmra.mrb[0].mxu0 %v717
      %v2806 = vpop.f32.mrb[0].mxu0
      %v2807 = vadd.f32 0.0, %v2806
      %v2808 = vpop.f32.mrb[0].mxu0
      %2809 = vmatprep.mubr.f32.mxu0 0.0
      %2810 = vmatmul.mubr.f32.gmra.mrb[0].mxu0 %v718
      %v2811 = vpop.f32.mrb[0].mxu0
      %v2812 = vadd.f32 0.0, %v2811
      %v2813 = vpop.f32.mrb[0].mxu0
      %2814 = vmatprep.mubr.f32.mxu0 0.0
      %2815 = vmatmul.mubr.f32.gmra.mrb[0].mxu0 %v719
      %v2816 = vpop.f32.mrb[0].mxu0
      %v2817 = vadd.f32 0.0, %v2816
      %v2818 = vpop.f32.mrb[0].mxu0
      %2819 = vmatprep.mubr.f32.mxu0 0.0
      %2820 = vmatmul.mubr.f32.gmra.mrb[0].mxu0 %v720
      %v2821 = vpop.f32.mrb[0].mxu0
      %v2822 = vadd.f32 0.0, %v2821
      %v2823 = vpop.f32.mrb[0].mxu0
      %2824 = vdwg.mxu0
      %v2825 = vadd.f32 %v2551, %v2667
      %v2826 = vadd.f32 %v2552, %v2672
      %v2827 = vadd.f32 %v2553, %v2677
      %v2828 = vadd.f32 %v2554, %v2682
      %v2829 = vadd.f32 %v2555, %v2687
      %v2830 = vadd.f32 %v2556, %v2692
      %v2831 = vadd.f32 %v2557, %v2697
      %v2832 = vadd.f32 %v2558, %v2702
      %v2833 = vadd.f32 %v2559, %v2707
      %v2834 = vadd.f32 %v2560, %v2712
      %v2835 = vadd.f32 %v2561, %v2717
      %v2836 = vadd.f32 %v2562, %v2722
      %v2837 = vadd.f32 %v2563, %v2727
      %v2838 = vadd.f32 %v2564, %v2732
      %v2839 = vadd.f32 %v2565, %v2737
      %v2840 = vadd.f32 %v2566, %v2742
      %v2841 = vadd.f32 %v2567, %v2747
      %v2842 = vadd.f32 %v2568, %v2752
      %v2843 = vadd.f32 %v2569, %v2757
      %v2844 = vadd.f32 %v2570, %v2762
      %v2845 = vadd.f32 %v2571, %v2767
      %v2846 = vadd.f32 %v2572, %v2772
      %v2847 = vadd.f32 %v2573, %v2777
      %v2848 = vadd.f32 %v2574, %v2782
      %v2849 = vadd.f32 %v2575, %v2787
      %v2850 = vadd.f32 %v2576, %v2792
      %v2851 = vadd.f32 %v2577, %v2797
      %v2852 = vadd.f32 %v2578, %v2802
      %v2853 = vadd.f32 %v2579, %v2807
      %v2854 = vadd.f32 %v2580, %v2812
      %v2855 = vadd.f32 %v2581, %v2817
      %v2856 = vadd.f32 %v2582, %v2822
      %v2857 = vadd.f32 %v2825, %v1759
      %v2858 = vadd.f32 %v2826, %v1759
      %v2859 = vadd.f32 %v2827, %v1759
      %v2860 = vadd.f32 %v2828, %v1759
      %v2861 = vadd.f32 %v2829, %v1759
      %v2862 = vadd.f32 %v2830, %v1759
      %v2863 = vadd.f32 %v2831, %v1759
      %v2864 = vadd.f32 %v2832, %v1759
      %v2865 = vadd.f32 %v2833, %v1759
      %v2866 = vadd.f32 %v2834, %v1759
      %v2867 = vadd.f32 %v2835, %v1759
      %v2868 = vadd.f32 %v2836, %v1759
      %v2869 = vadd.f32 %v2837, %v1759
      %v2870 = vadd.f32 %v2838, %v1759
      %v2871 = vadd.f32 %v2839, %v1759
      %v2872 = vadd.f32 %v2840, %v1759
      %v2873 = vadd.f32 %v2841, %v1759
      %v2874 = vadd.f32 %v2842, %v1759
      %v2875 = vadd.f32 %v2843, %v1759
      %v2876 = vadd.f32 %v2844, %v1759
      %v2877 = vadd.f32 %v2845, %v1759
      %v2878 = vadd.f32 %v2846, %v1759
      %v2879 = vadd.f32 %v2847, %v1759
      %v2880 = vadd.f32 %v2848, %v1759
      %v2881 = vadd.f32 %v2849, %v1759
      %v2882 = vadd.f32 %v2850, %v1759
      %v2883 = vadd.f32 %v2851, %v1759
      %v2884 = vadd.f32 %v2852, %v1759
      %v2885 = vadd.f32 %v2853, %v1759
      %v2886 = vadd.f32 %v2854, %v1759
      %v2887 = vadd.f32 %v2855, %v1759
      %v2888 = vadd.f32 %v2856, %v1759
      %s2889 = scalar_lea.vmem %s188, 16
      %2890 = vst [vmem:[%s2889] sm:$0xff] %v2857
      %2891 = vst [vmem:[%s2889 + $0x8] sm:$0xff] %v2858
      %2892 = vst [vmem:[%s2889 + $0x40] sm:$0xff] %v2859
      %2893 = vst [vmem:[%s2889 + $0x48] sm:$0xff] %v2860
      %2894 = vst [vmem:[%s2889 + $0x80] sm:$0xff] %v2861
      %2895 = vst [vmem:[%s2889 + $0x88] sm:$0xff] %v2862
      %2896 = vst [vmem:[%s2889 + $0xc0] sm:$0xff] %v2863
      %2897 = vst [vmem:[%s2889 + $0xc8] sm:$0xff] %v2864
      %2898 = vst [vmem:[%s2889 + $0x100] sm:$0xff] %v2865
      %2899 = vst [vmem:[%s2889 + $0x108] sm:$0xff] %v2866
      %2900 = vst [vmem:[%s2889 + $0x140] sm:$0xff] %v2867
      %2901 = vst [vmem:[%s2889 + $0x148] sm:$0xff] %v2868
      %2902 = vst [vmem:[%s2889 + $0x180] sm:$0xff] %v2869
      %2903 = vst [vmem:[%s2889 + $0x188] sm:$0xff] %v2870
      %2904 = vst [vmem:[%s2889 + $0x1c0] sm:$0xff] %v2871
      %2905 = vst [vmem:[%s2889 + $0x1c8] sm:$0xff] %v2872
      %2906 = vst [vmem:[%s2889 + $0x200] sm:$0xff] %v2873
      %2907 = vst [vmem:[%s2889 + $0x208] sm:$0xff] %v2874
      %2908 = vst [vmem:[%s2889 + $0x240] sm:$0xff] %v2875
      %2909 = vst [vmem:[%s2889 + $0x248] sm:$0xff] %v2876
      %2910 = vst [vmem:[%s2889 + $0x280] sm:$0xff] %v2877
      %2911 = vst [vmem:[%s2889 + $0x288] sm:$0xff] %v2878
      %2912 = vst [vmem:[%s2889 + $0x2c0] sm:$0xff] %v2879
      %2913 = vst [vmem:[%s2889 + $0x2c8] sm:$0xff] %v2880
      %2914 = vst [vmem:[%s2889 + $0x300] sm:$0xff] %v2881
      %2915 = vst [vmem:[%s2889 + $0x308] sm:$0xff] %v2882
      %2916 = vst [vmem:[%s2889 + $0x340] sm:$0xff] %v2883
      %2917 = vst [vmem:[%s2889 + $0x348] sm:$0xff] %v2884
      %2918 = vst [vmem:[%s2889 + $0x380] sm:$0xff] %v2885
      %2919 = vst [vmem:[%s2889 + $0x388] sm:$0xff] %v2886
      %2920 = vst [vmem:[%s2889 + $0x3c0] sm:$0xff] %v2887
      %2921 = vst [vmem:[%s2889 + $0x3c8] sm:$0xff] %v2888
      %s2922 = scalar_lea.vmem %s175, 1024
      %v2923 = vld [vmem:[%s2922] sm:$0xff]
      %v2924 = vld [vmem:[%s2922 + $0x8] sm:$0xff]
      %v2925 = vld [vmem:[%s2922 + $0x10] sm:$0xff]
      %v2926 = vld [vmem:[%s2922 + $0x18] sm:$0xff]
      %v2927 = vld [vmem:[%s2922 + $0x20] sm:$0xff]
      %v2928 = vld [vmem:[%s2922 + $0x28] sm:$0xff]
      %v2929 = vld [vmem:[%s2922 + $0x30] sm:$0xff]
      %v2930 = vld [vmem:[%s2922 + $0x38] sm:$0xff]
      %v2931 = vld [vmem:[%s2922 + $0x40] sm:$0xff]
      %v2932 = vld [vmem:[%s2922 + $0x48] sm:$0xff]
      %v2933 = vld [vmem:[%s2922 + $0x50] sm:$0xff]
      %v2934 = vld [vmem:[%s2922 + $0x58] sm:$0xff]
      %v2935 = vld [vmem:[%s2922 + $0x60] sm:$0xff]
      %v2936 = vld [vmem:[%s2922 + $0x68] sm:$0xff]
      %v2937 = vld [vmem:[%s2922 + $0x70] sm:$0xff]
      %v2938 = vld [vmem:[%s2922 + $0x78] sm:$0xff]
      %s2939 = scalar_lea.vmem %s175, 1152
      %v2940 = vld [vmem:[%s2939] sm:$0xff]
      %v2941 = vld [vmem:[%s2939 + $0x8] sm:$0xff]
      %v2942 = vld [vmem:[%s2939 + $0x10] sm:$0xff]
      %v2943 = vld [vmem:[%s2939 + $0x18] sm:$0xff]
      %v2944 = vld [vmem:[%s2939 + $0x20] sm:$0xff]
      %v2945 = vld [vmem:[%s2939 + $0x28] sm:$0xff]
      %v2946 = vld [vmem:[%s2939 + $0x30] sm:$0xff]
      %v2947 = vld [vmem:[%s2939 + $0x38] sm:$0xff]
      %v2948 = vld [vmem:[%s2939 + $0x40] sm:$0xff]
      %v2949 = vld [vmem:[%s2939 + $0x48] sm:$0xff]
      %v2950 = vld [vmem:[%s2939 + $0x50] sm:$0xff]
      %v2951 = vld [vmem:[%s2939 + $0x58] sm:$0xff]
      %v2952 = vld [vmem:[%s2939 + $0x60] sm:$0xff]
      %v2953 = vld [vmem:[%s2939 + $0x68] sm:$0xff]
      %v2954 = vld [vmem:[%s2939 + $0x70] sm:$0xff]
      %v2955 = vld [vmem:[%s2939 + $0x78] sm:$0xff]
      %2956 = vmatprep.subr.mxu0 0.0
      %2957 = vmatpush1.msra.mxu0 %v2940
      %2958 = vmatprep.subr.mxu0 0.0
      %2959 = vmatpush1.msra.mxu0 %v2941
      %2960 = vmatprep.subr.mxu0 0.0
      %2961 = vmatpush1.msra.mxu0 %v2942
      %2962 = vmatprep.subr.mxu0 0.0
      %2963 = vmatpush1.msra.mxu0 %v2943
      %2964 = vmatprep.subr.mxu0 0.0
      %2965 = vmatpush1.msra.mxu0 %v2944
      %2966 = vmatprep.subr.mxu0 0.0
      %2967 = vmatpush1.msra.mxu0 %v2945
      %2968 = vmatprep.subr.mxu0 0.0
      %2969 = vmatpush1.msra.mxu0 %v2946
      %2970 = vmatprep.subr.mxu0 0.0
      %2971 = vmatpush1.msra.mxu0 %v2947
      %2972 = vmatprep.subr.mxu0 0.0
      %2973 = vmatpush1.msra.mxu0 %v2948
      %2974 = vmatprep.subr.mxu0 0.0
      %2975 = vmatpush1.msra.mxu0 %v2949
      %2976 = vmatprep.subr.mxu0 0.0
      %2977 = vmatpush1.msra.mxu0 %v2950
      %2978 = vmatprep.subr.mxu0 0.0
      %2979 = vmatpush1.msra.mxu0 %v2951
      %2980 = vmatprep.subr.mxu0 0.0
      %2981 = vmatpush1.msra.mxu0 %v2952
      %2982 = vmatprep.subr.mxu0 0.0
      %2983 = vmatpush1.msra.mxu0 %v2953
      %2984 = vmatprep.subr.mxu0 0.0
      %2985 = vmatpush1.msra.mxu0 %v2954
      %2986 = vmatprep.subr.mxu0 0.0
      %2987 = vmatpush1.msra.mxu0 %v2955
      %2988 = vmatprep.subr.mxu0 0.0
      %2989 = vmatpush1.msra.mxu0 0.0
      %2990 = vmatprep.subr.mxu0 0.0
      %2991 = vmatpush1.msra.mxu0 0.0
      %2992 = vmatprep.subr.mxu0 0.0
      %2993 = vmatpush1.msra.mxu0 0.0
      %2994 = vmatprep.subr.mxu0 0.0
      %2995 = vmatpush1.msra.mxu0 0.0
      %2996 = vmatprep.subr.mxu0 0.0
      %2997 = vmatpush1.msra.mxu0 0.0
      %2998 = vmatprep.subr.mxu0 0.0
      %2999 = vmatpush1.msra.mxu0 0.0
      %3000 = vmatprep.subr.mxu0 0.0
      %3001 = vmatpush1.msra.mxu0 0.0
      %3002 = vmatprep.subr.mxu0 0.0
      %3003 = vmatpush1.msra.mxu0 0.0
      %3004 = vmatprep.subr.mxu0 0.0
      %3005 = vmatpush1.msra.mxu0 0.0
      %3006 = vmatprep.subr.mxu0 0.0
      %3007 = vmatpush1.msra.mxu0 0.0
      %3008 = vmatprep.subr.mxu0 0.0
      %3009 = vmatpush1.msra.mxu0 0.0
      %3010 = vmatprep.subr.mxu0 0.0
      %3011 = vmatpush1.msra.mxu0 0.0
      %3012 = vmatprep.subr.mxu0 0.0
      %3013 = vmatpush1.msra.mxu0 0.0
      %3014 = vmatprep.subr.mxu0 0.0
      %3015 = vmatpush1.msra.mxu0 0.0
      %3016 = vmatprep.subr.mxu0 0.0
      %3017 = vmatpush1.msra.mxu0 0.0
      %3018 = vmatprep.subr.mxu0 0.0
      %3019 = vmatpush1.msra.mxu0 0.0
      %3020 = vmatprep.mubr.f32.mxu0 0.0
      %3021 = vmatmul.mubr.f32.gmra.mrb[0].mxu0 %v653
      %v3022 = vpop.f32.mrb[0].mxu0
      %v3023 = vadd.f32 0.0, %v3022
      %v3024 = vpop.f32.mrb[0].mxu0
      %3025 = vmatprep.mubr.f32.mxu0 0.0
      %3026 = vmatmul.mubr.f32.gmra.mrb[0].mxu0 %v654
      %v3027 = vpop.f32.mrb[0].mxu0
      %v3028 = vadd.f32 0.0, %v3027
      %v3029 = vpop.f32.mrb[0].mxu0
      %3030 = vmatprep.mubr.f32.mxu0 0.0
      %3031 = vmatmul.mubr.f32.gmra.mrb[0].mxu0 %v655
      %v3032 = vpop.f32.mrb[0].mxu0
      %v3033 = vadd.f32 0.0, %v3032
      %v3034 = vpop.f32.mrb[0].mxu0
      %3035 = vmatprep.mubr.f32.mxu0 0.0
      %3036 = vmatmul.mubr.f32.gmra.mrb[0].mxu0 %v656
      %v3037 = vpop.f32.mrb[0].mxu0
      %v3038 = vadd.f32 0.0, %v3037
      %v3039 = vpop.f32.mrb[0].mxu0
      %3040 = vmatprep.mubr.f32.mxu0 0.0
      %3041 = vmatmul.mubr.f32.gmra.mrb[0].mxu0 %v657
      %v3042 = vpop.f32.mrb[0].mxu0
      %v3043 = vadd.f32 0.0, %v3042
      %v3044 = vpop.f32.mrb[0].mxu0
      %3045 = vmatprep.mubr.f32.mxu0 0.0
      %3046 = vmatmul.mubr.f32.gmra.mrb[0].mxu0 %v658
      %v3047 = vpop.f32.mrb[0].mxu0
      %v3048 = vadd.f32 0.0, %v3047
      %v3049 = vpop.f32.mrb[0].mxu0
      %3050 = vmatprep.mubr.f32.mxu0 0.0
      %3051 = vmatmul.mubr.f32.gmra.mrb[0].mxu0 %v659
      %v3052 = vpop.f32.mrb[0].mxu0
      %v3053 = vadd.f32 0.0, %v3052
      %v3054 = vpop.f32.mrb[0].mxu0
      %3055 = vmatprep.mubr.f32.mxu0 0.0
      %3056 = vmatmul.mubr.f32.gmra.mrb[0].mxu0 %v660
      %v3057 = vpop.f32.mrb[0].mxu0
      %v3058 = vadd.f32 0.0, %v3057
      %v3059 = vpop.f32.mrb[0].mxu0
      %3060 = vmatprep.mubr.f32.mxu0 0.0
      %3061 = vmatmul.mubr.f32.gmra.mrb[0].mxu0 %v661
      %v3062 = vpop.f32.mrb[0].mxu0
      %v3063 = vadd.f32 0.0, %v3062
      %v3064 = vpop.f32.mrb[0].mxu0
      %3065 = vmatprep.mubr.f32.mxu0 0.0
      %3066 = vmatmul.mubr.f32.gmra.mrb[0].mxu0 %v662
      %v3067 = vpop.f32.mrb[0].mxu0
      %v3068 = vadd.f32 0.0, %v3067
      %v3069 = vpop.f32.mrb[0].mxu0
      %3070 = vmatprep.mubr.f32.mxu0 0.0
      %3071 = vmatmul.mubr.f32.gmra.mrb[0].mxu0 %v663
      %v3072 = vpop.f32.mrb[0].mxu0
      %v3073 = vadd.f32 0.0, %v3072
      %v3074 = vpop.f32.mrb[0].mxu0
      %3075 = vmatprep.mubr.f32.mxu0 0.0
      %3076 = vmatmul.mubr.f32.gmra.mrb[0].mxu0 %v664
      %v3077 = vpop.f32.mrb[0].mxu0
      %v3078 = vadd.f32 0.0, %v3077
      %v3079 = vpop.f32.mrb[0].mxu0
      %3080 = vmatprep.mubr.f32.mxu0 0.0
      %3081 = vmatmul.mubr.f32.gmra.mrb[0].mxu0 %v665
      %v3082 = vpop.f32.mrb[0].mxu0
      %v3083 = vadd.f32 0.0, %v3082
      %v3084 = vpop.f32.mrb[0].mxu0
      %3085 = vmatprep.mubr.f32.mxu0 0.0
      %3086 = vmatmul.mubr.f32.gmra.mrb[0].mxu0 %v666
      %v3087 = vpop.f32.mrb[0].mxu0
      %v3088 = vadd.f32 0.0, %v3087
      %v3089 = vpop.f32.mrb[0].mxu0
      %3090 = vmatprep.mubr.f32.mxu0 0.0
      %3091 = vmatmul.mubr.f32.gmra.mrb[0].mxu0 %v667
      %v3092 = vpop.f32.mrb[0].mxu0
      %v3093 = vadd.f32 0.0, %v3092
      %v3094 = vpop.f32.mrb[0].mxu0
      %3095 = vmatprep.mubr.f32.mxu0 0.0
      %3096 = vmatmul.mubr.f32.gmra.mrb[0].mxu0 %v668
      %v3097 = vpop.f32.mrb[0].mxu0
      %v3098 = vadd.f32 0.0, %v3097
      %v3099 = vpop.f32.mrb[0].mxu0
      %3100 = vmatprep.mubr.f32.mxu0 0.0
      %3101 = vmatmul.mubr.f32.gmra.mrb[0].mxu0 %v669
      %v3102 = vpop.f32.mrb[0].mxu0
      %v3103 = vadd.f32 0.0, %v3102
      %v3104 = vpop.f32.mrb[0].mxu0
      %3105 = vmatprep.mubr.f32.mxu0 0.0
      %3106 = vmatmul.mubr.f32.gmra.mrb[0].mxu0 %v670
      %v3107 = vpop.f32.mrb[0].mxu0
      %v3108 = vadd.f32 0.0, %v3107
      %v3109 = vpop.f32.mrb[0].mxu0
      %3110 = vmatprep.mubr.f32.mxu0 0.0
      %3111 = vmatmul.mubr.f32.gmra.mrb[0].mxu0 %v671
      %v3112 = vpop.f32.mrb[0].mxu0
      %v3113 = vadd.f32 0.0, %v3112
      %v3114 = vpop.f32.mrb[0].mxu0
      %3115 = vmatprep.mubr.f32.mxu0 0.0
      %3116 = vmatmul.mubr.f32.gmra.mrb[0].mxu0 %v672
      %v3117 = vpop.f32.mrb[0].mxu0
      %v3118 = vadd.f32 0.0, %v3117
      %v3119 = vpop.f32.mrb[0].mxu0
      %3120 = vmatprep.mubr.f32.mxu0 0.0
      %3121 = vmatmul.mubr.f32.gmra.mrb[0].mxu0 %v673
      %v3122 = vpop.f32.mrb[0].mxu0
      %v3123 = vadd.f32 0.0, %v3122
      %v3124 = vpop.f32.mrb[0].mxu0
      %3125 = vmatprep.mubr.f32.mxu0 0.0
      %3126 = vmatmul.mubr.f32.gmra.mrb[0].mxu0 %v674
      %v3127 = vpop.f32.mrb[0].mxu0
      %v3128 = vadd.f32 0.0, %v3127
      %v3129 = vpop.f32.mrb[0].mxu0
      %3130 = vmatprep.mubr.f32.mxu0 0.0
      %3131 = vmatmul.mubr.f32.gmra.mrb[0].mxu0 %v675
      %v3132 = vpop.f32.mrb[0].mxu0
      %v3133 = vadd.f32 0.0, %v3132
      %v3134 = vpop.f32.mrb[0].mxu0
      %3135 = vmatprep.mubr.f32.mxu0 0.0
      %3136 = vmatmul.mubr.f32.gmra.mrb[0].mxu0 %v676
      %v3137 = vpop.f32.mrb[0].mxu0
      %v3138 = vadd.f32 0.0, %v3137
      %v3139 = vpop.f32.mrb[0].mxu0
      %3140 = vmatprep.mubr.f32.mxu0 0.0
      %3141 = vmatmul.mubr.f32.gmra.mrb[0].mxu0 %v677
      %v3142 = vpop.f32.mrb[0].mxu0
      %v3143 = vadd.f32 0.0, %v3142
      %v3144 = vpop.f32.mrb[0].mxu0
      %3145 = vmatprep.mubr.f32.mxu0 0.0
      %3146 = vmatmul.mubr.f32.gmra.mrb[0].mxu0 %v678
      %v3147 = vpop.f32.mrb[0].mxu0
      %v3148 = vadd.f32 0.0, %v3147
      %v3149 = vpop.f32.mrb[0].mxu0
      %3150 = vmatprep.mubr.f32.mxu0 0.0
      %3151 = vmatmul.mubr.f32.gmra.mrb[0].mxu0 %v679
      %v3152 = vpop.f32.mrb[0].mxu0
      %v3153 = vadd.f32 0.0, %v3152
      %v3154 = vpop.f32.mrb[0].mxu0
      %3155 = vmatprep.mubr.f32.mxu0 0.0
      %3156 = vmatmul.mubr.f32.gmra.mrb[0].mxu0 %v680
      %v3157 = vpop.f32.mrb[0].mxu0
      %v3158 = vadd.f32 0.0, %v3157
      %v3159 = vpop.f32.mrb[0].mxu0
      %3160 = vmatprep.mubr.f32.mxu0 0.0
      %3161 = vmatmul.mubr.f32.gmra.mrb[0].mxu0 %v681
      %v3162 = vpop.f32.mrb[0].mxu0
      %v3163 = vadd.f32 0.0, %v3162
      %v3164 = vpop.f32.mrb[0].mxu0
      %3165 = vmatprep.mubr.f32.mxu0 0.0
      %3166 = vmatmul.mubr.f32.gmra.mrb[0].mxu0 %v682
      %v3167 = vpop.f32.mrb[0].mxu0
      %v3168 = vadd.f32 0.0, %v3167
      %v3169 = vpop.f32.mrb[0].mxu0
      %3170 = vmatprep.mubr.f32.mxu0 0.0
      %3171 = vmatmul.mubr.f32.gmra.mrb[0].mxu0 %v683
      %v3172 = vpop.f32.mrb[0].mxu0
      %v3173 = vadd.f32 0.0, %v3172
      %v3174 = vpop.f32.mrb[0].mxu0
      %3175 = vmatprep.mubr.f32.mxu0 0.0
      %3176 = vmatmul.mubr.f32.gmra.mrb[0].mxu0 %v684
      %v3177 = vpop.f32.mrb[0].mxu0
      %v3178 = vadd.f32 0.0, %v3177
      %v3179 = vpop.f32.mrb[0].mxu0
      %3180 = vdwg.mxu0
      %3181 = vmatprep.subr.mxu0 0.0
      %3182 = vmatpush1.msra.mxu0 %v2923
      %3183 = vmatprep.subr.mxu0 0.0
      %3184 = vmatpush1.msra.mxu0 %v2924
      %3185 = vmatprep.subr.mxu0 0.0
      %3186 = vmatpush1.msra.mxu0 %v2925
      %3187 = vmatprep.subr.mxu0 0.0
      %3188 = vmatpush1.msra.mxu0 %v2926
      %3189 = vmatprep.subr.mxu0 0.0
      %3190 = vmatpush1.msra.mxu0 %v2927
      %3191 = vmatprep.subr.mxu0 0.0
      %3192 = vmatpush1.msra.mxu0 %v2928
      %3193 = vmatprep.subr.mxu0 0.0
      %3194 = vmatpush1.msra.mxu0 %v2929
      %3195 = vmatprep.subr.mxu0 0.0
      %3196 = vmatpush1.msra.mxu0 %v2930
      %3197 = vmatprep.subr.mxu0 0.0
      %3198 = vmatpush1.msra.mxu0 %v2931
      %3199 = vmatprep.subr.mxu0 0.0
      %3200 = vmatpush1.msra.mxu0 %v2932
      %3201 = vmatprep.subr.mxu0 0.0
      %3202 = vmatpush1.msra.mxu0 %v2933
      %3203 = vmatprep.subr.mxu0 0.0
      %3204 = vmatpush1.msra.mxu0 %v2934
      %3205 = vmatprep.subr.mxu0 0.0
      %3206 = vmatpush1.msra.mxu0 %v2935
      %3207 = vmatprep.subr.mxu0 0.0
      %3208 = vmatpush1.msra.mxu0 %v2936
      %3209 = vmatprep.subr.mxu0 0.0
      %3210 = vmatpush1.msra.mxu0 %v2937
      %3211 = vmatprep.subr.mxu0 0.0
      %3212 = vmatpush1.msra.mxu0 %v2938
      %3213 = vmatprep.subr.mxu0 0.0
      %3214 = vmatpush1.msra.mxu0 0.0
      %3215 = vmatprep.subr.mxu0 0.0
      %3216 = vmatpush1.msra.mxu0 0.0
      %3217 = vmatprep.subr.mxu0 0.0
      %3218 = vmatpush1.msra.mxu0 0.0
      %3219 = vmatprep.subr.mxu0 0.0
      %3220 = vmatpush1.msra.mxu0 0.0
      %3221 = vmatprep.subr.mxu0 0.0
      %3222 = vmatpush1.msra.mxu0 0.0
      %3223 = vmatprep.subr.mxu0 0.0
      %3224 = vmatpush1.msra.mxu0 0.0
      %3225 = vmatprep.subr.mxu0 0.0
      %3226 = vmatpush1.msra.mxu0 0.0
      %3227 = vmatprep.subr.mxu0 0.0
      %3228 = vmatpush1.msra.mxu0 0.0
      %3229 = vmatprep.subr.mxu0 0.0
      %3230 = vmatpush1.msra.mxu0 0.0
      %3231 = vmatprep.subr.mxu0 0.0
      %3232 = vmatpush1.msra.mxu0 0.0
      %3233 = vmatprep.subr.mxu0 0.0
      %3234 = vmatpush1.msra.mxu0 0.0
      %3235 = vmatprep.subr.mxu0 0.0
      %3236 = vmatpush1.msra.mxu0 0.0
      %3237 = vmatprep.subr.mxu0 0.0
      %3238 = vmatpush1.msra.mxu0 0.0
      %3239 = vmatprep.subr.mxu0 0.0
      %3240 = vmatpush1.msra.mxu0 0.0
      %3241 = vmatprep.subr.mxu0 0.0
      %3242 = vmatpush1.msra.mxu0 0.0
      %3243 = vmatprep.subr.mxu0 0.0
      %3244 = vmatpush1.msra.mxu0 0.0
      %3245 = vmatprep.mubr.f32.mxu0 0.0
      %3246 = vmatmul.mubr.f32.gmra.mrb[0].mxu0 %v617
      %v3247 = vpop.f32.mrb[0].mxu0
      %v3248 = vadd.f32 %v3023, %v3247
      %v3249 = vpop.f32.mrb[0].mxu0
      %3250 = vmatprep.mubr.f32.mxu0 0.0
      %3251 = vmatmul.mubr.f32.gmra.mrb[0].mxu0 %v618
      %v3252 = vpop.f32.mrb[0].mxu0
      %v3253 = vadd.f32 %v3028, %v3252
      %v3254 = vpop.f32.mrb[0].mxu0
      %3255 = vmatprep.mubr.f32.mxu0 0.0
      %3256 = vmatmul.mubr.f32.gmra.mrb[0].mxu0 %v619
      %v3257 = vpop.f32.mrb[0].mxu0
      %v3258 = vadd.f32 %v3033, %v3257
      %v3259 = vpop.f32.mrb[0].mxu0
      %3260 = vmatprep.mubr.f32.mxu0 0.0
      %3261 = vmatmul.mubr.f32.gmra.mrb[0].mxu0 %v620
      %v3262 = vpop.f32.mrb[0].mxu0
      %v3263 = vadd.f32 %v3038, %v3262
      %v3264 = vpop.f32.mrb[0].mxu0
      %3265 = vmatprep.mubr.f32.mxu0 0.0
      %3266 = vmatmul.mubr.f32.gmra.mrb[0].mxu0 %v621
      %v3267 = vpop.f32.mrb[0].mxu0
      %v3268 = vadd.f32 %v3043, %v3267
      %v3269 = vpop.f32.mrb[0].mxu0
      %3270 = vmatprep.mubr.f32.mxu0 0.0
      %3271 = vmatmul.mubr.f32.gmra.mrb[0].mxu0 %v622
      %v3272 = vpop.f32.mrb[0].mxu0
      %v3273 = vadd.f32 %v3048, %v3272
      %v3274 = vpop.f32.mrb[0].mxu0
      %3275 = vmatprep.mubr.f32.mxu0 0.0
      %3276 = vmatmul.mubr.f32.gmra.mrb[0].mxu0 %v623
      %v3277 = vpop.f32.mrb[0].mxu0
      %v3278 = vadd.f32 %v3053, %v3277
      %v3279 = vpop.f32.mrb[0].mxu0
      %3280 = vmatprep.mubr.f32.mxu0 0.0
      %3281 = vmatmul.mubr.f32.gmra.mrb[0].mxu0 %v624
      %v3282 = vpop.f32.mrb[0].mxu0
      %v3283 = vadd.f32 %v3058, %v3282
      %v3284 = vpop.f32.mrb[0].mxu0
      %3285 = vmatprep.mubr.f32.mxu0 0.0
      %3286 = vmatmul.mubr.f32.gmra.mrb[0].mxu0 %v625
      %v3287 = vpop.f32.mrb[0].mxu0
      %v3288 = vadd.f32 %v3063, %v3287
      %v3289 = vpop.f32.mrb[0].mxu0
      %3290 = vmatprep.mubr.f32.mxu0 0.0
      %3291 = vmatmul.mubr.f32.gmra.mrb[0].mxu0 %v626
      %v3292 = vpop.f32.mrb[0].mxu0
      %v3293 = vadd.f32 %v3068, %v3292
      %v3294 = vpop.f32.mrb[0].mxu0
      %3295 = vmatprep.mubr.f32.mxu0 0.0
      %3296 = vmatmul.mubr.f32.gmra.mrb[0].mxu0 %v627
      %v3297 = vpop.f32.mrb[0].mxu0
      %v3298 = vadd.f32 %v3073, %v3297
      %v3299 = vpop.f32.mrb[0].mxu0
      %3300 = vmatprep.mubr.f32.mxu0 0.0
      %3301 = vmatmul.mubr.f32.gmra.mrb[0].mxu0 %v628
      %v3302 = vpop.f32.mrb[0].mxu0
      %v3303 = vadd.f32 %v3078, %v3302
      %v3304 = vpop.f32.mrb[0].mxu0
      %3305 = vmatprep.mubr.f32.mxu0 0.0
      %3306 = vmatmul.mubr.f32.gmra.mrb[0].mxu0 %v629
      %v3307 = vpop.f32.mrb[0].mxu0
      %v3308 = vadd.f32 %v3083, %v3307
      %v3309 = vpop.f32.mrb[0].mxu0
      %3310 = vmatprep.mubr.f32.mxu0 0.0
      %3311 = vmatmul.mubr.f32.gmra.mrb[0].mxu0 %v630
      %v3312 = vpop.f32.mrb[0].mxu0
      %v3313 = vadd.f32 %v3088, %v3312
      %v3314 = vpop.f32.mrb[0].mxu0
      %3315 = vmatprep.mubr.f32.mxu0 0.0
      %3316 = vmatmul.mubr.f32.gmra.mrb[0].mxu0 %v631
      %v3317 = vpop.f32.mrb[0].mxu0
      %v3318 = vadd.f32 %v3093, %v3317
      %v3319 = vpop.f32.mrb[0].mxu0
      %3320 = vmatprep.mubr.f32.mxu0 0.0
      %3321 = vmatmul.mubr.f32.gmra.mrb[0].mxu0 %v632
      %v3322 = vpop.f32.mrb[0].mxu0
      %v3323 = vadd.f32 %v3098, %v3322
      %v3324 = vpop.f32.mrb[0].mxu0
      %3325 = vmatprep.mubr.f32.mxu0 0.0
      %3326 = vmatmul.mubr.f32.gmra.mrb[0].mxu0 %v633
      %v3327 = vpop.f32.mrb[0].mxu0
      %v3328 = vadd.f32 %v3103, %v3327
      %v3329 = vpop.f32.mrb[0].mxu0
      %3330 = vmatprep.mubr.f32.mxu0 0.0
      %3331 = vmatmul.mubr.f32.gmra.mrb[0].mxu0 %v634
      %v3332 = vpop.f32.mrb[0].mxu0
      %v3333 = vadd.f32 %v3108, %v3332
      %v3334 = vpop.f32.mrb[0].mxu0
      %3335 = vmatprep.mubr.f32.mxu0 0.0
      %3336 = vmatmul.mubr.f32.gmra.mrb[0].mxu0 %v635
      %v3337 = vpop.f32.mrb[0].mxu0
      %v3338 = vadd.f32 %v3113, %v3337
      %v3339 = vpop.f32.mrb[0].mxu0
      %3340 = vmatprep.mubr.f32.mxu0 0.0
      %3341 = vmatmul.mubr.f32.gmra.mrb[0].mxu0 %v636
      %v3342 = vpop.f32.mrb[0].mxu0
      %v3343 = vadd.f32 %v3118, %v3342
      %v3344 = vpop.f32.mrb[0].mxu0
      %3345 = vmatprep.mubr.f32.mxu0 0.0
      %3346 = vmatmul.mubr.f32.gmra.mrb[0].mxu0 %v637
      %v3347 = vpop.f32.mrb[0].mxu0
      %v3348 = vadd.f32 %v3123, %v3347
      %v3349 = vpop.f32.mrb[0].mxu0
      %3350 = vmatprep.mubr.f32.mxu0 0.0
      %3351 = vmatmul.mubr.f32.gmra.mrb[0].mxu0 %v638
      %v3352 = vpop.f32.mrb[0].mxu0
      %v3353 = vadd.f32 %v3128, %v3352
      %v3354 = vpop.f32.mrb[0].mxu0
      %3355 = vmatprep.mubr.f32.mxu0 0.0
      %3356 = vmatmul.mubr.f32.gmra.mrb[0].mxu0 %v639
      %v3357 = vpop.f32.mrb[0].mxu0
      %v3358 = vadd.f32 %v3133, %v3357
      %v3359 = vpop.f32.mrb[0].mxu0
      %3360 = vmatprep.mubr.f32.mxu0 0.0
      %3361 = vmatmul.mubr.f32.gmra.mrb[0].mxu0 %v640
      %v3362 = vpop.f32.mrb[0].mxu0
      %v3363 = vadd.f32 %v3138, %v3362
      %v3364 = vpop.f32.mrb[0].mxu0
      %3365 = vmatprep.mubr.f32.mxu0 0.0
      %3366 = vmatmul.mubr.f32.gmra.mrb[0].mxu0 %v641
      %v3367 = vpop.f32.mrb[0].mxu0
      %v3368 = vadd.f32 %v3143, %v3367
      %v3369 = vpop.f32.mrb[0].mxu0
      %3370 = vmatprep.mubr.f32.mxu0 0.0
      %3371 = vmatmul.mubr.f32.gmra.mrb[0].mxu0 %v642
      %v3372 = vpop.f32.mrb[0].mxu0
      %v3373 = vadd.f32 %v3148, %v3372
      %v3374 = vpop.f32.mrb[0].mxu0
      %3375 = vmatprep.mubr.f32.mxu0 0.0
      %3376 = vmatmul.mubr.f32.gmra.mrb[0].mxu0 %v643
      %v3377 = vpop.f32.mrb[0].mxu0
      %v3378 = vadd.f32 %v3153, %v3377
      %v3379 = vpop.f32.mrb[0].mxu0
      %3380 = vmatprep.mubr.f32.mxu0 0.0
      %3381 = vmatmul.mubr.f32.gmra.mrb[0].mxu0 %v644
      %v3382 = vpop.f32.mrb[0].mxu0
      %v3383 = vadd.f32 %v3158, %v3382
      %v3384 = vpop.f32.mrb[0].mxu0
      %3385 = vmatprep.mubr.f32.mxu0 0.0
      %3386 = vmatmul.mubr.f32.gmra.mrb[0].mxu0 %v645
      %v3387 = vpop.f32.mrb[0].mxu0
      %v3388 = vadd.f32 %v3163, %v3387
      %v3389 = vpop.f32.mrb[0].mxu0
      %3390 = vmatprep.mubr.f32.mxu0 0.0
      %3391 = vmatmul.mubr.f32.gmra.mrb[0].mxu0 %v646
      %v3392 = vpop.f32.mrb[0].mxu0
      %v3393 = vadd.f32 %v3168, %v3392
      %v3394 = vpop.f32.mrb[0].mxu0
      %3395 = vmatprep.mubr.f32.mxu0 0.0
      %3396 = vmatmul.mubr.f32.gmra.mrb[0].mxu0 %v647
      %v3397 = vpop.f32.mrb[0].mxu0
      %v3398 = vadd.f32 %v3173, %v3397
      %v3399 = vpop.f32.mrb[0].mxu0
      %3400 = vmatprep.mubr.f32.mxu0 0.0
      %3401 = vmatmul.mubr.f32.gmra.mrb[0].mxu0 %v648
      %v3402 = vpop.f32.mrb[0].mxu0
      %v3403 = vadd.f32 %v3178, %v3402
      %v3404 = vpop.f32.mrb[0].mxu0
      %3405 = vdwg.mxu0
      %s3406 = scalar_lea.vmem %s175, 1280
      %v3407 = vld [vmem:[%s3406] sm:$0xff]
      %v3408 = vld [vmem:[%s3406 + $0x8] sm:$0xff]
      %v3409 = vld [vmem:[%s3406 + $0x10] sm:$0xff]
      %v3410 = vld [vmem:[%s3406 + $0x18] sm:$0xff]
      %v3411 = vld [vmem:[%s3406 + $0x20] sm:$0xff]
      %v3412 = vld [vmem:[%s3406 + $0x28] sm:$0xff]
      %v3413 = vld [vmem:[%s3406 + $0x30] sm:$0xff]
      %v3414 = vld [vmem:[%s3406 + $0x38] sm:$0xff]
      %v3415 = vld [vmem:[%s3406 + $0x40] sm:$0xff]
      %v3416 = vld [vmem:[%s3406 + $0x48] sm:$0xff]
      %v3417 = vld [vmem:[%s3406 + $0x50] sm:$0xff]
      %v3418 = vld [vmem:[%s3406 + $0x58] sm:$0xff]
      %v3419 = vld [vmem:[%s3406 + $0x60] sm:$0xff]
      %v3420 = vld [vmem:[%s3406 + $0x68] sm:$0xff]
      %v3421 = vld [vmem:[%s3406 + $0x70] sm:$0xff]
      %v3422 = vld [vmem:[%s3406 + $0x78] sm:$0xff]
      %3423 = vmatprep.subr.mxu0 0.0
      %3424 = vmatpush1.msra.mxu0 %v3407
      %3425 = vmatprep.subr.mxu0 0.0
      %3426 = vmatpush1.msra.mxu0 %v3408
      %3427 = vmatprep.subr.mxu0 0.0
      %3428 = vmatpush1.msra.mxu0 %v3409
      %3429 = vmatprep.subr.mxu0 0.0
      %3430 = vmatpush1.msra.mxu0 %v3410
      %3431 = vmatprep.subr.mxu0 0.0
      %3432 = vmatpush1.msra.mxu0 %v3411
      %3433 = vmatprep.subr.mxu0 0.0
      %3434 = vmatpush1.msra.mxu0 %v3412
      %3435 = vmatprep.subr.mxu0 0.0
      %3436 = vmatpush1.msra.mxu0 %v3413
      %3437 = vmatprep.subr.mxu0 0.0
      %3438 = vmatpush1.msra.mxu0 %v3414
      %3439 = vmatprep.subr.mxu0 0.0
      %3440 = vmatpush1.msra.mxu0 %v3415
      %3441 = vmatprep.subr.mxu0 0.0
      %3442 = vmatpush1.msra.mxu0 %v3416
      %3443 = vmatprep.subr.mxu0 0.0
      %3444 = vmatpush1.msra.mxu0 %v3417
      %3445 = vmatprep.subr.mxu0 0.0
      %3446 = vmatpush1.msra.mxu0 %v3418
      %3447 = vmatprep.subr.mxu0 0.0
      %3448 = vmatpush1.msra.mxu0 %v3419
      %3449 = vmatprep.subr.mxu0 0.0
      %3450 = vmatpush1.msra.mxu0 %v3420
      %3451 = vmatprep.subr.mxu0 0.0
      %3452 = vmatpush1.msra.mxu0 %v3421
      %3453 = vmatprep.subr.mxu0 0.0
      %3454 = vmatpush1.msra.mxu0 %v3422
      %3455 = vmatprep.subr.mxu0 0.0
      %3456 = vmatpush1.msra.mxu0 0.0
      %3457 = vmatprep.subr.mxu0 0.0
      %3458 = vmatpush1.msra.mxu0 0.0
      %3459 = vmatprep.subr.mxu0 0.0
      %3460 = vmatpush1.msra.mxu0 0.0
      %3461 = vmatprep.subr.mxu0 0.0
      %3462 = vmatpush1.msra.mxu0 0.0
      %3463 = vmatprep.subr.mxu0 0.0
      %3464 = vmatpush1.msra.mxu0 0.0
      %3465 = vmatprep.subr.mxu0 0.0
      %3466 = vmatpush1.msra.mxu0 0.0
      %3467 = vmatprep.subr.mxu0 0.0
      %3468 = vmatpush1.msra.mxu0 0.0
      %3469 = vmatprep.subr.mxu0 0.0
      %3470 = vmatpush1.msra.mxu0 0.0
      %3471 = vmatprep.subr.mxu0 0.0
      %3472 = vmatpush1.msra.mxu0 0.0
      %3473 = vmatprep.subr.mxu0 0.0
      %3474 = vmatpush1.msra.mxu0 0.0
      %3475 = vmatprep.subr.mxu0 0.0
      %3476 = vmatpush1.msra.mxu0 0.0
      %3477 = vmatprep.subr.mxu0 0.0
      %3478 = vmatpush1.msra.mxu0 0.0
      %3479 = vmatprep.subr.mxu0 0.0
      %3480 = vmatpush1.msra.mxu0 0.0
      %3481 = vmatprep.subr.mxu0 0.0
      %3482 = vmatpush1.msra.mxu0 0.0
      %3483 = vmatprep.subr.mxu0 0.0
      %3484 = vmatpush1.msra.mxu0 0.0
      %3485 = vmatprep.subr.mxu0 0.0
      %3486 = vmatpush1.msra.mxu0 0.0
      %3487 = vmatprep.mubr.f32.mxu0 0.0
      %3488 = vmatmul.mubr.f32.gmra.mrb[0].mxu0 %v619
      %v3489 = vpop.f32.mrb[0].mxu0
      %v3490 = vadd.f32 0.0, %v3489
      %v3491 = vpop.f32.mrb[0].mxu0
      %3492 = vmatprep.mubr.f32.mxu0 0.0
      %3493 = vmatmul.mubr.f32.gmra.mrb[0].mxu0 %v620
      %v3494 = vpop.f32.mrb[0].mxu0
      %v3495 = vadd.f32 0.0, %v3494
      %v3496 = vpop.f32.mrb[0].mxu0
      %3497 = vmatprep.mubr.f32.mxu0 0.0
      %3498 = vmatmul.mubr.f32.gmra.mrb[0].mxu0 %v621
      %v3499 = vpop.f32.mrb[0].mxu0
      %v3500 = vadd.f32 0.0, %v3499
      %v3501 = vpop.f32.mrb[0].mxu0
      %3502 = vmatprep.mubr.f32.mxu0 0.0
      %3503 = vmatmul.mubr.f32.gmra.mrb[0].mxu0 %v622
      %v3504 = vpop.f32.mrb[0].mxu0
      %v3505 = vadd.f32 0.0, %v3504
      %v3506 = vpop.f32.mrb[0].mxu0
      %3507 = vmatprep.mubr.f32.mxu0 0.0
      %3508 = vmatmul.mubr.f32.gmra.mrb[0].mxu0 %v623
      %v3509 = vpop.f32.mrb[0].mxu0
      %v3510 = vadd.f32 0.0, %v3509
      %v3511 = vpop.f32.mrb[0].mxu0
      %3512 = vmatprep.mubr.f32.mxu0 0.0
      %3513 = vmatmul.mubr.f32.gmra.mrb[0].mxu0 %v624
      %v3514 = vpop.f32.mrb[0].mxu0
      %v3515 = vadd.f32 0.0, %v3514
      %v3516 = vpop.f32.mrb[0].mxu0
      %3517 = vmatprep.mubr.f32.mxu0 0.0
      %3518 = vmatmul.mubr.f32.gmra.mrb[0].mxu0 %v625
      %v3519 = vpop.f32.mrb[0].mxu0
      %v3520 = vadd.f32 0.0, %v3519
      %v3521 = vpop.f32.mrb[0].mxu0
      %3522 = vmatprep.mubr.f32.mxu0 0.0
      %3523 = vmatmul.mubr.f32.gmra.mrb[0].mxu0 %v626
      %v3524 = vpop.f32.mrb[0].mxu0
      %v3525 = vadd.f32 0.0, %v3524
      %v3526 = vpop.f32.mrb[0].mxu0
      %3527 = vmatprep.mubr.f32.mxu0 0.0
      %3528 = vmatmul.mubr.f32.gmra.mrb[0].mxu0 %v627
      %v3529 = vpop.f32.mrb[0].mxu0
      %v3530 = vadd.f32 0.0, %v3529
      %v3531 = vpop.f32.mrb[0].mxu0
      %3532 = vmatprep.mubr.f32.mxu0 0.0
      %3533 = vmatmul.mubr.f32.gmra.mrb[0].mxu0 %v628
      %v3534 = vpop.f32.mrb[0].mxu0
      %v3535 = vadd.f32 0.0, %v3534
      %v3536 = vpop.f32.mrb[0].mxu0
      %3537 = vmatprep.mubr.f32.mxu0 0.0
      %3538 = vmatmul.mubr.f32.gmra.mrb[0].mxu0 %v629
      %v3539 = vpop.f32.mrb[0].mxu0
      %v3540 = vadd.f32 0.0, %v3539
      %v3541 = vpop.f32.mrb[0].mxu0
      %3542 = vmatprep.mubr.f32.mxu0 0.0
      %3543 = vmatmul.mubr.f32.gmra.mrb[0].mxu0 %v630
      %v3544 = vpop.f32.mrb[0].mxu0
      %v3545 = vadd.f32 0.0, %v3544
      %v3546 = vpop.f32.mrb[0].mxu0
      %3547 = vmatprep.mubr.f32.mxu0 0.0
      %3548 = vmatmul.mubr.f32.gmra.mrb[0].mxu0 %v631
      %v3549 = vpop.f32.mrb[0].mxu0
      %v3550 = vadd.f32 0.0, %v3549
      %v3551 = vpop.f32.mrb[0].mxu0
      %3552 = vmatprep.mubr.f32.mxu0 0.0
      %3553 = vmatmul.mubr.f32.gmra.mrb[0].mxu0 %v632
      %v3554 = vpop.f32.mrb[0].mxu0
      %v3555 = vadd.f32 0.0, %v3554
      %v3556 = vpop.f32.mrb[0].mxu0
      %3557 = vmatprep.mubr.f32.mxu0 0.0
      %3558 = vmatmul.mubr.f32.gmra.mrb[0].mxu0 %v633
      %v3559 = vpop.f32.mrb[0].mxu0
      %v3560 = vadd.f32 0.0, %v3559
      %v3561 = vpop.f32.mrb[0].mxu0
      %3562 = vmatprep.mubr.f32.mxu0 0.0
      %3563 = vmatmul.mubr.f32.gmra.mrb[0].mxu0 %v634
      %v3564 = vpop.f32.mrb[0].mxu0
      %v3565 = vadd.f32 0.0, %v3564
      %v3566 = vpop.f32.mrb[0].mxu0
      %3567 = vmatprep.mubr.f32.mxu0 0.0
      %3568 = vmatmul.mubr.f32.gmra.mrb[0].mxu0 %v635
      %v3569 = vpop.f32.mrb[0].mxu0
      %v3570 = vadd.f32 0.0, %v3569
      %v3571 = vpop.f32.mrb[0].mxu0
      %3572 = vmatprep.mubr.f32.mxu0 0.0
      %3573 = vmatmul.mubr.f32.gmra.mrb[0].mxu0 %v636
      %v3574 = vpop.f32.mrb[0].mxu0
      %v3575 = vadd.f32 0.0, %v3574
      %v3576 = vpop.f32.mrb[0].mxu0
      %3577 = vmatprep.mubr.f32.mxu0 0.0
      %3578 = vmatmul.mubr.f32.gmra.mrb[0].mxu0 %v637
      %v3579 = vpop.f32.mrb[0].mxu0
      %v3580 = vadd.f32 0.0, %v3579
      %v3581 = vpop.f32.mrb[0].mxu0
      %3582 = vmatprep.mubr.f32.mxu0 0.0
      %3583 = vmatmul.mubr.f32.gmra.mrb[0].mxu0 %v638
      %v3584 = vpop.f32.mrb[0].mxu0
      %v3585 = vadd.f32 0.0, %v3584
      %v3586 = vpop.f32.mrb[0].mxu0
      %3587 = vmatprep.mubr.f32.mxu0 0.0
      %3588 = vmatmul.mubr.f32.gmra.mrb[0].mxu0 %v639
      %v3589 = vpop.f32.mrb[0].mxu0
      %v3590 = vadd.f32 0.0, %v3589
      %v3591 = vpop.f32.mrb[0].mxu0
      %3592 = vmatprep.mubr.f32.mxu0 0.0
      %3593 = vmatmul.mubr.f32.gmra.mrb[0].mxu0 %v640
      %v3594 = vpop.f32.mrb[0].mxu0
      %v3595 = vadd.f32 0.0, %v3594
      %v3596 = vpop.f32.mrb[0].mxu0
      %3597 = vmatprep.mubr.f32.mxu0 0.0
      %3598 = vmatmul.mubr.f32.gmra.mrb[0].mxu0 %v641
      %v3599 = vpop.f32.mrb[0].mxu0
      %v3600 = vadd.f32 0.0, %v3599
      %v3601 = vpop.f32.mrb[0].mxu0
      %3602 = vmatprep.mubr.f32.mxu0 0.0
      %3603 = vmatmul.mubr.f32.gmra.mrb[0].mxu0 %v642
      %v3604 = vpop.f32.mrb[0].mxu0
      %v3605 = vadd.f32 0.0, %v3604
      %v3606 = vpop.f32.mrb[0].mxu0
      %3607 = vmatprep.mubr.f32.mxu0 0.0
      %3608 = vmatmul.mubr.f32.gmra.mrb[0].mxu0 %v643
      %v3609 = vpop.f32.mrb[0].mxu0
      %v3610 = vadd.f32 0.0, %v3609
      %v3611 = vpop.f32.mrb[0].mxu0
      %3612 = vmatprep.mubr.f32.mxu0 0.0
      %3613 = vmatmul.mubr.f32.gmra.mrb[0].mxu0 %v644
      %v3614 = vpop.f32.mrb[0].mxu0
      %v3615 = vadd.f32 0.0, %v3614
      %v3616 = vpop.f32.mrb[0].mxu0
      %3617 = vmatprep.mubr.f32.mxu0 0.0
      %3618 = vmatmul.mubr.f32.gmra.mrb[0].mxu0 %v645
      %v3619 = vpop.f32.mrb[0].mxu0
      %v3620 = vadd.f32 0.0, %v3619
      %v3621 = vpop.f32.mrb[0].mxu0
      %3622 = vmatprep.mubr.f32.mxu0 0.0
      %3623 = vmatmul.mubr.f32.gmra.mrb[0].mxu0 %v646
      %v3624 = vpop.f32.mrb[0].mxu0
      %v3625 = vadd.f32 0.0, %v3624
      %v3626 = vpop.f32.mrb[0].mxu0
      %3627 = vmatprep.mubr.f32.mxu0 0.0
      %3628 = vmatmul.mubr.f32.gmra.mrb[0].mxu0 %v647
      %v3629 = vpop.f32.mrb[0].mxu0
      %v3630 = vadd.f32 0.0, %v3629
      %v3631 = vpop.f32.mrb[0].mxu0
      %3632 = vmatprep.mubr.f32.mxu0 0.0
      %3633 = vmatmul.mubr.f32.gmra.mrb[0].mxu0 %v648
      %v3634 = vpop.f32.mrb[0].mxu0
      %v3635 = vadd.f32 0.0, %v3634
      %v3636 = vpop.f32.mrb[0].mxu0
      %3637 = vmatprep.mubr.f32.mxu0 0.0
      %3638 = vmatmul.mubr.f32.gmra.mrb[0].mxu0 %v649
      %v3639 = vpop.f32.mrb[0].mxu0
      %v3640 = vadd.f32 0.0, %v3639
      %v3641 = vpop.f32.mrb[0].mxu0
      %3642 = vmatprep.mubr.f32.mxu0 0.0
      %3643 = vmatmul.mubr.f32.gmra.mrb[0].mxu0 %v650
      %v3644 = vpop.f32.mrb[0].mxu0
      %v3645 = vadd.f32 0.0, %v3644
      %v3646 = vpop.f32.mrb[0].mxu0
      %3647 = vdwg.mxu0
      %v3648 = vadd.f32 %v3248, %v3490
      %v3649 = vadd.f32 %v3253, %v3495
      %v3650 = vadd.f32 %v3258, %v3500
      %v3651 = vadd.f32 %v3263, %v3505
      %v3652 = vadd.f32 %v3268, %v3510
      %v3653 = vadd.f32 %v3273, %v3515
      %v3654 = vadd.f32 %v3278, %v3520
      %v3655 = vadd.f32 %v3283, %v3525
      %v3656 = vadd.f32 %v3288, %v3530
      %v3657 = vadd.f32 %v3293, %v3535
      %v3658 = vadd.f32 %v3298, %v3540
      %v3659 = vadd.f32 %v3303, %v3545
      %v3660 = vadd.f32 %v3308, %v3550
      %v3661 = vadd.f32 %v3313, %v3555
      %v3662 = vadd.f32 %v3318, %v3560
      %v3663 = vadd.f32 %v3323, %v3565
      %v3664 = vadd.f32 %v3328, %v3570
      %v3665 = vadd.f32 %v3333, %v3575
      %v3666 = vadd.f32 %v3338, %v3580
      %v3667 = vadd.f32 %v3343, %v3585
      %v3668 = vadd.f32 %v3348, %v3590
      %v3669 = vadd.f32 %v3353, %v3595
      %v3670 = vadd.f32 %v3358, %v3600
      %v3671 = vadd.f32 %v3363, %v3605
      %v3672 = vadd.f32 %v3368, %v3610
      %v3673 = vadd.f32 %v3373, %v3615
      %v3674 = vadd.f32 %v3378, %v3620
      %v3675 = vadd.f32 %v3383, %v3625
      %v3676 = vadd.f32 %v3388, %v3630
      %v3677 = vadd.f32 %v3393, %v3635
      %v3678 = vadd.f32 %v3398, %v3640
      %v3679 = vadd.f32 %v3403, %v3645
      %s3680 = scalar_lea.vmem %s175, 1408
      %v3681 = vld [vmem:[%s3680] sm:$0xff]
      %v3682 = vld [vmem:[%s3680 + $0x8] sm:$0xff]
      %v3683 = vld [vmem:[%s3680 + $0x10] sm:$0xff]
      %v3684 = vld [vmem:[%s3680 + $0x18] sm:$0xff]
      %v3685 = vld [vmem:[%s3680 + $0x20] sm:$0xff]
      %v3686 = vld [vmem:[%s3680 + $0x28] sm:$0xff]
      %v3687 = vld [vmem:[%s3680 + $0x30] sm:$0xff]
      %v3688 = vld [vmem:[%s3680 + $0x38] sm:$0xff]
      %v3689 = vld [vmem:[%s3680 + $0x40] sm:$0xff]
      %v3690 = vld [vmem:[%s3680 + $0x48] sm:$0xff]
      %v3691 = vld [vmem:[%s3680 + $0x50] sm:$0xff]
      %v3692 = vld [vmem:[%s3680 + $0x58] sm:$0xff]
      %v3693 = vld [vmem:[%s3680 + $0x60] sm:$0xff]
      %v3694 = vld [vmem:[%s3680 + $0x68] sm:$0xff]
      %v3695 = vld [vmem:[%s3680 + $0x70] sm:$0xff]
      %v3696 = vld [vmem:[%s3680 + $0x78] sm:$0xff]
      %3697 = vmatprep.subr.mxu0 0.0
      %3698 = vmatpush1.msra.mxu0 %v3681
      %3699 = vmatprep.subr.mxu0 0.0
      %3700 = vmatpush1.msra.mxu0 %v3682
      %3701 = vmatprep.subr.mxu0 0.0
      %3702 = vmatpush1.msra.mxu0 %v3683
      %3703 = vmatprep.subr.mxu0 0.0
      %3704 = vmatpush1.msra.mxu0 %v3684
      %3705 = vmatprep.subr.mxu0 0.0
      %3706 = vmatpush1.msra.mxu0 %v3685
      %3707 = vmatprep.subr.mxu0 0.0
      %3708 = vmatpush1.msra.mxu0 %v3686
      %3709 = vmatprep.subr.mxu0 0.0
      %3710 = vmatpush1.msra.mxu0 %v3687
      %3711 = vmatprep.subr.mxu0 0.0
      %3712 = vmatpush1.msra.mxu0 %v3688
      %3713 = vmatprep.subr.mxu0 0.0
      %3714 = vmatpush1.msra.mxu0 %v3689
      %3715 = vmatprep.subr.mxu0 0.0
      %3716 = vmatpush1.msra.mxu0 %v3690
      %3717 = vmatprep.subr.mxu0 0.0
      %3718 = vmatpush1.msra.mxu0 %v3691
      %3719 = vmatprep.subr.mxu0 0.0
      %3720 = vmatpush1.msra.mxu0 %v3692
      %3721 = vmatprep.subr.mxu0 0.0
      %3722 = vmatpush1.msra.mxu0 %v3693
      %3723 = vmatprep.subr.mxu0 0.0
      %3724 = vmatpush1.msra.mxu0 %v3694
      %3725 = vmatprep.subr.mxu0 0.0
      %3726 = vmatpush1.msra.mxu0 %v3695
      %3727 = vmatprep.subr.mxu0 0.0
      %3728 = vmatpush1.msra.mxu0 %v3696
      %3729 = vmatprep.subr.mxu0 0.0
      %3730 = vmatpush1.msra.mxu0 0.0
      %3731 = vmatprep.subr.mxu0 0.0
      %3732 = vmatpush1.msra.mxu0 0.0
      %3733 = vmatprep.subr.mxu0 0.0
      %3734 = vmatpush1.msra.mxu0 0.0
      %3735 = vmatprep.subr.mxu0 0.0
      %3736 = vmatpush1.msra.mxu0 0.0
      %3737 = vmatprep.subr.mxu0 0.0
      %3738 = vmatpush1.msra.mxu0 0.0
      %3739 = vmatprep.subr.mxu0 0.0
      %3740 = vmatpush1.msra.mxu0 0.0
      %3741 = vmatprep.subr.mxu0 0.0
      %3742 = vmatpush1.msra.mxu0 0.0
      %3743 = vmatprep.subr.mxu0 0.0
      %3744 = vmatpush1.msra.mxu0 0.0
      %3745 = vmatprep.subr.mxu0 0.0
      %3746 = vmatpush1.msra.mxu0 0.0
      %3747 = vmatprep.subr.mxu0 0.0
      %3748 = vmatpush1.msra.mxu0 0.0
      %3749 = vmatprep.subr.mxu0 0.0
      %3750 = vmatpush1.msra.mxu0 0.0
      %3751 = vmatprep.subr.mxu0 0.0
      %3752 = vmatpush1.msra.mxu0 0.0
      %3753 = vmatprep.subr.mxu0 0.0
      %3754 = vmatpush1.msra.mxu0 0.0
      %3755 = vmatprep.subr.mxu0 0.0
      %3756 = vmatpush1.msra.mxu0 0.0
      %3757 = vmatprep.subr.mxu0 0.0
      %3758 = vmatpush1.msra.mxu0 0.0
      %3759 = vmatprep.subr.mxu0 0.0
      %3760 = vmatpush1.msra.mxu0 0.0
      %3761 = vmatprep.mubr.f32.mxu0 0.0
      %3762 = vmatmul.mubr.f32.gmra.mrb[0].mxu0 %v655
      %v3763 = vpop.f32.mrb[0].mxu0
      %v3764 = vadd.f32 0.0, %v3763
      %v3765 = vpop.f32.mrb[0].mxu0
      %3766 = vmatprep.mubr.f32.mxu0 0.0
      %3767 = vmatmul.mubr.f32.gmra.mrb[0].mxu0 %v656
      %v3768 = vpop.f32.mrb[0].mxu0
      %v3769 = vadd.f32 0.0, %v3768
      %v3770 = vpop.f32.mrb[0].mxu0
      %3771 = vmatprep.mubr.f32.mxu0 0.0
      %3772 = vmatmul.mubr.f32.gmra.mrb[0].mxu0 %v657
      %v3773 = vpop.f32.mrb[0].mxu0
      %v3774 = vadd.f32 0.0, %v3773
      %v3775 = vpop.f32.mrb[0].mxu0
      %3776 = vmatprep.mubr.f32.mxu0 0.0
      %3777 = vmatmul.mubr.f32.gmra.mrb[0].mxu0 %v658
      %v3778 = vpop.f32.mrb[0].mxu0
      %v3779 = vadd.f32 0.0, %v3778
      %v3780 = vpop.f32.mrb[0].mxu0
      %3781 = vmatprep.mubr.f32.mxu0 0.0
      %3782 = vmatmul.mubr.f32.gmra.mrb[0].mxu0 %v659
      %v3783 = vpop.f32.mrb[0].mxu0
      %v3784 = vadd.f32 0.0, %v3783
      %v3785 = vpop.f32.mrb[0].mxu0
      %3786 = vmatprep.mubr.f32.mxu0 0.0
      %3787 = vmatmul.mubr.f32.gmra.mrb[0].mxu0 %v660
      %v3788 = vpop.f32.mrb[0].mxu0
      %v3789 = vadd.f32 0.0, %v3788
      %v3790 = vpop.f32.mrb[0].mxu0
      %3791 = vmatprep.mubr.f32.mxu0 0.0
      %3792 = vmatmul.mubr.f32.gmra.mrb[0].mxu0 %v661
      %v3793 = vpop.f32.mrb[0].mxu0
      %v3794 = vadd.f32 0.0, %v3793
      %v3795 = vpop.f32.mrb[0].mxu0
      %3796 = vmatprep.mubr.f32.mxu0 0.0
      %3797 = vmatmul.mubr.f32.gmra.mrb[0].mxu0 %v662
      %v3798 = vpop.f32.mrb[0].mxu0
      %v3799 = vadd.f32 0.0, %v3798
      %v3800 = vpop.f32.mrb[0].mxu0
      %3801 = vmatprep.mubr.f32.mxu0 0.0
      %3802 = vmatmul.mubr.f32.gmra.mrb[0].mxu0 %v663
      %v3803 = vpop.f32.mrb[0].mxu0
      %v3804 = vadd.f32 0.0, %v3803
      %v3805 = vpop.f32.mrb[0].mxu0
      %3806 = vmatprep.mubr.f32.mxu0 0.0
      %3807 = vmatmul.mubr.f32.gmra.mrb[0].mxu0 %v664
      %v3808 = vpop.f32.mrb[0].mxu0
      %v3809 = vadd.f32 0.0, %v3808
      %v3810 = vpop.f32.mrb[0].mxu0
      %3811 = vmatprep.mubr.f32.mxu0 0.0
      %3812 = vmatmul.mubr.f32.gmra.mrb[0].mxu0 %v665
      %v3813 = vpop.f32.mrb[0].mxu0
      %v3814 = vadd.f32 0.0, %v3813
      %v3815 = vpop.f32.mrb[0].mxu0
      %3816 = vmatprep.mubr.f32.mxu0 0.0
      %3817 = vmatmul.mubr.f32.gmra.mrb[0].mxu0 %v666
      %v3818 = vpop.f32.mrb[0].mxu0
      %v3819 = vadd.f32 0.0, %v3818
      %v3820 = vpop.f32.mrb[0].mxu0
      %3821 = vmatprep.mubr.f32.mxu0 0.0
      %3822 = vmatmul.mubr.f32.gmra.mrb[0].mxu0 %v667
      %v3823 = vpop.f32.mrb[0].mxu0
      %v3824 = vadd.f32 0.0, %v3823
      %v3825 = vpop.f32.mrb[0].mxu0
      %3826 = vmatprep.mubr.f32.mxu0 0.0
      %3827 = vmatmul.mubr.f32.gmra.mrb[0].mxu0 %v668
      %v3828 = vpop.f32.mrb[0].mxu0
      %v3829 = vadd.f32 0.0, %v3828
      %v3830 = vpop.f32.mrb[0].mxu0
      %3831 = vmatprep.mubr.f32.mxu0 0.0
      %3832 = vmatmul.mubr.f32.gmra.mrb[0].mxu0 %v669
      %v3833 = vpop.f32.mrb[0].mxu0
      %v3834 = vadd.f32 0.0, %v3833
      %v3835 = vpop.f32.mrb[0].mxu0
      %3836 = vmatprep.mubr.f32.mxu0 0.0
      %3837 = vmatmul.mubr.f32.gmra.mrb[0].mxu0 %v670
      %v3838 = vpop.f32.mrb[0].mxu0
      %v3839 = vadd.f32 0.0, %v3838
      %v3840 = vpop.f32.mrb[0].mxu0
      %3841 = vmatprep.mubr.f32.mxu0 0.0
      %3842 = vmatmul.mubr.f32.gmra.mrb[0].mxu0 %v671
      %v3843 = vpop.f32.mrb[0].mxu0
      %v3844 = vadd.f32 0.0, %v3843
      %v3845 = vpop.f32.mrb[0].mxu0
      %3846 = vmatprep.mubr.f32.mxu0 0.0
      %3847 = vmatmul.mubr.f32.gmra.mrb[0].mxu0 %v672
      %v3848 = vpop.f32.mrb[0].mxu0
      %v3849 = vadd.f32 0.0, %v3848
      %v3850 = vpop.f32.mrb[0].mxu0
      %3851 = vmatprep.mubr.f32.mxu0 0.0
      %3852 = vmatmul.mubr.f32.gmra.mrb[0].mxu0 %v673
      %v3853 = vpop.f32.mrb[0].mxu0
      %v3854 = vadd.f32 0.0, %v3853
      %v3855 = vpop.f32.mrb[0].mxu0
      %3856 = vmatprep.mubr.f32.mxu0 0.0
      %3857 = vmatmul.mubr.f32.gmra.mrb[0].mxu0 %v674
      %v3858 = vpop.f32.mrb[0].mxu0
      %v3859 = vadd.f32 0.0, %v3858
      %v3860 = vpop.f32.mrb[0].mxu0
      %3861 = vmatprep.mubr.f32.mxu0 0.0
      %3862 = vmatmul.mubr.f32.gmra.mrb[0].mxu0 %v675
      %v3863 = vpop.f32.mrb[0].mxu0
      %v3864 = vadd.f32 0.0, %v3863
      %v3865 = vpop.f32.mrb[0].mxu0
      %3866 = vmatprep.mubr.f32.mxu0 0.0
      %3867 = vmatmul.mubr.f32.gmra.mrb[0].mxu0 %v676
      %v3868 = vpop.f32.mrb[0].mxu0
      %v3869 = vadd.f32 0.0, %v3868
      %v3870 = vpop.f32.mrb[0].mxu0
      %3871 = vmatprep.mubr.f32.mxu0 0.0
      %3872 = vmatmul.mubr.f32.gmra.mrb[0].mxu0 %v677
      %v3873 = vpop.f32.mrb[0].mxu0
      %v3874 = vadd.f32 0.0, %v3873
      %v3875 = vpop.f32.mrb[0].mxu0
      %3876 = vmatprep.mubr.f32.mxu0 0.0
      %3877 = vmatmul.mubr.f32.gmra.mrb[0].mxu0 %v678
      %v3878 = vpop.f32.mrb[0].mxu0
      %v3879 = vadd.f32 0.0, %v3878
      %v3880 = vpop.f32.mrb[0].mxu0
      %3881 = vmatprep.mubr.f32.mxu0 0.0
      %3882 = vmatmul.mubr.f32.gmra.mrb[0].mxu0 %v679
      %v3883 = vpop.f32.mrb[0].mxu0
      %v3884 = vadd.f32 0.0, %v3883
      %v3885 = vpop.f32.mrb[0].mxu0
      %3886 = vmatprep.mubr.f32.mxu0 0.0
      %3887 = vmatmul.mubr.f32.gmra.mrb[0].mxu0 %v680
      %v3888 = vpop.f32.mrb[0].mxu0
      %v3889 = vadd.f32 0.0, %v3888
      %v3890 = vpop.f32.mrb[0].mxu0
      %3891 = vmatprep.mubr.f32.mxu0 0.0
      %3892 = vmatmul.mubr.f32.gmra.mrb[0].mxu0 %v681
      %v3893 = vpop.f32.mrb[0].mxu0
      %v3894 = vadd.f32 0.0, %v3893
      %v3895 = vpop.f32.mrb[0].mxu0
      %3896 = vmatprep.mubr.f32.mxu0 0.0
      %3897 = vmatmul.mubr.f32.gmra.mrb[0].mxu0 %v682
      %v3898 = vpop.f32.mrb[0].mxu0
      %v3899 = vadd.f32 0.0, %v3898
      %v3900 = vpop.f32.mrb[0].mxu0
      %3901 = vmatprep.mubr.f32.mxu0 0.0
      %3902 = vmatmul.mubr.f32.gmra.mrb[0].mxu0 %v683
      %v3903 = vpop.f32.mrb[0].mxu0
      %v3904 = vadd.f32 0.0, %v3903
      %v3905 = vpop.f32.mrb[0].mxu0
      %3906 = vmatprep.mubr.f32.mxu0 0.0
      %3907 = vmatmul.mubr.f32.gmra.mrb[0].mxu0 %v684
      %v3908 = vpop.f32.mrb[0].mxu0
      %v3909 = vadd.f32 0.0, %v3908
      %v3910 = vpop.f32.mrb[0].mxu0
      %3911 = vmatprep.mubr.f32.mxu0 0.0
      %3912 = vmatmul.mubr.f32.gmra.mrb[0].mxu0 %v685
      %v3913 = vpop.f32.mrb[0].mxu0
      %v3914 = vadd.f32 0.0, %v3913
      %v3915 = vpop.f32.mrb[0].mxu0
      %3916 = vmatprep.mubr.f32.mxu0 0.0
      %3917 = vmatmul.mubr.f32.gmra.mrb[0].mxu0 %v686
      %v3918 = vpop.f32.mrb[0].mxu0
      %v3919 = vadd.f32 0.0, %v3918
      %v3920 = vpop.f32.mrb[0].mxu0
      %3921 = vdwg.mxu0
      %v3922 = vadd.f32 %v3648, %v3764
      %v3923 = vadd.f32 %v3649, %v3769
      %v3924 = vadd.f32 %v3650, %v3774
      %v3925 = vadd.f32 %v3651, %v3779
      %v3926 = vadd.f32 %v3652, %v3784
      %v3927 = vadd.f32 %v3653, %v3789
      %v3928 = vadd.f32 %v3654, %v3794
      %v3929 = vadd.f32 %v3655, %v3799
      %v3930 = vadd.f32 %v3656, %v3804
      %v3931 = vadd.f32 %v3657, %v3809
      %v3932 = vadd.f32 %v3658, %v3814
      %v3933 = vadd.f32 %v3659, %v3819
      %v3934 = vadd.f32 %v3660, %v3824
      %v3935 = vadd.f32 %v3661, %v3829
      %v3936 = vadd.f32 %v3662, %v3834
      %v3937 = vadd.f32 %v3663, %v3839
      %v3938 = vadd.f32 %v3664, %v3844
      %v3939 = vadd.f32 %v3665, %v3849
      %v3940 = vadd.f32 %v3666, %v3854
      %v3941 = vadd.f32 %v3667, %v3859
      %v3942 = vadd.f32 %v3668, %v3864
      %v3943 = vadd.f32 %v3669, %v3869
      %v3944 = vadd.f32 %v3670, %v3874
      %v3945 = vadd.f32 %v3671, %v3879
      %v3946 = vadd.f32 %v3672, %v3884
      %v3947 = vadd.f32 %v3673, %v3889
      %v3948 = vadd.f32 %v3674, %v3894
      %v3949 = vadd.f32 %v3675, %v3899
      %v3950 = vadd.f32 %v3676, %v3904
      %v3951 = vadd.f32 %v3677, %v3909
      %v3952 = vadd.f32 %v3678, %v3914
      %v3953 = vadd.f32 %v3679, %v3919
      %v3954 = vadd.f32 %v3922, %v1759
      %v3955 = vadd.f32 %v3923, %v1759
      %v3956 = vadd.f32 %v3924, %v1759
      %v3957 = vadd.f32 %v3925, %v1759
      %v3958 = vadd.f32 %v3926, %v1759
      %v3959 = vadd.f32 %v3927, %v1759
      %v3960 = vadd.f32 %v3928, %v1759
      %v3961 = vadd.f32 %v3929, %v1759
      %v3962 = vadd.f32 %v3930, %v1759
      %v3963 = vadd.f32 %v3931, %v1759
      %v3964 = vadd.f32 %v3932, %v1759
      %v3965 = vadd.f32 %v3933, %v1759
      %v3966 = vadd.f32 %v3934, %v1759
      %v3967 = vadd.f32 %v3935, %v1759
      %v3968 = vadd.f32 %v3936, %v1759
      %v3969 = vadd.f32 %v3937, %v1759
      %v3970 = vadd.f32 %v3938, %v1759
      %v3971 = vadd.f32 %v3939, %v1759
      %v3972 = vadd.f32 %v3940, %v1759
      %v3973 = vadd.f32 %v3941, %v1759
      %v3974 = vadd.f32 %v3942, %v1759
      %v3975 = vadd.f32 %v3943, %v1759
      %v3976 = vadd.f32 %v3944, %v1759
      %v3977 = vadd.f32 %v3945, %v1759
      %v3978 = vadd.f32 %v3946, %v1759
      %v3979 = vadd.f32 %v3947, %v1759
      %v3980 = vadd.f32 %v3948, %v1759
      %v3981 = vadd.f32 %v3949, %v1759
      %v3982 = vadd.f32 %v3950, %v1759
      %v3983 = vadd.f32 %v3951, %v1759
      %v3984 = vadd.f32 %v3952, %v1759
      %v3985 = vadd.f32 %v3953, %v1759
      %s3986 = scalar_lea.vmem %s188, 32
      %3987 = vst [vmem:[%s3986] sm:$0xff] %v3954
      %3988 = vst [vmem:[%s3986 + $0x8] sm:$0xff] %v3955
      %3989 = vst [vmem:[%s3986 + $0x40] sm:$0xff] %v3956
      %3990 = vst [vmem:[%s3986 + $0x48] sm:$0xff] %v3957
      %3991 = vst [vmem:[%s3986 + $0x80] sm:$0xff] %v3958
      %3992 = vst [vmem:[%s3986 + $0x88] sm:$0xff] %v3959
      %3993 = vst [vmem:[%s3986 + $0xc0] sm:$0xff] %v3960
      %3994 = vst [vmem:[%s3986 + $0xc8] sm:$0xff] %v3961
      %3995 = vst [vmem:[%s3986 + $0x100] sm:$0xff] %v3962
      %3996 = vst [vmem:[%s3986 + $0x108] sm:$0xff] %v3963
      %3997 = vst [vmem:[%s3986 + $0x140] sm:$0xff] %v3964
      %3998 = vst [vmem:[%s3986 + $0x148] sm:$0xff] %v3965
      %3999 = vst [vmem:[%s3986 + $0x180] sm:$0xff] %v3966
      %4000 = vst [vmem:[%s3986 + $0x188] sm:$0xff] %v3967
      %4001 = vst [vmem:[%s3986 + $0x1c0] sm:$0xff] %v3968
      %4002 = vst [vmem:[%s3986 + $0x1c8] sm:$0xff] %v3969
      %4003 = vst [vmem:[%s3986 + $0x200] sm:$0xff] %v3970
      %4004 = vst [vmem:[%s3986 + $0x208] sm:$0xff] %v3971
      %4005 = vst [vmem:[%s3986 + $0x240] sm:$0xff] %v3972
      %4006 = vst [vmem:[%s3986 + $0x248] sm:$0xff] %v3973
      %4007 = vst [vmem:[%s3986 + $0x280] sm:$0xff] %v3974
      %4008 = vst [vmem:[%s3986 + $0x288] sm:$0xff] %v3975
      %4009 = vst [vmem:[%s3986 + $0x2c0] sm:$0xff] %v3976
      %4010 = vst [vmem:[%s3986 + $0x2c8] sm:$0xff] %v3977
      %4011 = vst [vmem:[%s3986 + $0x300] sm:$0xff] %v3978
      %4012 = vst [vmem:[%s3986 + $0x308] sm:$0xff] %v3979
      %4013 = vst [vmem:[%s3986 + $0x340] sm:$0xff] %v3980
      %4014 = vst [vmem:[%s3986 + $0x348] sm:$0xff] %v3981
      %4015 = vst [vmem:[%s3986 + $0x380] sm:$0xff] %v3982
      %4016 = vst [vmem:[%s3986 + $0x388] sm:$0xff] %v3983
      %4017 = vst [vmem:[%s3986 + $0x3c0] sm:$0xff] %v3984
      %4018 = vst [vmem:[%s3986 + $0x3c8] sm:$0xff] %v3985
      %s4019 = scalar_lea.vmem %s175, 1536
      %v4020 = vld [vmem:[%s4019] sm:$0xff]
      %v4021 = vld [vmem:[%s4019 + $0x8] sm:$0xff]
      %v4022 = vld [vmem:[%s4019 + $0x10] sm:$0xff]
      %v4023 = vld [vmem:[%s4019 + $0x18] sm:$0xff]
      %v4024 = vld [vmem:[%s4019 + $0x20] sm:$0xff]
      %v4025 = vld [vmem:[%s4019 + $0x28] sm:$0xff]
      %v4026 = vld [vmem:[%s4019 + $0x30] sm:$0xff]
      %v4027 = vld [vmem:[%s4019 + $0x38] sm:$0xff]
      %v4028 = vld [vmem:[%s4019 + $0x40] sm:$0xff]
      %v4029 = vld [vmem:[%s4019 + $0x48] sm:$0xff]
      %v4030 = vld [vmem:[%s4019 + $0x50] sm:$0xff]
      %v4031 = vld [vmem:[%s4019 + $0x58] sm:$0xff]
      %v4032 = vld [vmem:[%s4019 + $0x60] sm:$0xff]
      %v4033 = vld [vmem:[%s4019 + $0x68] sm:$0xff]
      %v4034 = vld [vmem:[%s4019 + $0x70] sm:$0xff]
      %v4035 = vld [vmem:[%s4019 + $0x78] sm:$0xff]
      %s4036 = scalar_lea.vmem %s175, 1664
      %v4037 = vld [vmem:[%s4036] sm:$0xff]
      %v4038 = vld [vmem:[%s4036 + $0x8] sm:$0xff]
      %v4039 = vld [vmem:[%s4036 + $0x10] sm:$0xff]
      %v4040 = vld [vmem:[%s4036 + $0x18] sm:$0xff]
      %v4041 = vld [vmem:[%s4036 + $0x20] sm:$0xff]
      %v4042 = vld [vmem:[%s4036 + $0x28] sm:$0xff]
      %v4043 = vld [vmem:[%s4036 + $0x30] sm:$0xff]
      %v4044 = vld [vmem:[%s4036 + $0x38] sm:$0xff]
      %v4045 = vld [vmem:[%s4036 + $0x40] sm:$0xff]
      %v4046 = vld [vmem:[%s4036 + $0x48] sm:$0xff]
      %v4047 = vld [vmem:[%s4036 + $0x50] sm:$0xff]
      %v4048 = vld [vmem:[%s4036 + $0x58] sm:$0xff]
      %v4049 = vld [vmem:[%s4036 + $0x60] sm:$0xff]
      %v4050 = vld [vmem:[%s4036 + $0x68] sm:$0xff]
      %v4051 = vld [vmem:[%s4036 + $0x70] sm:$0xff]
      %v4052 = vld [vmem:[%s4036 + $0x78] sm:$0xff]
      %4053 = vmatprep.subr.mxu0 0.0
      %4054 = vmatpush1.msra.mxu0 %v4037
      %4055 = vmatprep.subr.mxu0 0.0
      %4056 = vmatpush1.msra.mxu0 %v4038
      %4057 = vmatprep.subr.mxu0 0.0
      %4058 = vmatpush1.msra.mxu0 %v4039
      %4059 = vmatprep.subr.mxu0 0.0
      %4060 = vmatpush1.msra.mxu0 %v4040
      %4061 = vmatprep.subr.mxu0 0.0
      %4062 = vmatpush1.msra.mxu0 %v4041
      %4063 = vmatprep.subr.mxu0 0.0
      %4064 = vmatpush1.msra.mxu0 %v4042
      %4065 = vmatprep.subr.mxu0 0.0
      %4066 = vmatpush1.msra.mxu0 %v4043
      %4067 = vmatprep.subr.mxu0 0.0
      %4068 = vmatpush1.msra.mxu0 %v4044
      %4069 = vmatprep.subr.mxu0 0.0
      %4070 = vmatpush1.msra.mxu0 %v4045
      %4071 = vmatprep.subr.mxu0 0.0
      %4072 = vmatpush1.msra.mxu0 %v4046
      %4073 = vmatprep.subr.mxu0 0.0
      %4074 = vmatpush1.msra.mxu0 %v4047
      %4075 = vmatprep.subr.mxu0 0.0
      %4076 = vmatpush1.msra.mxu0 %v4048
      %4077 = vmatprep.subr.mxu0 0.0
      %4078 = vmatpush1.msra.mxu0 %v4049
      %4079 = vmatprep.subr.mxu0 0.0
      %4080 = vmatpush1.msra.mxu0 %v4050
      %4081 = vmatprep.subr.mxu0 0.0
      %4082 = vmatpush1.msra.mxu0 %v4051
      %4083 = vmatprep.subr.mxu0 0.0
      %4084 = vmatpush1.msra.mxu0 %v4052
      %4085 = vmatprep.subr.mxu0 0.0
      %4086 = vmatpush1.msra.mxu0 0.0
      %4087 = vmatprep.subr.mxu0 0.0
      %4088 = vmatpush1.msra.mxu0 0.0
      %4089 = vmatprep.subr.mxu0 0.0
      %4090 = vmatpush1.msra.mxu0 0.0
      %4091 = vmatprep.subr.mxu0 0.0
      %4092 = vmatpush1.msra.mxu0 0.0
      %4093 = vmatprep.subr.mxu0 0.0
      %4094 = vmatpush1.msra.mxu0 0.0
      %4095 = vmatprep.subr.mxu0 0.0
      %4096 = vmatpush1.msra.mxu0 0.0
      %4097 = vmatprep.subr.mxu0 0.0
      %4098 = vmatpush1.msra.mxu0 0.0
      %4099 = vmatprep.subr.mxu0 0.0
      %4100 = vmatpush1.msra.mxu0 0.0
      %4101 = vmatprep.subr.mxu0 0.0
      %4102 = vmatpush1.msra.mxu0 0.0
      %4103 = vmatprep.subr.mxu0 0.0
      %4104 = vmatpush1.msra.mxu0 0.0
      %4105 = vmatprep.subr.mxu0 0.0
      %4106 = vmatpush1.msra.mxu0 0.0
      %4107 = vmatprep.subr.mxu0 0.0
      %4108 = vmatpush1.msra.mxu0 0.0
      %4109 = vmatprep.subr.mxu0 0.0
      %4110 = vmatpush1.msra.mxu0 0.0
      %4111 = vmatprep.subr.mxu0 0.0
      %4112 = vmatpush1.msra.mxu0 0.0
      %4113 = vmatprep.subr.mxu0 0.0
      %4114 = vmatpush1.msra.mxu0 0.0
      %4115 = vmatprep.subr.mxu0 0.0
      %4116 = vmatpush1.msra.mxu0 0.0
      %4117 = vmatprep.mubr.f32.mxu0 0.0
      %4118 = vmatmul.mubr.f32.gmra.mrb[0].mxu0 %v689
      %v4119 = vpop.f32.mrb[0].mxu0
      %v4120 = vadd.f32 0.0, %v4119
      %v4121 = vpop.f32.mrb[0].mxu0
      %4122 = vmatprep.mubr.f32.mxu0 0.0
      %4123 = vmatmul.mubr.f32.gmra.mrb[0].mxu0 %v690
      %v4124 = vpop.f32.mrb[0].mxu0
      %v4125 = vadd.f32 0.0, %v4124
      %v4126 = vpop.f32.mrb[0].mxu0
      %4127 = vmatprep.mubr.f32.mxu0 0.0
      %4128 = vmatmul.mubr.f32.gmra.mrb[0].mxu0 %v691
      %v4129 = vpop.f32.mrb[0].mxu0
      %v4130 = vadd.f32 0.0, %v4129
      %v4131 = vpop.f32.mrb[0].mxu0
      %4132 = vmatprep.mubr.f32.mxu0 0.0
      %4133 = vmatmul.mubr.f32.gmra.mrb[0].mxu0 %v692
      %v4134 = vpop.f32.mrb[0].mxu0
      %v4135 = vadd.f32 0.0, %v4134
      %v4136 = vpop.f32.mrb[0].mxu0
      %4137 = vmatprep.mubr.f32.mxu0 0.0
      %4138 = vmatmul.mubr.f32.gmra.mrb[0].mxu0 %v693
      %v4139 = vpop.f32.mrb[0].mxu0
      %v4140 = vadd.f32 0.0, %v4139
      %v4141 = vpop.f32.mrb[0].mxu0
      %4142 = vmatprep.mubr.f32.mxu0 0.0
      %4143 = vmatmul.mubr.f32.gmra.mrb[0].mxu0 %v694
      %v4144 = vpop.f32.mrb[0].mxu0
      %v4145 = vadd.f32 0.0, %v4144
      %v4146 = vpop.f32.mrb[0].mxu0
      %4147 = vmatprep.mubr.f32.mxu0 0.0
      %4148 = vmatmul.mubr.f32.gmra.mrb[0].mxu0 %v695
      %v4149 = vpop.f32.mrb[0].mxu0
      %v4150 = vadd.f32 0.0, %v4149
      %v4151 = vpop.f32.mrb[0].mxu0
      %4152 = vmatprep.mubr.f32.mxu0 0.0
      %4153 = vmatmul.mubr.f32.gmra.mrb[0].mxu0 %v696
      %v4154 = vpop.f32.mrb[0].mxu0
      %v4155 = vadd.f32 0.0, %v4154
      %v4156 = vpop.f32.mrb[0].mxu0
      %4157 = vmatprep.mubr.f32.mxu0 0.0
      %4158 = vmatmul.mubr.f32.gmra.mrb[0].mxu0 %v697
      %v4159 = vpop.f32.mrb[0].mxu0
      %v4160 = vadd.f32 0.0, %v4159
      %v4161 = vpop.f32.mrb[0].mxu0
      %4162 = vmatprep.mubr.f32.mxu0 0.0
      %4163 = vmatmul.mubr.f32.gmra.mrb[0].mxu0 %v698
      %v4164 = vpop.f32.mrb[0].mxu0
      %v4165 = vadd.f32 0.0, %v4164
      %v4166 = vpop.f32.mrb[0].mxu0
      %4167 = vmatprep.mubr.f32.mxu0 0.0
      %4168 = vmatmul.mubr.f32.gmra.mrb[0].mxu0 %v699
      %v4169 = vpop.f32.mrb[0].mxu0
      %v4170 = vadd.f32 0.0, %v4169
      %v4171 = vpop.f32.mrb[0].mxu0
      %4172 = vmatprep.mubr.f32.mxu0 0.0
      %4173 = vmatmul.mubr.f32.gmra.mrb[0].mxu0 %v700
      %v4174 = vpop.f32.mrb[0].mxu0
      %v4175 = vadd.f32 0.0, %v4174
      %v4176 = vpop.f32.mrb[0].mxu0
      %4177 = vmatprep.mubr.f32.mxu0 0.0
      %4178 = vmatmul.mubr.f32.gmra.mrb[0].mxu0 %v701
      %v4179 = vpop.f32.mrb[0].mxu0
      %v4180 = vadd.f32 0.0, %v4179
      %v4181 = vpop.f32.mrb[0].mxu0
      %4182 = vmatprep.mubr.f32.mxu0 0.0
      %4183 = vmatmul.mubr.f32.gmra.mrb[0].mxu0 %v702
      %v4184 = vpop.f32.mrb[0].mxu0
      %v4185 = vadd.f32 0.0, %v4184
      %v4186 = vpop.f32.mrb[0].mxu0
      %4187 = vmatprep.mubr.f32.mxu0 0.0
      %4188 = vmatmul.mubr.f32.gmra.mrb[0].mxu0 %v703
      %v4189 = vpop.f32.mrb[0].mxu0
      %v4190 = vadd.f32 0.0, %v4189
      %v4191 = vpop.f32.mrb[0].mxu0
      %4192 = vmatprep.mubr.f32.mxu0 0.0
      %4193 = vmatmul.mubr.f32.gmra.mrb[0].mxu0 %v704
      %v4194 = vpop.f32.mrb[0].mxu0
      %v4195 = vadd.f32 0.0, %v4194
      %v4196 = vpop.f32.mrb[0].mxu0
      %4197 = vmatprep.mubr.f32.mxu0 0.0
      %4198 = vmatmul.mubr.f32.gmra.mrb[0].mxu0 %v705
      %v4199 = vpop.f32.mrb[0].mxu0
      %v4200 = vadd.f32 0.0, %v4199
      %v4201 = vpop.f32.mrb[0].mxu0
      %4202 = vmatprep.mubr.f32.mxu0 0.0
      %4203 = vmatmul.mubr.f32.gmra.mrb[0].mxu0 %v706
      %v4204 = vpop.f32.mrb[0].mxu0
      %v4205 = vadd.f32 0.0, %v4204
      %v4206 = vpop.f32.mrb[0].mxu0
      %4207 = vmatprep.mubr.f32.mxu0 0.0
      %4208 = vmatmul.mubr.f32.gmra.mrb[0].mxu0 %v707
      %v4209 = vpop.f32.mrb[0].mxu0
      %v4210 = vadd.f32 0.0, %v4209
      %v4211 = vpop.f32.mrb[0].mxu0
      %4212 = vmatprep.mubr.f32.mxu0 0.0
      %4213 = vmatmul.mubr.f32.gmra.mrb[0].mxu0 %v708
      %v4214 = vpop.f32.mrb[0].mxu0
      %v4215 = vadd.f32 0.0, %v4214
      %v4216 = vpop.f32.mrb[0].mxu0
      %4217 = vmatprep.mubr.f32.mxu0 0.0
      %4218 = vmatmul.mubr.f32.gmra.mrb[0].mxu0 %v709
      %v4219 = vpop.f32.mrb[0].mxu0
      %v4220 = vadd.f32 0.0, %v4219
      %v4221 = vpop.f32.mrb[0].mxu0
      %4222 = vmatprep.mubr.f32.mxu0 0.0
      %4223 = vmatmul.mubr.f32.gmra.mrb[0].mxu0 %v710
      %v4224 = vpop.f32.mrb[0].mxu0
      %v4225 = vadd.f32 0.0, %v4224
      %v4226 = vpop.f32.mrb[0].mxu0
      %4227 = vmatprep.mubr.f32.mxu0 0.0
      %4228 = vmatmul.mubr.f32.gmra.mrb[0].mxu0 %v711
      %v4229 = vpop.f32.mrb[0].mxu0
      %v4230 = vadd.f32 0.0, %v4229
      %v4231 = vpop.f32.mrb[0].mxu0
      %4232 = vmatprep.mubr.f32.mxu0 0.0
      %4233 = vmatmul.mubr.f32.gmra.mrb[0].mxu0 %v712
      %v4234 = vpop.f32.mrb[0].mxu0
      %v4235 = vadd.f32 0.0, %v4234
      %v4236 = vpop.f32.mrb[0].mxu0
      %4237 = vmatprep.mubr.f32.mxu0 0.0
      %4238 = vmatmul.mubr.f32.gmra.mrb[0].mxu0 %v713
      %v4239 = vpop.f32.mrb[0].mxu0
      %v4240 = vadd.f32 0.0, %v4239
      %v4241 = vpop.f32.mrb[0].mxu0
      %4242 = vmatprep.mubr.f32.mxu0 0.0
      %4243 = vmatmul.mubr.f32.gmra.mrb[0].mxu0 %v714
      %v4244 = vpop.f32.mrb[0].mxu0
      %v4245 = vadd.f32 0.0, %v4244
      %v4246 = vpop.f32.mrb[0].mxu0
      %4247 = vmatprep.mubr.f32.mxu0 0.0
      %4248 = vmatmul.mubr.f32.gmra.mrb[0].mxu0 %v715
      %v4249 = vpop.f32.mrb[0].mxu0
      %v4250 = vadd.f32 0.0, %v4249
      %v4251 = vpop.f32.mrb[0].mxu0
      %4252 = vmatprep.mubr.f32.mxu0 0.0
      %4253 = vmatmul.mubr.f32.gmra.mrb[0].mxu0 %v716
      %v4254 = vpop.f32.mrb[0].mxu0
      %v4255 = vadd.f32 0.0, %v4254
      %v4256 = vpop.f32.mrb[0].mxu0
      %4257 = vmatprep.mubr.f32.mxu0 0.0
      %4258 = vmatmul.mubr.f32.gmra.mrb[0].mxu0 %v717
      %v4259 = vpop.f32.mrb[0].mxu0
      %v4260 = vadd.f32 0.0, %v4259
      %v4261 = vpop.f32.mrb[0].mxu0
      %4262 = vmatprep.mubr.f32.mxu0 0.0
      %4263 = vmatmul.mubr.f32.gmra.mrb[0].mxu0 %v718
      %v4264 = vpop.f32.mrb[0].mxu0
      %v4265 = vadd.f32 0.0, %v4264
      %v4266 = vpop.f32.mrb[0].mxu0
      %4267 = vmatprep.mubr.f32.mxu0 0.0
      %4268 = vmatmul.mubr.f32.gmra.mrb[0].mxu0 %v719
      %v4269 = vpop.f32.mrb[0].mxu0
      %v4270 = vadd.f32 0.0, %v4269
      %v4271 = vpop.f32.mrb[0].mxu0
      %4272 = vmatprep.mubr.f32.mxu0 0.0
      %4273 = vmatmul.mubr.f32.gmra.mrb[0].mxu0 %v720
      %v4274 = vpop.f32.mrb[0].mxu0
      %v4275 = vadd.f32 0.0, %v4274
      %v4276 = vpop.f32.mrb[0].mxu0
      %4277 = vdwg.mxu0
      %4278 = vmatprep.subr.mxu0 0.0
      %4279 = vmatpush1.msra.mxu0 %v4020
      %4280 = vmatprep.subr.mxu0 0.0
      %4281 = vmatpush1.msra.mxu0 %v4021
      %4282 = vmatprep.subr.mxu0 0.0
      %4283 = vmatpush1.msra.mxu0 %v4022
      %4284 = vmatprep.subr.mxu0 0.0
      %4285 = vmatpush1.msra.mxu0 %v4023
      %4286 = vmatprep.subr.mxu0 0.0
      %4287 = vmatpush1.msra.mxu0 %v4024
      %4288 = vmatprep.subr.mxu0 0.0
      %4289 = vmatpush1.msra.mxu0 %v4025
      %4290 = vmatprep.subr.mxu0 0.0
      %4291 = vmatpush1.msra.mxu0 %v4026
      %4292 = vmatprep.subr.mxu0 0.0
      %4293 = vmatpush1.msra.mxu0 %v4027
      %4294 = vmatprep.subr.mxu0 0.0
      %4295 = vmatpush1.msra.mxu0 %v4028
      %4296 = vmatprep.subr.mxu0 0.0
      %4297 = vmatpush1.msra.mxu0 %v4029
      %4298 = vmatprep.subr.mxu0 0.0
      %4299 = vmatpush1.msra.mxu0 %v4030
      %4300 = vmatprep.subr.mxu0 0.0
      %4301 = vmatpush1.msra.mxu0 %v4031
      %4302 = vmatprep.subr.mxu0 0.0
      %4303 = vmatpush1.msra.mxu0 %v4032
      %4304 = vmatprep.subr.mxu0 0.0
      %4305 = vmatpush1.msra.mxu0 %v4033
      %4306 = vmatprep.subr.mxu0 0.0
      %4307 = vmatpush1.msra.mxu0 %v4034
      %4308 = vmatprep.subr.mxu0 0.0
      %4309 = vmatpush1.msra.mxu0 %v4035
      %4310 = vmatprep.subr.mxu0 0.0
      %4311 = vmatpush1.msra.mxu0 0.0
      %4312 = vmatprep.subr.mxu0 0.0
      %4313 = vmatpush1.msra.mxu0 0.0
      %4314 = vmatprep.subr.mxu0 0.0
      %4315 = vmatpush1.msra.mxu0 0.0
      %4316 = vmatprep.subr.mxu0 0.0
      %4317 = vmatpush1.msra.mxu0 0.0
      %4318 = vmatprep.subr.mxu0 0.0
      %4319 = vmatpush1.msra.mxu0 0.0
      %4320 = vmatprep.subr.mxu0 0.0
      %4321 = vmatpush1.msra.mxu0 0.0
      %4322 = vmatprep.subr.mxu0 0.0
      %4323 = vmatpush1.msra.mxu0 0.0
      %4324 = vmatprep.subr.mxu0 0.0
      %4325 = vmatpush1.msra.mxu0 0.0
      %4326 = vmatprep.subr.mxu0 0.0
      %4327 = vmatpush1.msra.mxu0 0.0
      %4328 = vmatprep.subr.mxu0 0.0
      %4329 = vmatpush1.msra.mxu0 0.0
      %4330 = vmatprep.subr.mxu0 0.0
      %4331 = vmatpush1.msra.mxu0 0.0
      %4332 = vmatprep.subr.mxu0 0.0
      %4333 = vmatpush1.msra.mxu0 0.0
      %4334 = vmatprep.subr.mxu0 0.0
      %4335 = vmatpush1.msra.mxu0 0.0
      %4336 = vmatprep.subr.mxu0 0.0
      %4337 = vmatpush1.msra.mxu0 0.0
      %4338 = vmatprep.subr.mxu0 0.0
      %4339 = vmatpush1.msra.mxu0 0.0
      %4340 = vmatprep.subr.mxu0 0.0
      %4341 = vmatpush1.msra.mxu0 0.0
      %4342 = vmatprep.mubr.f32.mxu0 0.0
      %4343 = vmatmul.mubr.f32.gmra.mrb[0].mxu0 %v653
      %v4344 = vpop.f32.mrb[0].mxu0
      %v4345 = vadd.f32 %v4120, %v4344
      %v4346 = vpop.f32.mrb[0].mxu0
      %4347 = vmatprep.mubr.f32.mxu0 0.0
      %4348 = vmatmul.mubr.f32.gmra.mrb[0].mxu0 %v654
      %v4349 = vpop.f32.mrb[0].mxu0
      %v4350 = vadd.f32 %v4125, %v4349
      %v4351 = vpop.f32.mrb[0].mxu0
      %4352 = vmatprep.mubr.f32.mxu0 0.0
      %4353 = vmatmul.mubr.f32.gmra.mrb[0].mxu0 %v655
      %v4354 = vpop.f32.mrb[0].mxu0
      %v4355 = vadd.f32 %v4130, %v4354
      %v4356 = vpop.f32.mrb[0].mxu0
      %4357 = vmatprep.mubr.f32.mxu0 0.0
      %4358 = vmatmul.mubr.f32.gmra.mrb[0].mxu0 %v656
      %v4359 = vpop.f32.mrb[0].mxu0
      %v4360 = vadd.f32 %v4135, %v4359
      %v4361 = vpop.f32.mrb[0].mxu0
      %4362 = vmatprep.mubr.f32.mxu0 0.0
      %4363 = vmatmul.mubr.f32.gmra.mrb[0].mxu0 %v657
      %v4364 = vpop.f32.mrb[0].mxu0
      %v4365 = vadd.f32 %v4140, %v4364
      %v4366 = vpop.f32.mrb[0].mxu0
      %4367 = vmatprep.mubr.f32.mxu0 0.0
      %4368 = vmatmul.mubr.f32.gmra.mrb[0].mxu0 %v658
      %v4369 = vpop.f32.mrb[0].mxu0
      %v4370 = vadd.f32 %v4145, %v4369
      %v4371 = vpop.f32.mrb[0].mxu0
      %4372 = vmatprep.mubr.f32.mxu0 0.0
      %4373 = vmatmul.mubr.f32.gmra.mrb[0].mxu0 %v659
      %v4374 = vpop.f32.mrb[0].mxu0
      %v4375 = vadd.f32 %v4150, %v4374
      %v4376 = vpop.f32.mrb[0].mxu0
      %4377 = vmatprep.mubr.f32.mxu0 0.0
      %4378 = vmatmul.mubr.f32.gmra.mrb[0].mxu0 %v660
      %v4379 = vpop.f32.mrb[0].mxu0
      %v4380 = vadd.f32 %v4155, %v4379
      %v4381 = vpop.f32.mrb[0].mxu0
      %4382 = vmatprep.mubr.f32.mxu0 0.0
      %4383 = vmatmul.mubr.f32.gmra.mrb[0].mxu0 %v661
      %v4384 = vpop.f32.mrb[0].mxu0
      %v4385 = vadd.f32 %v4160, %v4384
      %v4386 = vpop.f32.mrb[0].mxu0
      %4387 = vmatprep.mubr.f32.mxu0 0.0
      %4388 = vmatmul.mubr.f32.gmra.mrb[0].mxu0 %v662
      %v4389 = vpop.f32.mrb[0].mxu0
      %v4390 = vadd.f32 %v4165, %v4389
      %v4391 = vpop.f32.mrb[0].mxu0
      %4392 = vmatprep.mubr.f32.mxu0 0.0
      %4393 = vmatmul.mubr.f32.gmra.mrb[0].mxu0 %v663
      %v4394 = vpop.f32.mrb[0].mxu0
      %v4395 = vadd.f32 %v4170, %v4394
      %v4396 = vpop.f32.mrb[0].mxu0
      %4397 = vmatprep.mubr.f32.mxu0 0.0
      %4398 = vmatmul.mubr.f32.gmra.mrb[0].mxu0 %v664
      %v4399 = vpop.f32.mrb[0].mxu0
      %v4400 = vadd.f32 %v4175, %v4399
      %v4401 = vpop.f32.mrb[0].mxu0
      %4402 = vmatprep.mubr.f32.mxu0 0.0
      %4403 = vmatmul.mubr.f32.gmra.mrb[0].mxu0 %v665
      %v4404 = vpop.f32.mrb[0].mxu0
      %v4405 = vadd.f32 %v4180, %v4404
      %v4406 = vpop.f32.mrb[0].mxu0
      %4407 = vmatprep.mubr.f32.mxu0 0.0
      %4408 = vmatmul.mubr.f32.gmra.mrb[0].mxu0 %v666
      %v4409 = vpop.f32.mrb[0].mxu0
      %v4410 = vadd.f32 %v4185, %v4409
      %v4411 = vpop.f32.mrb[0].mxu0
      %4412 = vmatprep.mubr.f32.mxu0 0.0
      %4413 = vmatmul.mubr.f32.gmra.mrb[0].mxu0 %v667
      %v4414 = vpop.f32.mrb[0].mxu0
      %v4415 = vadd.f32 %v4190, %v4414
      %v4416 = vpop.f32.mrb[0].mxu0
      %4417 = vmatprep.mubr.f32.mxu0 0.0
      %4418 = vmatmul.mubr.f32.gmra.mrb[0].mxu0 %v668
      %v4419 = vpop.f32.mrb[0].mxu0
      %v4420 = vadd.f32 %v4195, %v4419
      %v4421 = vpop.f32.mrb[0].mxu0
      %4422 = vmatprep.mubr.f32.mxu0 0.0
      %4423 = vmatmul.mubr.f32.gmra.mrb[0].mxu0 %v669
      %v4424 = vpop.f32.mrb[0].mxu0
      %v4425 = vadd.f32 %v4200, %v4424
      %v4426 = vpop.f32.mrb[0].mxu0
      %4427 = vmatprep.mubr.f32.mxu0 0.0
      %4428 = vmatmul.mubr.f32.gmra.mrb[0].mxu0 %v670
      %v4429 = vpop.f32.mrb[0].mxu0
      %v4430 = vadd.f32 %v4205, %v4429
      %v4431 = vpop.f32.mrb[0].mxu0
      %4432 = vmatprep.mubr.f32.mxu0 0.0
      %4433 = vmatmul.mubr.f32.gmra.mrb[0].mxu0 %v671
      %v4434 = vpop.f32.mrb[0].mxu0
      %v4435 = vadd.f32 %v4210, %v4434
      %v4436 = vpop.f32.mrb[0].mxu0
      %4437 = vmatprep.mubr.f32.mxu0 0.0
      %4438 = vmatmul.mubr.f32.gmra.mrb[0].mxu0 %v672
      %v4439 = vpop.f32.mrb[0].mxu0
      %v4440 = vadd.f32 %v4215, %v4439
      %v4441 = vpop.f32.mrb[0].mxu0
      %4442 = vmatprep.mubr.f32.mxu0 0.0
      %4443 = vmatmul.mubr.f32.gmra.mrb[0].mxu0 %v673
      %v4444 = vpop.f32.mrb[0].mxu0
      %v4445 = vadd.f32 %v4220, %v4444
      %v4446 = vpop.f32.mrb[0].mxu0
      %4447 = vmatprep.mubr.f32.mxu0 0.0
      %4448 = vmatmul.mubr.f32.gmra.mrb[0].mxu0 %v674
      %v4449 = vpop.f32.mrb[0].mxu0
      %v4450 = vadd.f32 %v4225, %v4449
      %v4451 = vpop.f32.mrb[0].mxu0
      %4452 = vmatprep.mubr.f32.mxu0 0.0
      %4453 = vmatmul.mubr.f32.gmra.mrb[0].mxu0 %v675
      %v4454 = vpop.f32.mrb[0].mxu0
      %v4455 = vadd.f32 %v4230, %v4454
      %v4456 = vpop.f32.mrb[0].mxu0
      %4457 = vmatprep.mubr.f32.mxu0 0.0
      %4458 = vmatmul.mubr.f32.gmra.mrb[0].mxu0 %v676
      %v4459 = vpop.f32.mrb[0].mxu0
      %v4460 = vadd.f32 %v4235, %v4459
      %v4461 = vpop.f32.mrb[0].mxu0
      %4462 = vmatprep.mubr.f32.mxu0 0.0
      %4463 = vmatmul.mubr.f32.gmra.mrb[0].mxu0 %v677
      %v4464 = vpop.f32.mrb[0].mxu0
      %v4465 = vadd.f32 %v4240, %v4464
      %v4466 = vpop.f32.mrb[0].mxu0
      %4467 = vmatprep.mubr.f32.mxu0 0.0
      %4468 = vmatmul.mubr.f32.gmra.mrb[0].mxu0 %v678
      %v4469 = vpop.f32.mrb[0].mxu0
      %v4470 = vadd.f32 %v4245, %v4469
      %v4471 = vpop.f32.mrb[0].mxu0
      %4472 = vmatprep.mubr.f32.mxu0 0.0
      %4473 = vmatmul.mubr.f32.gmra.mrb[0].mxu0 %v679
      %v4474 = vpop.f32.mrb[0].mxu0
      %v4475 = vadd.f32 %v4250, %v4474
      %v4476 = vpop.f32.mrb[0].mxu0
      %4477 = vmatprep.mubr.f32.mxu0 0.0
      %4478 = vmatmul.mubr.f32.gmra.mrb[0].mxu0 %v680
      %v4479 = vpop.f32.mrb[0].mxu0
      %v4480 = vadd.f32 %v4255, %v4479
      %v4481 = vpop.f32.mrb[0].mxu0
      %4482 = vmatprep.mubr.f32.mxu0 0.0
      %4483 = vmatmul.mubr.f32.gmra.mrb[0].mxu0 %v681
      %v4484 = vpop.f32.mrb[0].mxu0
      %v4485 = vadd.f32 %v4260, %v4484
      %v4486 = vpop.f32.mrb[0].mxu0
      %4487 = vmatprep.mubr.f32.mxu0 0.0
      %4488 = vmatmul.mubr.f32.gmra.mrb[0].mxu0 %v682
      %v4489 = vpop.f32.mrb[0].mxu0
      %v4490 = vadd.f32 %v4265, %v4489
      %v4491 = vpop.f32.mrb[0].mxu0
      %4492 = vmatprep.mubr.f32.mxu0 0.0
      %4493 = vmatmul.mubr.f32.gmra.mrb[0].mxu0 %v683
      %v4494 = vpop.f32.mrb[0].mxu0
      %v4495 = vadd.f32 %v4270, %v4494
      %v4496 = vpop.f32.mrb[0].mxu0
      %4497 = vmatprep.mubr.f32.mxu0 0.0
      %4498 = vmatmul.mubr.f32.gmra.mrb[0].mxu0 %v684
      %v4499 = vpop.f32.mrb[0].mxu0
      %v4500 = vadd.f32 %v4275, %v4499
      %v4501 = vpop.f32.mrb[0].mxu0
      %4502 = vdwg.mxu0
      %s4503 = scalar_lea.vmem %s175, 1792
      %v4504 = vld [vmem:[%s4503] sm:$0xff]
      %v4505 = vld [vmem:[%s4503 + $0x8] sm:$0xff]
      %v4506 = vld [vmem:[%s4503 + $0x10] sm:$0xff]
      %v4507 = vld [vmem:[%s4503 + $0x18] sm:$0xff]
      %v4508 = vld [vmem:[%s4503 + $0x20] sm:$0xff]
      %v4509 = vld [vmem:[%s4503 + $0x28] sm:$0xff]
      %v4510 = vld [vmem:[%s4503 + $0x30] sm:$0xff]
      %v4511 = vld [vmem:[%s4503 + $0x38] sm:$0xff]
      %v4512 = vld [vmem:[%s4503 + $0x40] sm:$0xff]
      %v4513 = vld [vmem:[%s4503 + $0x48] sm:$0xff]
      %v4514 = vld [vmem:[%s4503 + $0x50] sm:$0xff]
      %v4515 = vld [vmem:[%s4503 + $0x58] sm:$0xff]
      %v4516 = vld [vmem:[%s4503 + $0x60] sm:$0xff]
      %v4517 = vld [vmem:[%s4503 + $0x68] sm:$0xff]
      %v4518 = vld [vmem:[%s4503 + $0x70] sm:$0xff]
      %v4519 = vld [vmem:[%s4503 + $0x78] sm:$0xff]
      %4520 = vmatprep.subr.mxu0 0.0
      %4521 = vmatpush1.msra.mxu0 %v4504
      %4522 = vmatprep.subr.mxu0 0.0
      %4523 = vmatpush1.msra.mxu0 %v4505
      %4524 = vmatprep.subr.mxu0 0.0
      %4525 = vmatpush1.msra.mxu0 %v4506
      %4526 = vmatprep.subr.mxu0 0.0
      %4527 = vmatpush1.msra.mxu0 %v4507
      %4528 = vmatprep.subr.mxu0 0.0
      %4529 = vmatpush1.msra.mxu0 %v4508
      %4530 = vmatprep.subr.mxu0 0.0
      %4531 = vmatpush1.msra.mxu0 %v4509
      %4532 = vmatprep.subr.mxu0 0.0
      %4533 = vmatpush1.msra.mxu0 %v4510
      %4534 = vmatprep.subr.mxu0 0.0
      %4535 = vmatpush1.msra.mxu0 %v4511
      %4536 = vmatprep.subr.mxu0 0.0
      %4537 = vmatpush1.msra.mxu0 %v4512
      %4538 = vmatprep.subr.mxu0 0.0
      %4539 = vmatpush1.msra.mxu0 %v4513
      %4540 = vmatprep.subr.mxu0 0.0
      %4541 = vmatpush1.msra.mxu0 %v4514
      %4542 = vmatprep.subr.mxu0 0.0
      %4543 = vmatpush1.msra.mxu0 %v4515
      %4544 = vmatprep.subr.mxu0 0.0
      %4545 = vmatpush1.msra.mxu0 %v4516
      %4546 = vmatprep.subr.mxu0 0.0
      %4547 = vmatpush1.msra.mxu0 %v4517
      %4548 = vmatprep.subr.mxu0 0.0
      %4549 = vmatpush1.msra.mxu0 %v4518
      %4550 = vmatprep.subr.mxu0 0.0
      %4551 = vmatpush1.msra.mxu0 %v4519
      %4552 = vmatprep.subr.mxu0 0.0
      %4553 = vmatpush1.msra.mxu0 0.0
      %4554 = vmatprep.subr.mxu0 0.0
      %4555 = vmatpush1.msra.mxu0 0.0
      %4556 = vmatprep.subr.mxu0 0.0
      %4557 = vmatpush1.msra.mxu0 0.0
      %4558 = vmatprep.subr.mxu0 0.0
      %4559 = vmatpush1.msra.mxu0 0.0
      %4560 = vmatprep.subr.mxu0 0.0
      %4561 = vmatpush1.msra.mxu0 0.0
      %4562 = vmatprep.subr.mxu0 0.0
      %4563 = vmatpush1.msra.mxu0 0.0
      %4564 = vmatprep.subr.mxu0 0.0
      %4565 = vmatpush1.msra.mxu0 0.0
      %4566 = vmatprep.subr.mxu0 0.0
      %4567 = vmatpush1.msra.mxu0 0.0
      %4568 = vmatprep.subr.mxu0 0.0
      %4569 = vmatpush1.msra.mxu0 0.0
      %4570 = vmatprep.subr.mxu0 0.0
      %4571 = vmatpush1.msra.mxu0 0.0
      %4572 = vmatprep.subr.mxu0 0.0
      %4573 = vmatpush1.msra.mxu0 0.0
      %4574 = vmatprep.subr.mxu0 0.0
      %4575 = vmatpush1.msra.mxu0 0.0
      %4576 = vmatprep.subr.mxu0 0.0
      %4577 = vmatpush1.msra.mxu0 0.0
      %4578 = vmatprep.subr.mxu0 0.0
      %4579 = vmatpush1.msra.mxu0 0.0
      %4580 = vmatprep.subr.mxu0 0.0
      %4581 = vmatpush1.msra.mxu0 0.0
      %4582 = vmatprep.subr.mxu0 0.0
      %4583 = vmatpush1.msra.mxu0 0.0
      %4584 = vmatprep.mubr.f32.mxu0 0.0
      %4585 = vmatmul.mubr.f32.gmra.mrb[0].mxu0 %v655
      %v4586 = vpop.f32.mrb[0].mxu0
      %v4587 = vadd.f32 0.0, %v4586
      %v4588 = vpop.f32.mrb[0].mxu0
      %4589 = vmatprep.mubr.f32.mxu0 0.0
      %4590 = vmatmul.mubr.f32.gmra.mrb[0].mxu0 %v656
      %v4591 = vpop.f32.mrb[0].mxu0
      %v4592 = vadd.f32 0.0, %v4591
      %v4593 = vpop.f32.mrb[0].mxu0
      %4594 = vmatprep.mubr.f32.mxu0 0.0
      %4595 = vmatmul.mubr.f32.gmra.mrb[0].mxu0 %v657
      %v4596 = vpop.f32.mrb[0].mxu0
      %v4597 = vadd.f32 0.0, %v4596
      %v4598 = vpop.f32.mrb[0].mxu0
      %4599 = vmatprep.mubr.f32.mxu0 0.0
      %4600 = vmatmul.mubr.f32.gmra.mrb[0].mxu0 %v658
      %v4601 = vpop.f32.mrb[0].mxu0
      %v4602 = vadd.f32 0.0, %v4601
      %v4603 = vpop.f32.mrb[0].mxu0
      %4604 = vmatprep.mubr.f32.mxu0 0.0
      %4605 = vmatmul.mubr.f32.gmra.mrb[0].mxu0 %v659
      %v4606 = vpop.f32.mrb[0].mxu0
      %v4607 = vadd.f32 0.0, %v4606
      %v4608 = vpop.f32.mrb[0].mxu0
      %4609 = vmatprep.mubr.f32.mxu0 0.0
      %4610 = vmatmul.mubr.f32.gmra.mrb[0].mxu0 %v660
      %v4611 = vpop.f32.mrb[0].mxu0
      %v4612 = vadd.f32 0.0, %v4611
      %v4613 = vpop.f32.mrb[0].mxu0
      %4614 = vmatprep.mubr.f32.mxu0 0.0
      %4615 = vmatmul.mubr.f32.gmra.mrb[0].mxu0 %v661
      %v4616 = vpop.f32.mrb[0].mxu0
      %v4617 = vadd.f32 0.0, %v4616
      %v4618 = vpop.f32.mrb[0].mxu0
      %4619 = vmatprep.mubr.f32.mxu0 0.0
      %4620 = vmatmul.mubr.f32.gmra.mrb[0].mxu0 %v662
      %v4621 = vpop.f32.mrb[0].mxu0
      %v4622 = vadd.f32 0.0, %v4621
      %v4623 = vpop.f32.mrb[0].mxu0
      %4624 = vmatprep.mubr.f32.mxu0 0.0
      %4625 = vmatmul.mubr.f32.gmra.mrb[0].mxu0 %v663
      %v4626 = vpop.f32.mrb[0].mxu0
      %v4627 = vadd.f32 0.0, %v4626
      %v4628 = vpop.f32.mrb[0].mxu0
      %4629 = vmatprep.mubr.f32.mxu0 0.0
      %4630 = vmatmul.mubr.f32.gmra.mrb[0].mxu0 %v664
      %v4631 = vpop.f32.mrb[0].mxu0
      %v4632 = vadd.f32 0.0, %v4631
      %v4633 = vpop.f32.mrb[0].mxu0
      %4634 = vmatprep.mubr.f32.mxu0 0.0
      %4635 = vmatmul.mubr.f32.gmra.mrb[0].mxu0 %v665
      %v4636 = vpop.f32.mrb[0].mxu0
      %v4637 = vadd.f32 0.0, %v4636
      %v4638 = vpop.f32.mrb[0].mxu0
      %4639 = vmatprep.mubr.f32.mxu0 0.0
      %4640 = vmatmul.mubr.f32.gmra.mrb[0].mxu0 %v666
      %v4641 = vpop.f32.mrb[0].mxu0
      %v4642 = vadd.f32 0.0, %v4641
      %v4643 = vpop.f32.mrb[0].mxu0
      %4644 = vmatprep.mubr.f32.mxu0 0.0
      %4645 = vmatmul.mubr.f32.gmra.mrb[0].mxu0 %v667
      %v4646 = vpop.f32.mrb[0].mxu0
      %v4647 = vadd.f32 0.0, %v4646
      %v4648 = vpop.f32.mrb[0].mxu0
      %4649 = vmatprep.mubr.f32.mxu0 0.0
      %4650 = vmatmul.mubr.f32.gmra.mrb[0].mxu0 %v668
      %v4651 = vpop.f32.mrb[0].mxu0
      %v4652 = vadd.f32 0.0, %v4651
      %v4653 = vpop.f32.mrb[0].mxu0
      %4654 = vmatprep.mubr.f32.mxu0 0.0
      %4655 = vmatmul.mubr.f32.gmra.mrb[0].mxu0 %v669
      %v4656 = vpop.f32.mrb[0].mxu0
      %v4657 = vadd.f32 0.0, %v4656
      %v4658 = vpop.f32.mrb[0].mxu0
      %4659 = vmatprep.mubr.f32.mxu0 0.0
      %4660 = vmatmul.mubr.f32.gmra.mrb[0].mxu0 %v670
      %v4661 = vpop.f32.mrb[0].mxu0
      %v4662 = vadd.f32 0.0, %v4661
      %v4663 = vpop.f32.mrb[0].mxu0
      %4664 = vmatprep.mubr.f32.mxu0 0.0
      %4665 = vmatmul.mubr.f32.gmra.mrb[0].mxu0 %v671
      %v4666 = vpop.f32.mrb[0].mxu0
      %v4667 = vadd.f32 0.0, %v4666
      %v4668 = vpop.f32.mrb[0].mxu0
      %4669 = vmatprep.mubr.f32.mxu0 0.0
      %4670 = vmatmul.mubr.f32.gmra.mrb[0].mxu0 %v672
      %v4671 = vpop.f32.mrb[0].mxu0
      %v4672 = vadd.f32 0.0, %v4671
      %v4673 = vpop.f32.mrb[0].mxu0
      %4674 = vmatprep.mubr.f32.mxu0 0.0
      %4675 = vmatmul.mubr.f32.gmra.mrb[0].mxu0 %v673
      %v4676 = vpop.f32.mrb[0].mxu0
      %v4677 = vadd.f32 0.0, %v4676
      %v4678 = vpop.f32.mrb[0].mxu0
      %4679 = vmatprep.mubr.f32.mxu0 0.0
      %4680 = vmatmul.mubr.f32.gmra.mrb[0].mxu0 %v674
      %v4681 = vpop.f32.mrb[0].mxu0
      %v4682 = vadd.f32 0.0, %v4681
      %v4683 = vpop.f32.mrb[0].mxu0
      %4684 = vmatprep.mubr.f32.mxu0 0.0
      %4685 = vmatmul.mubr.f32.gmra.mrb[0].mxu0 %v675
      %v4686 = vpop.f32.mrb[0].mxu0
      %v4687 = vadd.f32 0.0, %v4686
      %v4688 = vpop.f32.mrb[0].mxu0
      %4689 = vmatprep.mubr.f32.mxu0 0.0
      %4690 = vmatmul.mubr.f32.gmra.mrb[0].mxu0 %v676
      %v4691 = vpop.f32.mrb[0].mxu0
      %v4692 = vadd.f32 0.0, %v4691
      %v4693 = vpop.f32.mrb[0].mxu0
      %4694 = vmatprep.mubr.f32.mxu0 0.0
      %4695 = vmatmul.mubr.f32.gmra.mrb[0].mxu0 %v677
      %v4696 = vpop.f32.mrb[0].mxu0
      %v4697 = vadd.f32 0.0, %v4696
      %v4698 = vpop.f32.mrb[0].mxu0
      %4699 = vmatprep.mubr.f32.mxu0 0.0
      %4700 = vmatmul.mubr.f32.gmra.mrb[0].mxu0 %v678
      %v4701 = vpop.f32.mrb[0].mxu0
      %v4702 = vadd.f32 0.0, %v4701
      %v4703 = vpop.f32.mrb[0].mxu0
      %4704 = vmatprep.mubr.f32.mxu0 0.0
      %4705 = vmatmul.mubr.f32.gmra.mrb[0].mxu0 %v679
      %v4706 = vpop.f32.mrb[0].mxu0
      %v4707 = vadd.f32 0.0, %v4706
      %v4708 = vpop.f32.mrb[0].mxu0
      %4709 = vmatprep.mubr.f32.mxu0 0.0
      %4710 = vmatmul.mubr.f32.gmra.mrb[0].mxu0 %v680
      %v4711 = vpop.f32.mrb[0].mxu0
      %v4712 = vadd.f32 0.0, %v4711
      %v4713 = vpop.f32.mrb[0].mxu0
      %4714 = vmatprep.mubr.f32.mxu0 0.0
      %4715 = vmatmul.mubr.f32.gmra.mrb[0].mxu0 %v681
      %v4716 = vpop.f32.mrb[0].mxu0
      %v4717 = vadd.f32 0.0, %v4716
      %v4718 = vpop.f32.mrb[0].mxu0
      %4719 = vmatprep.mubr.f32.mxu0 0.0
      %4720 = vmatmul.mubr.f32.gmra.mrb[0].mxu0 %v682
      %v4721 = vpop.f32.mrb[0].mxu0
      %v4722 = vadd.f32 0.0, %v4721
      %v4723 = vpop.f32.mrb[0].mxu0
      %4724 = vmatprep.mubr.f32.mxu0 0.0
      %4725 = vmatmul.mubr.f32.gmra.mrb[0].mxu0 %v683
      %v4726 = vpop.f32.mrb[0].mxu0
      %v4727 = vadd.f32 0.0, %v4726
      %v4728 = vpop.f32.mrb[0].mxu0
      %4729 = vmatprep.mubr.f32.mxu0 0.0
      %4730 = vmatmul.mubr.f32.gmra.mrb[0].mxu0 %v684
      %v4731 = vpop.f32.mrb[0].mxu0
      %v4732 = vadd.f32 0.0, %v4731
      %v4733 = vpop.f32.mrb[0].mxu0
      %4734 = vmatprep.mubr.f32.mxu0 0.0
      %4735 = vmatmul.mubr.f32.gmra.mrb[0].mxu0 %v685
      %v4736 = vpop.f32.mrb[0].mxu0
      %v4737 = vadd.f32 0.0, %v4736
      %v4738 = vpop.f32.mrb[0].mxu0
      %4739 = vmatprep.mubr.f32.mxu0 0.0
      %4740 = vmatmul.mubr.f32.gmra.mrb[0].mxu0 %v686
      %v4741 = vpop.f32.mrb[0].mxu0
      %v4742 = vadd.f32 0.0, %v4741
      %v4743 = vpop.f32.mrb[0].mxu0
      %4744 = vdwg.mxu0
      %v4745 = vadd.f32 %v4345, %v4587
      %v4746 = vadd.f32 %v4350, %v4592
      %v4747 = vadd.f32 %v4355, %v4597
      %v4748 = vadd.f32 %v4360, %v4602
      %v4749 = vadd.f32 %v4365, %v4607
      %v4750 = vadd.f32 %v4370, %v4612
      %v4751 = vadd.f32 %v4375, %v4617
      %v4752 = vadd.f32 %v4380, %v4622
      %v4753 = vadd.f32 %v4385, %v4627
      %v4754 = vadd.f32 %v4390, %v4632
      %v4755 = vadd.f32 %v4395, %v4637
      %v4756 = vadd.f32 %v4400, %v4642
      %v4757 = vadd.f32 %v4405, %v4647
      %v4758 = vadd.f32 %v4410, %v4652
      %v4759 = vadd.f32 %v4415, %v4657
      %v4760 = vadd.f32 %v4420, %v4662
      %v4761 = vadd.f32 %v4425, %v4667
      %v4762 = vadd.f32 %v4430, %v4672
      %v4763 = vadd.f32 %v4435, %v4677
      %v4764 = vadd.f32 %v4440, %v4682
      %v4765 = vadd.f32 %v4445, %v4687
      %v4766 = vadd.f32 %v4450, %v4692
      %v4767 = vadd.f32 %v4455, %v4697
      %v4768 = vadd.f32 %v4460, %v4702
      %v4769 = vadd.f32 %v4465, %v4707
      %v4770 = vadd.f32 %v4470, %v4712
      %v4771 = vadd.f32 %v4475, %v4717
      %v4772 = vadd.f32 %v4480, %v4722
      %v4773 = vadd.f32 %v4485, %v4727
      %v4774 = vadd.f32 %v4490, %v4732
      %v4775 = vadd.f32 %v4495, %v4737
      %v4776 = vadd.f32 %v4500, %v4742
      %s4777 = scalar_lea.vmem %s175, 1920
      %v4778 = vld [vmem:[%s4777] sm:$0xff]
      %v4779 = vld [vmem:[%s4777 + $0x8] sm:$0xff]
      %v4780 = vld [vmem:[%s4777 + $0x10] sm:$0xff]
      %v4781 = vld [vmem:[%s4777 + $0x18] sm:$0xff]
      %v4782 = vld [vmem:[%s4777 + $0x20] sm:$0xff]
      %v4783 = vld [vmem:[%s4777 + $0x28] sm:$0xff]
      %v4784 = vld [vmem:[%s4777 + $0x30] sm:$0xff]
      %v4785 = vld [vmem:[%s4777 + $0x38] sm:$0xff]
      %v4786 = vld [vmem:[%s4777 + $0x40] sm:$0xff]
      %v4787 = vld [vmem:[%s4777 + $0x48] sm:$0xff]
      %v4788 = vld [vmem:[%s4777 + $0x50] sm:$0xff]
      %v4789 = vld [vmem:[%s4777 + $0x58] sm:$0xff]
      %v4790 = vld [vmem:[%s4777 + $0x60] sm:$0xff]
      %v4791 = vld [vmem:[%s4777 + $0x68] sm:$0xff]
      %v4792 = vld [vmem:[%s4777 + $0x70] sm:$0xff]
      %v4793 = vld [vmem:[%s4777 + $0x78] sm:$0xff]
      %4794 = vmatprep.subr.mxu0 0.0
      %4795 = vmatpush1.msra.mxu0 %v4778
      %4796 = vmatprep.subr.mxu0 0.0
      %4797 = vmatpush1.msra.mxu0 %v4779
      %4798 = vmatprep.subr.mxu0 0.0
      %4799 = vmatpush1.msra.mxu0 %v4780
      %4800 = vmatprep.subr.mxu0 0.0
      %4801 = vmatpush1.msra.mxu0 %v4781
      %4802 = vmatprep.subr.mxu0 0.0
      %4803 = vmatpush1.msra.mxu0 %v4782
      %4804 = vmatprep.subr.mxu0 0.0
      %4805 = vmatpush1.msra.mxu0 %v4783
      %4806 = vmatprep.subr.mxu0 0.0
      %4807 = vmatpush1.msra.mxu0 %v4784
      %4808 = vmatprep.subr.mxu0 0.0
      %4809 = vmatpush1.msra.mxu0 %v4785
      %4810 = vmatprep.subr.mxu0 0.0
      %4811 = vmatpush1.msra.mxu0 %v4786
      %4812 = vmatprep.subr.mxu0 0.0
      %4813 = vmatpush1.msra.mxu0 %v4787
      %4814 = vmatprep.subr.mxu0 0.0
      %4815 = vmatpush1.msra.mxu0 %v4788
      %4816 = vmatprep.subr.mxu0 0.0
      %4817 = vmatpush1.msra.mxu0 %v4789
      %4818 = vmatprep.subr.mxu0 0.0
      %4819 = vmatpush1.msra.mxu0 %v4790
      %4820 = vmatprep.subr.mxu0 0.0
      %4821 = vmatpush1.msra.mxu0 %v4791
      %4822 = vmatprep.subr.mxu0 0.0
      %4823 = vmatpush1.msra.mxu0 %v4792
      %4824 = vmatprep.subr.mxu0 0.0
      %4825 = vmatpush1.msra.mxu0 %v4793
      %4826 = vmatprep.subr.mxu0 0.0
      %4827 = vmatpush1.msra.mxu0 0.0
      %4828 = vmatprep.subr.mxu0 0.0
      %4829 = vmatpush1.msra.mxu0 0.0
      %4830 = vmatprep.subr.mxu0 0.0
      %4831 = vmatpush1.msra.mxu0 0.0
      %4832 = vmatprep.subr.mxu0 0.0
      %4833 = vmatpush1.msra.mxu0 0.0
      %4834 = vmatprep.subr.mxu0 0.0
      %4835 = vmatpush1.msra.mxu0 0.0
      %4836 = vmatprep.subr.mxu0 0.0
      %4837 = vmatpush1.msra.mxu0 0.0
      %4838 = vmatprep.subr.mxu0 0.0
      %4839 = vmatpush1.msra.mxu0 0.0
      %4840 = vmatprep.subr.mxu0 0.0
      %4841 = vmatpush1.msra.mxu0 0.0
      %4842 = vmatprep.subr.mxu0 0.0
      %4843 = vmatpush1.msra.mxu0 0.0
      %4844 = vmatprep.subr.mxu0 0.0
      %4845 = vmatpush1.msra.mxu0 0.0
      %4846 = vmatprep.subr.mxu0 0.0
      %4847 = vmatpush1.msra.mxu0 0.0
      %4848 = vmatprep.subr.mxu0 0.0
      %4849 = vmatpush1.msra.mxu0 0.0
      %4850 = vmatprep.subr.mxu0 0.0
      %4851 = vmatpush1.msra.mxu0 0.0
      %4852 = vmatprep.subr.mxu0 0.0
      %4853 = vmatpush1.msra.mxu0 0.0
      %4854 = vmatprep.subr.mxu0 0.0
      %4855 = vmatpush1.msra.mxu0 0.0
      %4856 = vmatprep.subr.mxu0 0.0
      %4857 = vmatpush1.msra.mxu0 0.0
      %4858 = vmatprep.mubr.f32.mxu0 0.0
      %4859 = vmatmul.mubr.f32.gmra.mrb[0].mxu0 %v691
      %v4860 = vpop.f32.mrb[0].mxu0
      %v4861 = vadd.f32 0.0, %v4860
      %v4862 = vpop.f32.mrb[0].mxu0
      %4863 = vmatprep.mubr.f32.mxu0 0.0
      %4864 = vmatmul.mubr.f32.gmra.mrb[0].mxu0 %v692
      %v4865 = vpop.f32.mrb[0].mxu0
      %v4866 = vadd.f32 0.0, %v4865
      %v4867 = vpop.f32.mrb[0].mxu0
      %4868 = vmatprep.mubr.f32.mxu0 0.0
      %4869 = vmatmul.mubr.f32.gmra.mrb[0].mxu0 %v693
      %v4870 = vpop.f32.mrb[0].mxu0
      %v4871 = vadd.f32 0.0, %v4870
      %v4872 = vpop.f32.mrb[0].mxu0
      %4873 = vmatprep.mubr.f32.mxu0 0.0
      %4874 = vmatmul.mubr.f32.gmra.mrb[0].mxu0 %v694
      %v4875 = vpop.f32.mrb[0].mxu0
      %v4876 = vadd.f32 0.0, %v4875
      %v4877 = vpop.f32.mrb[0].mxu0
      %4878 = vmatprep.mubr.f32.mxu0 0.0
      %4879 = vmatmul.mubr.f32.gmra.mrb[0].mxu0 %v695
      %v4880 = vpop.f32.mrb[0].mxu0
      %v4881 = vadd.f32 0.0, %v4880
      %v4882 = vpop.f32.mrb[0].mxu0
      %4883 = vmatprep.mubr.f32.mxu0 0.0
      %4884 = vmatmul.mubr.f32.gmra.mrb[0].mxu0 %v696
      %v4885 = vpop.f32.mrb[0].mxu0
      %v4886 = vadd.f32 0.0, %v4885
      %v4887 = vpop.f32.mrb[0].mxu0
      %4888 = vmatprep.mubr.f32.mxu0 0.0
      %4889 = vmatmul.mubr.f32.gmra.mrb[0].mxu0 %v697
      %v4890 = vpop.f32.mrb[0].mxu0
      %v4891 = vadd.f32 0.0, %v4890
      %v4892 = vpop.f32.mrb[0].mxu0
      %4893 = vmatprep.mubr.f32.mxu0 0.0
      %4894 = vmatmul.mubr.f32.gmra.mrb[0].mxu0 %v698
      %v4895 = vpop.f32.mrb[0].mxu0
      %v4896 = vadd.f32 0.0, %v4895
      %v4897 = vpop.f32.mrb[0].mxu0
      %4898 = vmatprep.mubr.f32.mxu0 0.0
      %4899 = vmatmul.mubr.f32.gmra.mrb[0].mxu0 %v699
      %v4900 = vpop.f32.mrb[0].mxu0
      %v4901 = vadd.f32 0.0, %v4900
      %v4902 = vpop.f32.mrb[0].mxu0
      %4903 = vmatprep.mubr.f32.mxu0 0.0
      %4904 = vmatmul.mubr.f32.gmra.mrb[0].mxu0 %v700
      %v4905 = vpop.f32.mrb[0].mxu0
      %v4906 = vadd.f32 0.0, %v4905
      %v4907 = vpop.f32.mrb[0].mxu0
      %4908 = vmatprep.mubr.f32.mxu0 0.0
      %4909 = vmatmul.mubr.f32.gmra.mrb[0].mxu0 %v701
      %v4910 = vpop.f32.mrb[0].mxu0
      %v4911 = vadd.f32 0.0, %v4910
      %v4912 = vpop.f32.mrb[0].mxu0
      %4913 = vmatprep.mubr.f32.mxu0 0.0
      %4914 = vmatmul.mubr.f32.gmra.mrb[0].mxu0 %v702
      %v4915 = vpop.f32.mrb[0].mxu0
      %v4916 = vadd.f32 0.0, %v4915
      %v4917 = vpop.f32.mrb[0].mxu0
      %4918 = vmatprep.mubr.f32.mxu0 0.0
      %4919 = vmatmul.mubr.f32.gmra.mrb[0].mxu0 %v703
      %v4920 = vpop.f32.mrb[0].mxu0
      %v4921 = vadd.f32 0.0, %v4920
      %v4922 = vpop.f32.mrb[0].mxu0
      %4923 = vmatprep.mubr.f32.mxu0 0.0
      %4924 = vmatmul.mubr.f32.gmra.mrb[0].mxu0 %v704
      %v4925 = vpop.f32.mrb[0].mxu0
      %v4926 = vadd.f32 0.0, %v4925
      %v4927 = vpop.f32.mrb[0].mxu0
      %4928 = vmatprep.mubr.f32.mxu0 0.0
      %4929 = vmatmul.mubr.f32.gmra.mrb[0].mxu0 %v705
      %v4930 = vpop.f32.mrb[0].mxu0
      %v4931 = vadd.f32 0.0, %v4930
      %v4932 = vpop.f32.mrb[0].mxu0
      %4933 = vmatprep.mubr.f32.mxu0 0.0
      %4934 = vmatmul.mubr.f32.gmra.mrb[0].mxu0 %v706
      %v4935 = vpop.f32.mrb[0].mxu0
      %v4936 = vadd.f32 0.0, %v4935
      %v4937 = vpop.f32.mrb[0].mxu0
      %4938 = vmatprep.mubr.f32.mxu0 0.0
      %4939 = vmatmul.mubr.f32.gmra.mrb[0].mxu0 %v707
      %v4940 = vpop.f32.mrb[0].mxu0
      %v4941 = vadd.f32 0.0, %v4940
      %v4942 = vpop.f32.mrb[0].mxu0
      %4943 = vmatprep.mubr.f32.mxu0 0.0
      %4944 = vmatmul.mubr.f32.gmra.mrb[0].mxu0 %v708
      %v4945 = vpop.f32.mrb[0].mxu0
      %v4946 = vadd.f32 0.0, %v4945
      %v4947 = vpop.f32.mrb[0].mxu0
      %4948 = vmatprep.mubr.f32.mxu0 0.0
      %4949 = vmatmul.mubr.f32.gmra.mrb[0].mxu0 %v709
      %v4950 = vpop.f32.mrb[0].mxu0
      %v4951 = vadd.f32 0.0, %v4950
      %v4952 = vpop.f32.mrb[0].mxu0
      %4953 = vmatprep.mubr.f32.mxu0 0.0
      %4954 = vmatmul.mubr.f32.gmra.mrb[0].mxu0 %v710
      %v4955 = vpop.f32.mrb[0].mxu0
      %v4956 = vadd.f32 0.0, %v4955
      %v4957 = vpop.f32.mrb[0].mxu0
      %4958 = vmatprep.mubr.f32.mxu0 0.0
      %4959 = vmatmul.mubr.f32.gmra.mrb[0].mxu0 %v711
      %v4960 = vpop.f32.mrb[0].mxu0
      %v4961 = vadd.f32 0.0, %v4960
      %v4962 = vpop.f32.mrb[0].mxu0
      %4963 = vmatprep.mubr.f32.mxu0 0.0
      %4964 = vmatmul.mubr.f32.gmra.mrb[0].mxu0 %v712
      %v4965 = vpop.f32.mrb[0].mxu0
      %v4966 = vadd.f32 0.0, %v4965
      %v4967 = vpop.f32.mrb[0].mxu0
      %4968 = vmatprep.mubr.f32.mxu0 0.0
      %4969 = vmatmul.mubr.f32.gmra.mrb[0].mxu0 %v713
      %v4970 = vpop.f32.mrb[0].mxu0
      %v4971 = vadd.f32 0.0, %v4970
      %v4972 = vpop.f32.mrb[0].mxu0
      %4973 = vmatprep.mubr.f32.mxu0 0.0
      %4974 = vmatmul.mubr.f32.gmra.mrb[0].mxu0 %v714
      %v4975 = vpop.f32.mrb[0].mxu0
      %v4976 = vadd.f32 0.0, %v4975
      %v4977 = vpop.f32.mrb[0].mxu0
      %4978 = vmatprep.mubr.f32.mxu0 0.0
      %4979 = vmatmul.mubr.f32.gmra.mrb[0].mxu0 %v715
      %v4980 = vpop.f32.mrb[0].mxu0
      %v4981 = vadd.f32 0.0, %v4980
      %v4982 = vpop.f32.mrb[0].mxu0
      %4983 = vmatprep.mubr.f32.mxu0 0.0
      %4984 = vmatmul.mubr.f32.gmra.mrb[0].mxu0 %v716
      %v4985 = vpop.f32.mrb[0].mxu0
      %v4986 = vadd.f32 0.0, %v4985
      %v4987 = vpop.f32.mrb[0].mxu0
      %4988 = vmatprep.mubr.f32.mxu0 0.0
      %4989 = vmatmul.mubr.f32.gmra.mrb[0].mxu0 %v717
      %v4990 = vpop.f32.mrb[0].mxu0
      %v4991 = vadd.f32 0.0, %v4990
      %v4992 = vpop.f32.mrb[0].mxu0
      %4993 = vmatprep.mubr.f32.mxu0 0.0
      %4994 = vmatmul.mubr.f32.gmra.mrb[0].mxu0 %v718
      %v4995 = vpop.f32.mrb[0].mxu0
      %v4996 = vadd.f32 0.0, %v4995
      %v4997 = vpop.f32.mrb[0].mxu0
      %4998 = vmatprep.mubr.f32.mxu0 0.0
      %4999 = vmatmul.mubr.f32.gmra.mrb[0].mxu0 %v719
      %v5000 = vpop.f32.mrb[0].mxu0
      %v5001 = vadd.f32 0.0, %v5000
      %v5002 = vpop.f32.mrb[0].mxu0
      %5003 = vmatprep.mubr.f32.mxu0 0.0
      %5004 = vmatmul.mubr.f32.gmra.mrb[0].mxu0 %v720
      %v5005 = vpop.f32.mrb[0].mxu0
      %v5006 = vadd.f32 0.0, %v5005
      %v5007 = vpop.f32.mrb[0].mxu0
      %5008 = vmatprep.mubr.f32.mxu0 0.0
      %5009 = vmatmul.mubr.f32.gmra.mrb[0].mxu0 %v721
      %v5010 = vpop.f32.mrb[0].mxu0
      %v5011 = vadd.f32 0.0, %v5010
      %v5012 = vpop.f32.mrb[0].mxu0
      %5013 = vmatprep.mubr.f32.mxu0 0.0
      %5014 = vmatmul.mubr.f32.gmra.mrb[0].mxu0 %v722
      %v5015 = vpop.f32.mrb[0].mxu0
      %v5016 = vadd.f32 0.0, %v5015
      %v5017 = vpop.f32.mrb[0].mxu0
      %5018 = vdwg.mxu0
      %v5019 = vadd.f32 %v4745, %v4861
      %v5020 = vadd.f32 %v4746, %v4866
      %v5021 = vadd.f32 %v4747, %v4871
      %v5022 = vadd.f32 %v4748, %v4876
      %v5023 = vadd.f32 %v4749, %v4881
      %v5024 = vadd.f32 %v4750, %v4886
      %v5025 = vadd.f32 %v4751, %v4891
      %v5026 = vadd.f32 %v4752, %v4896
      %v5027 = vadd.f32 %v4753, %v4901
      %v5028 = vadd.f32 %v4754, %v4906
      %v5029 = vadd.f32 %v4755, %v4911
      %v5030 = vadd.f32 %v4756, %v4916
      %v5031 = vadd.f32 %v4757, %v4921
      %v5032 = vadd.f32 %v4758, %v4926
      %v5033 = vadd.f32 %v4759, %v4931
      %v5034 = vadd.f32 %v4760, %v4936
      %v5035 = vadd.f32 %v4761, %v4941
      %v5036 = vadd.f32 %v4762, %v4946
      %v5037 = vadd.f32 %v4763, %v4951
      %v5038 = vadd.f32 %v4764, %v4956
      %v5039 = vadd.f32 %v4765, %v4961
      %v5040 = vadd.f32 %v4766, %v4966
      %v5041 = vadd.f32 %v4767, %v4971
      %v5042 = vadd.f32 %v4768, %v4976
      %v5043 = vadd.f32 %v4769, %v4981
      %v5044 = vadd.f32 %v4770, %v4986
      %v5045 = vadd.f32 %v4771, %v4991
      %v5046 = vadd.f32 %v4772, %v4996
      %v5047 = vadd.f32 %v4773, %v5001
      %v5048 = vadd.f32 %v4774, %v5006
      %v5049 = vadd.f32 %v4775, %v5011
      %v5050 = vadd.f32 %v4776, %v5016
      %v5051 = vadd.f32 %v5019, %v1759
      %v5052 = vadd.f32 %v5020, %v1759
      %v5053 = vadd.f32 %v5021, %v1759
      %v5054 = vadd.f32 %v5022, %v1759
      %v5055 = vadd.f32 %v5023, %v1759
      %v5056 = vadd.f32 %v5024, %v1759
      %v5057 = vadd.f32 %v5025, %v1759
      %v5058 = vadd.f32 %v5026, %v1759
      %v5059 = vadd.f32 %v5027, %v1759
      %v5060 = vadd.f32 %v5028, %v1759
      %v5061 = vadd.f32 %v5029, %v1759
      %v5062 = vadd.f32 %v5030, %v1759
      %v5063 = vadd.f32 %v5031, %v1759
      %v5064 = vadd.f32 %v5032, %v1759
      %v5065 = vadd.f32 %v5033, %v1759
      %v5066 = vadd.f32 %v5034, %v1759
      %v5067 = vadd.f32 %v5035, %v1759
      %v5068 = vadd.f32 %v5036, %v1759
      %v5069 = vadd.f32 %v5037, %v1759
      %v5070 = vadd.f32 %v5038, %v1759
      %v5071 = vadd.f32 %v5039, %v1759
      %v5072 = vadd.f32 %v5040, %v1759
      %v5073 = vadd.f32 %v5041, %v1759
      %v5074 = vadd.f32 %v5042, %v1759
      %v5075 = vadd.f32 %v5043, %v1759
      %v5076 = vadd.f32 %v5044, %v1759
      %v5077 = vadd.f32 %v5045, %v1759
      %v5078 = vadd.f32 %v5046, %v1759
      %v5079 = vadd.f32 %v5047, %v1759
      %v5080 = vadd.f32 %v5048, %v1759
      %v5081 = vadd.f32 %v5049, %v1759
      %v5082 = vadd.f32 %v5050, %v1759
      %s5083 = scalar_lea.vmem %s188, 48
      %5084 = vst [vmem:[%s5083] sm:$0xff] %v5051
      %5085 = vst [vmem:[%s5083 + $0x8] sm:$0xff] %v5052
      %5086 = vst [vmem:[%s5083 + $0x40] sm:$0xff] %v5053
      %5087 = vst [vmem:[%s5083 + $0x48] sm:$0xff] %v5054
      %5088 = vst [vmem:[%s5083 + $0x80] sm:$0xff] %v5055
      %5089 = vst [vmem:[%s5083 + $0x88] sm:$0xff] %v5056
      %5090 = vst [vmem:[%s5083 + $0xc0] sm:$0xff] %v5057
      %5091 = vst [vmem:[%s5083 + $0xc8] sm:$0xff] %v5058
      %5092 = vst [vmem:[%s5083 + $0x100] sm:$0xff] %v5059
      %5093 = vst [vmem:[%s5083 + $0x108] sm:$0xff] %v5060
      %5094 = vst [vmem:[%s5083 + $0x140] sm:$0xff] %v5061
      %5095 = vst [vmem:[%s5083 + $0x148] sm:$0xff] %v5062
      %5096 = vst [vmem:[%s5083 + $0x180] sm:$0xff] %v5063
      %5097 = vst [vmem:[%s5083 + $0x188] sm:$0xff] %v5064
      %5098 = vst [vmem:[%s5083 + $0x1c0] sm:$0xff] %v5065
      %5099 = vst [vmem:[%s5083 + $0x1c8] sm:$0xff] %v5066
      %5100 = vst [vmem:[%s5083 + $0x200] sm:$0xff] %v5067
      %5101 = vst [vmem:[%s5083 + $0x208] sm:$0xff] %v5068
      %5102 = vst [vmem:[%s5083 + $0x240] sm:$0xff] %v5069
      %5103 = vst [vmem:[%s5083 + $0x248] sm:$0xff] %v5070
      %5104 = vst [vmem:[%s5083 + $0x280] sm:$0xff] %v5071
      %5105 = vst [vmem:[%s5083 + $0x288] sm:$0xff] %v5072
      %5106 = vst [vmem:[%s5083 + $0x2c0] sm:$0xff] %v5073
      %5107 = vst [vmem:[%s5083 + $0x2c8] sm:$0xff] %v5074
      %5108 = vst [vmem:[%s5083 + $0x300] sm:$0xff] %v5075
      %5109 = vst [vmem:[%s5083 + $0x308] sm:$0xff] %v5076
      %5110 = vst [vmem:[%s5083 + $0x340] sm:$0xff] %v5077
      %5111 = vst [vmem:[%s5083 + $0x348] sm:$0xff] %v5078
      %5112 = vst [vmem:[%s5083 + $0x380] sm:$0xff] %v5079
      %5113 = vst [vmem:[%s5083 + $0x388] sm:$0xff] %v5080
      %5114 = vst [vmem:[%s5083 + $0x3c0] sm:$0xff] %v5081
      %5115 = vst [vmem:[%s5083 + $0x3c8] sm:$0xff] %v5082
      %s5116 = sadd.s32 %s20, %s21
      %s5117 = smul.u32 16, %s5116
      %p5118 = scmp.lt.s32.totalorder %s5117, 31
      %s5119 = scalar_select %p5118, %s5117, 31
      %p5120 = scmp.lt.s32.totalorder %s19, 0
      %s5121 = scalar_select %p5120, %s19, 0
      %s5122 = smul.addr %s5119, 8
      %s5123 = sadd.s32 %s5121, %s5122
      %s5124 = smul.addr %s5123, 8
      %s5125 = scalar_lea.vmem %s3, %s5124
      // Predicated region
      $region111: #{upsample_forward.1} parent=27 // pred_check
        %p5126 = pneg %p107
      $region112: #{upsample_forward.1} parent=27 // pred_check_branch
        %5128 = sbr.rel (%p5126) target = $region114
      $region113: #{upsample_forward.1} parent=27 // pred_region
        %s5129 = sadd.s32 %s20, %s21
        %s5130 = smul.u32 16, %s5129
      $region114: #{upsample_forward.1} parent=27 // pred_fallthru
        _
    $region28: #{upsample_forward.1} parent=5 // pred_fallthru
      _
    %p5131 = scmp.le.s32.totalorder 2, %s9
    // Predicated region
    $region115: #{upsample_forward.1} parent=5 // pred_check
      %p5132 = pneg %p5131
    $region116: #{upsample_forward.1} parent=5 // pred_check_branch
      %5134 = sbr.rel (%p5132) target = $region118
    $region117: #{upsample_forward.1} parent=5 // pred_region
      %s5135 = ssub.s32 %s9, 2
      // Predicated region
      $region119: #{upsample_forward.1} parent=117 // pred_check
        %p5136 = pneg %p113
      $region120: #{upsample_forward.1} parent=117 // pred_check_branch
        %5138 = sbr.rel (%p5136) target = $region122
      $region121: #{upsample_forward.1} parent=117 // pred_region
        %s5139 = sadd.s32 %s23, %s24
        %s5140 = smul.u32 16, %s5139
        %p5141 = scmp.lt.s32.totalorder %s5140, 31
        %s5142 = scalar_select %p5141, %s5140, 31
        %p5143 = scmp.lt.s32.totalorder %s22, 0
        %s5144 = scalar_select %p5143, %s22, 0
        %s5145 = smul.addr %s5142, 8
        %s5146 = sadd.s32 %s5144, %s5145
        %s5147 = smul.addr %s5146, 8
        %s5148 = scalar_lea.vmem %s3, %s5147
      $region122: #{upsample_forward.1} parent=117 // pred_fallthru
        _
    $region118: #{upsample_forward.1} parent=5 // pred_fallthru
      _
  $region6: #{upsample_forward.1} parent=0 // loop_footer
    %s13 = sadd.s32 1, %s9
  $region7: #{upsample_forward.1} parent=0 // loop_footer_branch
    %8 = sbr.rel target = $region3
  $region8: #{upsample_forward.1} parent=0 // loop_exit
    _
  %5149 = vsyncmov [#allocation3]
  %s5150 = vpop.sfrf %5149
  %p5151 = scmp.eq.s32.totalorder %s5150, 0
  %p5152 = pneg %p5151
  %5154 = shalt.err (%p5152)
  %s5155 = scalar_lea.sflag [#allocation3], 1
  %5156 = vsyncmov %s5155
  %s5157 = vpop.sfrf %5156
  %p5158 = scmp.eq.s32.totalorder %s5157, 0
  %p5159 = pneg %p5158
  %5161 = shalt.err (%p5159)

</llo_original>
